<compile_context>
chip_gen: v5e
topology: v5e:2x2
jax: 0.10.0
libtpu: 0.0.40
codegen_flags: <defaults>
</compile_context>

<pallas_src>
import functools
import jax
import jax.numpy as jnp
from jax.experimental import pallas as pl
from jax.experimental.pallas import tpu as pltpu


# ----------------------------------------------------------------------------
# Pallas kernel 1: row-tiled matmul + bias (used for the hoisted GRU input
# projection).  Grid over row tiles, marked "parallel".
# ----------------------------------------------------------------------------
def matmul_bias_kernel(x_ref, w_ref, b_ref, o_ref):
    o_ref[...] = (jnp.dot(x_ref[...], w_ref[...],
                          preferred_element_type=jnp.float32) + b_ref[...])


def input_projection(x2d, wi, bi, tile_n=256):
    N, D = x2d.shape
    G = wi.shape[1]
    tn = min(tile_n, N)
    if tn != N:
        tn = max(8, (tn // 8) * 8)
    grid_spec = pltpu.PrefetchScalarGridSpec(
        num_scalar_prefetch=0,
        grid=(pl.cdiv(N, tn),),
        in_specs=[
            pl.BlockSpec((tn, D), lambda i: (i, 0)),
            pl.BlockSpec((D, G), lambda i: (0, 0)),   # resident weights
            pl.BlockSpec((1, G), lambda i: (0, 0)),
        ],
        out_specs=pl.BlockSpec((tn, G), lambda i: (i, 0)),
    )
    return pl.pallas_call(
        matmul_bias_kernel,
        out_shape=jax.ShapeDtypeStruct((N, G), jnp.float32),
        grid_spec=grid_spec,
        compiler_params=pltpu.CompilerParams(
            dimension_semantics=("parallel",)),
    )(x2d, wi, bi)


# ----------------------------------------------------------------------------
# Pallas kernel 2: GRU recurrence over time chunks.
# Grid = (T // TC,), sequential ("arbitrary").  Hidden state lives in VMEM
# scratch and carries across grid steps.  Per time step: ONE (B, H) x (H, 3H)
# matmul for the hidden projection; input projections (incl. input biases)
# come precomputed from `input_projection`.
#
# torch.nn.GRU equations:
#   r = sigmoid(x Wir + b_ir + h Whr + b_hr)
#   z = sigmoid(x Wiz + b_iz + h Whz + b_hz)
#   n = tanh(x Win + b_in + r * (h Whn + b_hn))
#   h' = (1 - z) * n + z * h
# ----------------------------------------------------------------------------
def gru_recurrence_kernel(xp_ref, wh_ref, bh_ref, h_out_ref, h_scratch):
    c = pl.program_id(0)

    @pl.when(c == 0)
    def _():
        h_scratch[...] = jnp.zeros_like(h_scratch)

    H = wh_ref.shape[0]
    chunk = xp_ref.shape[1]

    def step(i, h):
        xp = xp_ref[:, i, :]                                     # (B, 3H)
        hp = jnp.dot(h, wh_ref[...],
                     preferred_element_type=jnp.float32) + bh_ref[...]
        r = jax.nn.sigmoid(xp[:, 0:H] + hp[:, 0:H])
        z = jax.nn.sigmoid(xp[:, H:2 * H] + hp[:, H:2 * H])
        n = jnp.tanh(xp[:, 2 * H:3 * H] + r * hp[:, 2 * H:3 * H])
        h_new = (1.0 - z) * n + z * h
        h_out_ref[:, i, :] = h_new
        return h_new

    h_scratch[...] = jax.lax.fori_loop(0, chunk, step, h_scratch[...],
                                       unroll=True)


def _chunk_size(T, target=32):
    """Largest chunk <= target that divides T and is sublane-aligned."""
    if T <= target:
        return T
    for tc in range(target, 7, -1):
        if tc % 8 == 0 and T % tc == 0:
            return tc
    return T


def gru_recurrence(xproj, wh, bh, H, tc):
    Bp, T, G = xproj.shape
    grid_spec = pltpu.PrefetchScalarGridSpec(
        num_scalar_prefetch=0,
        grid=(T // tc,),
        in_specs=[
            pl.BlockSpec((Bp, tc, G), lambda c: (0, c, 0)),
            pl.BlockSpec((H, G), lambda c: (0, 0)),   # fused hidden weights
            pl.BlockSpec((1, G), lambda c: (0, 0)),   # fused hidden biases
        ],
        out_specs=pl.BlockSpec((Bp, tc, H), lambda c: (0, c, 0)),
        scratch_shapes=[pltpu.VMEM((Bp, H), jnp.float32)],
    )
    return pl.pallas_call(
        gru_recurrence_kernel,
        out_shape=jax.ShapeDtypeStruct((Bp, T, H), jnp.float32),
        grid_spec=grid_spec,
        compiler_params=pltpu.CompilerParams(
            dimension_semantics=("arbitrary",)),   # must stay sequential
    )(xproj, wh, bh)


def gru_forward(x_btd, g):
    """x_btd: (B, T, D) f32, batch-first -> (B, T, H) f32 (torch GRU)."""
    B, T, D = x_btd.shape
    H = g["whr"].shape[0]

    # Fuse gate weights/biases in the wrapper (tiny, parameter-side).
    wi = jnp.concatenate([g["wir"], g["wiz"], g["win"]], axis=1)   # (D, 3H)
    bi = jnp.concatenate([g["bir"], g["biz"], g["bin"]], axis=1)   # (1, 3H)
    wh = jnp.concatenate([g["whr"], g["whz"], g["whn"]], axis=1)   # (H, 3H)
    bh = jnp.concatenate([g["bhr"], g["bhz"], g["bhn"]], axis=1)   # (1, 3H)

    # Pad the batch to a multiple of 8 sublanes for the per-step matmul.
    Bp = max(8, ((B + 7) // 8) * 8)
    if Bp != B:
        x_btd = jnp.pad(x_btd, ((0, Bp - B), (0, 0), (0, 0)))

    # (1) hoisted input projection: one large parallel matmul over all (b, t).
    xproj = input_projection(x_btd.reshape(Bp * T, D), wi, bi)
    xproj = xproj.reshape(Bp, T, 3 * H)

    # (2) sequential recurrence over time chunks (batch-first blocks, no
    #     transposes anywhere).
    tc = _chunk_size(T)
    h_seq = gru_recurrence(xproj, wh, bh, H, tc)                    # (Bp, T, H)
    return h_seq[:B] if Bp != B else h_seq


# ----------------------------------------------------------------------------
# Pallas kernel 3: fused fc + mastery + ">= 0.4 -> 1" threshold.
#   master = h @ (Wfc @ matrix.T) + bfc @ matrix.T ;  master[master>=0.4] = 1
# Row-tiled, "parallel"; output width zero-padded to a multiple of 128 lanes
# for dense stores and sliced back in the wrapper.
# ----------------------------------------------------------------------------
def fc_master_kernel(h_ref, w_ref, b_ref, out_ref):
    m = jnp.dot(h_ref[...], w_ref[...],
                preferred_element_type=jnp.float32) + b_ref[...]
    out_ref[...] = jnp.where(m >= 0.4, jnp.float32(1.0), m)


def fc_master(h2d, wfused, bfused, tile_n=256):
    N, H = h2d.shape
    NQ = wfused.shape[1]
    NQp = ((NQ + 127) // 128) * 128
    if NQp != NQ:  # padded columns -> 0.0 (< 0.4), sliced off below
        wfused = jnp.pad(wfused, ((0, 0), (0, NQp - NQ)))
        bfused = jnp.pad(bfused, ((0, 0), (0, NQp - NQ)))
    tn = min(tile_n, N)
    if tn != N:
        tn = max(8, (tn // 8) * 8)
    grid_spec = pltpu.PrefetchScalarGridSpec(
        num_scalar_prefetch=0,
        grid=(pl.cdiv(N, tn),),
        in_specs=[
            pl.BlockSpec((tn, H), lambda i: (i, 0)),
            pl.BlockSpec((H, NQp), lambda i: (0, 0)),
            pl.BlockSpec((1, NQp), lambda i: (0, 0)),
        ],
        out_specs=pl.BlockSpec((tn, NQp), lambda i: (i, 0)),
    )
    out = pl.pallas_call(
        fc_master_kernel,
        out_shape=jax.ShapeDtypeStruct((N, NQp), jnp.float32),
        grid_spec=grid_spec,
        compiler_params=pltpu.CompilerParams(
            dimension_semantics=("parallel",)),
    )(h2d, wfused, bfused)
    return out[:, :NQ] if NQp != NQ else out


# ----------------------------------------------------------------------------
# DINA guess/slip scan — now LINEAR in T: carried per-question counters replace
# the O(T^2) masked recounts.  Plain JAX lax.scan (data-dependent scalar
# control flow), vectorized over the batch; mirrors the PyTorch loops exactly.
# ----------------------------------------------------------------------------
def dina_scan(q, qa, master, n_question, output_dim):
    # q, qa: (B, T) int32;  master: (B, T, NQ) float32 (post-threshold)
    B, T = q.shape
    # Mdiag[b, t] = master[b, t, q[b, t] - 1]  (== master at the answered q)
    Mdiag = jnp.take_along_axis(master, (q - 1)[..., None], axis=-1)[..., 0]

    def step(carry, inputs):
        g_row, s_row, cnt_all, cnt_mc, cnt_mi, cnt_nmc = carry
        cq, qa_t, md_t = inputs                         # each (B,)
        idx = cq - 1
        oh_q = (jnp.arange(n_question)[None, :] == idx[:, None]).astype(
            jnp.float32)                                # (B, NQ)
        oh_o = (jnp.arange(output_dim)[None, :] == idx[:, None]).astype(
            jnp.float32)                                # (B, OD)

        answered_all = jnp.sum(cnt_all * oh_q, axis=1) + 1.0   # includes step t
        mc = jnp.sum(cnt_mc * oh_q, axis=1)
        mi = jnp.sum(cnt_mi * oh_q, axis=1)
        nmc = jnp.sum(cnt_nmc * oh_q, axis=1)

        g_prev = jnp.sum(g_row * oh_o, axis=1)
        s_prev = jnp.sum(s_row * oh_o, axis=1)

        qa_is1 = (qa_t == 1)
        m_is1 = (md_t == 1.0)
        g_master = jnp.where(qa_is1, mc / answered_all, g_prev)
        s_master = jnp.where(qa_is1, s_prev, mi / answered_all)
        g_nomaster = jnp.where(qa_is1, nmc / answered_all,
                               1.0 - nmc / answered_all)
        s_nomaster = s_prev
        new_g = jnp.where(m_is1, g_master, g_nomaster)
        new_s = jnp.where(m_is1, s_master, s_nomaster)

        g_row = g_row * (1.0 - oh_o) + new_g[:, None] * oh_o
        s_row = s_row * (1.0 - oh_o) + new_s[:, None] * oh_o

        res = (1.0 - new_s) * (md_t * new_g + (1.0 - new_s) * (1.0 - md_t))

        # Update running counters with step t's contribution (for future steps).
        qa1f = qa_is1.astype(jnp.float32)[:, None]
        m1f = m_is1.astype(jnp.float32)[:, None]
        m0f = (md_t == 0.0).astype(jnp.float32)[:, None]
        cnt_all = cnt_all + oh_q
        cnt_mc = cnt_mc + oh_q * qa1f * m1f
        cnt_mi = cnt_mi + oh_q * (1.0 - qa1f) * m1f
        cnt_nmc = cnt_nmc + oh_q * (1.0 - qa1f) * m0f
        return (g_row, s_row, cnt_all, cnt_mc, cnt_mi, cnt_nmc), res

    init = (jnp.zeros((B, output_dim), jnp.float32),
            jnp.zeros((B, output_dim), jnp.float32),
            jnp.zeros((B, n_question), jnp.float32),
            jnp.zeros((B, n_question), jnp.float32),
            jnp.zeros((B, n_question), jnp.float32),
            jnp.zeros((B, n_question), jnp.float32))
    xs = (jnp.transpose(q, (1, 0)), jnp.transpose(qa, (1, 0)),
          jnp.transpose(Mdiag, (1, 0)))
    _, results = jax.lax.scan(step, init, xs)
    return jnp.transpose(results, (1, 0))               # (B, T)


# ----------------------------------------------------------------------------
# Full forward pass (embeddings + GRU + fc/master + DINA + masked MSE).
# ----------------------------------------------------------------------------
def grudina_forward(params, q_data, qa_data_raw, matrix, target, pid_data,
                    *, n_question, output_dim, l2):
    B, T = q_data.shape
    q_embed = params["q_emb"][q_data]                       # (B, T, E)
    qa = (qa_data_raw - q_data) // n_question               # (B, T) in {0, 1}
    qa_embed = params["qa_emb"][qa] + q_embed

    # n_pid > 0 branch
    q_diff = params["q_emb_diff"][q_data]
    pid_embed = params["difficult"][pid_data]               # (B, T, 1)
    q_embed = q_embed + pid_embed * q_diff
    qa_diff = params["qa_emb_diff"][qa]
    qa_embed = qa_embed + pid_embed * qa_diff
    c_reg_loss = jnp.sum(pid_embed ** 2) * l2

    # separate_qa = False -> concat; batch-first all the way (no transposes).
    x = jnp.concatenate([qa_embed, q_embed], axis=-1).astype(jnp.float32)

    # TODO(synk): inter-layer nn.Dropout is stochastic; num_layers=1 here so it
    # never applies.
    h_seq = gru_forward(x, params["gru"])                    # (B, T, H)
    h2d = h_seq.reshape(B * T, -1)

    # Algebraic fusion of fc and mastery matmuls (exact: threshold only applies
    # to the final product).
    matT = matrix.T.astype(jnp.float32)                      # (OD, NQ)
    wfused = jnp.dot(params["wfc"], matT)                    # (H, NQ)
    bfused = jnp.dot(params["bfc"], matT)                    # (1, NQ)
    master = fc_master(h2d, wfused, bfused).reshape(B, T, -1)

    pred = dina_scan(q_data, qa, master, n_question, output_dim)   # (B, T)
    preds = pred.reshape(-1)
    labels = target.reshape(-1).astype(jnp.float32)
    mask = labels > -0.9
    maskf = mask.astype(jnp.float32)
    loss = jnp.sum(maskf * (preds - labels) ** 2) + c_reg_loss
    return loss, jax.nn.sigmoid(preds), jnp.sum(mask.astype(jnp.int32))


# ----------------------------------------------------------------------------
# Deterministic parameter init (PyTorch-ish conventions, synthetic values).
# ----------------------------------------------------------------------------
def init_params(key, n_pid, n_question, q_embed_dim, hidden_dim, output_dim):
    ks = jax.random.split(key, 20)
    E, H, D = q_embed_dim, hidden_dim, 2 * q_embed_dim
    kscale = 1.0 / jnp.sqrt(jnp.float32(H))
    uni = lambda k, shape: jax.random.uniform(k, shape, jnp.float32,
                                              -kscale, kscale)
    gru = {
        "wir": uni(ks[0], (D, H)), "wiz": uni(ks[1], (D, H)),
        "win": uni(ks[2], (D, H)),
        "whr": uni(ks[3], (H, H)), "whz": uni(ks[4], (H, H)),
        "whn": uni(ks[5], (H, H)),
        "bir": uni(ks[6], (1, H)), "biz": uni(ks[7], (1, H)),
        "bin": uni(ks[8], (1, H)),
        "bhr": uni(ks[9], (1, H)), "bhz": uni(ks[10], (1, H)),
        "bhn": uni(ks[11], (1, H)),
    }
    params = {
        "q_emb": jax.random.normal(ks[12], (n_question + 1, E), jnp.float32),
        "qa_emb": jax.random.normal(ks[13], (2, E), jnp.float32),
        "q_emb_diff": jax.random.normal(ks[14], (n_question + 1, E),
                                        jnp.float32),
        "qa_emb_diff": jax.random.normal(ks[15], (2 * n_question + 1, E),
                                         jnp.float32),
        "difficult": 0.1 * jax.random.normal(ks[16], (n_pid + 1, 1),
                                             jnp.float32),
        "gru": gru,
        "wfc": uni(ks[17], (H, output_dim)),
        "bfc": jnp.zeros((1, output_dim), jnp.float32),
    }
    return params


if __name__ == "__main__":
    # Small, forward-consistent config.
    n_pid, n_question = 10, 8
    q_embed_dim, qa_embed_dim = 16, 16
    hidden_dim, output_dim = 32, 8
    num_layers, dropout, l2 = 1, 0.0, 1e-5
    B, T = 2, 8

    key = jax.random.PRNGKey(0)
    kp, k1, k2, k3, k4, k5 = jax.random.split(key, 6)

    params = init_params(kp, n_pid, n_question, q_embed_dim, hidden_dim,
                         output_dim)

    q_data = jax.random.randint(k1, (B, T), 1, n_question + 1, jnp.int32)
    answers = jax.random.randint(k2, (B, T), 0, 2, jnp.int32)
    qa_data = q_data + answers * n_question          # raw qa ids, as in PyTorch
    pid_data = jax.random.randint(k3, (B, T), 1, n_pid + 1, jnp.int32)
    matrix = (jax.random.uniform(k4, (n_question, output_dim)) > 0.5
              ).astype(jnp.float32)                  # Q-matrix
    target = jnp.where(jax.random.uniform(k5, (B, T)) < 0.25,
                       jnp.float32(-1.0),
                       answers.astype(jnp.float32))  # -1 entries masked out

    fwd = jax.jit(functools.partial(grudina_forward,
                                    n_question=n_question,
                                    output_dim=output_dim,
                                    l2=l2))
    loss, sig_preds, mask_count = fwd(params, q_data, qa_data, matrix, target,
                                      pid_data)
    jax.block_until_ready((loss, sig_preds, mask_count))
    print("KERNEL_OK")
</pallas_src>

<mosaic_0001>
module attributes {stable_mosaic.version = 11 : i64} {
  func.func @gru_recurrence_kernel(%arg0: i32, %arg1: memref<8x8x96xf32, #tpu.memory_space<vmem>>, %arg2: memref<32x96xf32, #tpu.memory_space<vmem>>, %arg3: memref<1x96xf32, #tpu.memory_space<vmem>>, %arg4: memref<8x8x32xf32, #tpu.memory_space<vmem>>, %arg5: memref<8x32xf32, #tpu.memory_space<vmem>>) attributes {dimension_semantics = [#tpu.dimension_semantics<arbitrary>], iteration_bounds = array<i64: 1>, scalar_prefetch = 0 : i64, scratch_operands = 1 : i64, tpu.core_type = #tpu.core_type<tc>, window_params = [{transform_indices = @transform_0, window_bounds = array<i64: 8, 8, 96>}, {pipeline_mode = #tpu.pipeline_mode<synchronous>, transform_indices = @transform_1, window_bounds = array<i64: 32, 96>}, {pipeline_mode = #tpu.pipeline_mode<synchronous>, transform_indices = @transform_2, window_bounds = array<i64: 1, 96>}, {transform_indices = @transform_3, window_bounds = array<i64: 8, 8, 32>}]} {
    %c0_i32 = arith.constant 0 : i32
    %0 = arith.cmpi eq, %arg0, %c0_i32 : i32
    %1 = arith.extui %0 : i1 to i32
    %c0_i32_0 = arith.constant 0 : i32
    %2 = arith.cmpi ne, %1, %c0_i32_0 : i32
    scf.if %2 {
      %cst_100 = arith.constant 0.000000e+00 : f32
      %309 = vector.broadcast %cst_100 : f32 to vector<8x32xf32>
      %c0_101 = arith.constant 0 : index
      %c0_102 = arith.constant 0 : index
      %310 = vector.load %arg5[%c0_101, %c0_102] : memref<8x32xf32, #tpu.memory_space<vmem>>, vector<8x32xf32>
      tpu.vector_store %arg5[%c0_101, %c0_102], %309 {strides = array<i32>} : memref<8x32xf32, #tpu.memory_space<vmem>>, vector<8x32xf32>,
    } else {
    }
    %c0 = arith.constant 0 : index
    %c0_1 = arith.constant 0 : index
    %3 = vector.load %arg5[%c0, %c0_1] : memref<8x32xf32, #tpu.memory_space<vmem>>, vector<8x32xf32>
    %c0_i32_2 = arith.constant 0 : i32
    %c0_3 = arith.constant 0 : index
    %4 = arith.index_cast %c0_i32_2 : i32 to index
    %c0_4 = arith.constant 0 : index
    %5 = vector.load %arg1[%c0_3, %4, %c0_4] : memref<8x8x96xf32, #tpu.memory_space<vmem>>, vector<8x1x96xf32>
    %6 = vector.shape_cast %5 : vector<8x1x96xf32> to vector<8x96xf32>
    %c0_5 = arith.constant 0 : index
    %c0_6 = arith.constant 0 : index
    %7 = vector.load %arg2[%c0_5, %c0_6] : memref<32x96xf32, #tpu.memory_space<vmem>>, vector<32x96xf32>
    %cst = arith.constant dense<0.000000e+00> : vector<8x96xf32>
    %8 = tpu.matmul %3, %7, %cst {dimension_numbers = #tpu.dot_dimension_numbers<[1], [0], [0], [1], [0, 0, 1, 1], [], []>} : vector<8x32xf32>, vector<32x96xf32>, vector<8x96xf32> -> vector<8x96xf32>
    %c0_7 = arith.constant 0 : index
    %c0_8 = arith.constant 0 : index
    %9 = vector.load %arg3[%c0_7, %c0_8] : memref<1x96xf32, #tpu.memory_space<vmem>>, vector<1x96xf32>
    %10 = vector.broadcast %9 : vector<1x96xf32> to vector<8x96xf32>
    %11 = arith.addf %8, %10 : vector<8x96xf32>
    %12 = vector.extract_strided_slice %6 {offsets = [0, 0], sizes = [8, 32], strides = [1, 1]} : vector<8x96xf32> to vector<8x32xf32>
    %13 = vector.extract_strided_slice %11 {offsets = [0, 0], sizes = [8, 32], strides = [1, 1]} : vector<8x96xf32> to vector<8x32xf32>
    %14 = arith.addf %12, %13 : vector<8x32xf32>
    %15 = arith.negf %14 : vector<8x32xf32>
    %16 = math.exp %15 : vector<8x32xf32>
    %cst_9 = arith.constant 1.000000e+00 : f32
    %17 = vector.broadcast %cst_9 : f32 to vector<8x32xf32>
    %18 = arith.addf %17, %16 : vector<8x32xf32>
    %19 = arith.divf %17, %18 : vector<8x32xf32>
    %20 = vector.extract_strided_slice %6 {offsets = [0, 32], sizes = [8, 32], strides = [1, 1]} : vector<8x96xf32> to vector<8x32xf32>
    %21 = vector.extract_strided_slice %11 {offsets = [0, 32], sizes = [8, 32], strides = [1, 1]} : vector<8x96xf32> to vector<8x32xf32>
    %22 = arith.addf %20, %21 : vector<8x32xf32>
    %23 = arith.negf %22 : vector<8x32xf32>
    %24 = math.exp %23 : vector<8x32xf32>
    %cst_10 = arith.constant 1.000000e+00 : f32
    %25 = vector.broadcast %cst_10 : f32 to vector<8x32xf32>
    %26 = arith.addf %25, %24 : vector<8x32xf32>
    %27 = arith.divf %25, %26 : vector<8x32xf32>
    %28 = vector.extract_strided_slice %6 {offsets = [0, 64], sizes = [8, 32], strides = [1, 1]} : vector<8x96xf32> to vector<8x32xf32>
    %29 = vector.extract_strided_slice %11 {offsets = [0, 64], sizes = [8, 32], strides = [1, 1]} : vector<8x96xf32> to vector<8x32xf32>
    %30 = arith.mulf %19, %29 : vector<8x32xf32>
    %31 = arith.addf %28, %30 : vector<8x32xf32>
    %32 = math.tanh %31 : vector<8x32xf32>
    %cst_11 = arith.constant 1.000000e+00 : f32
    %33 = vector.broadcast %cst_11 : f32 to vector<8x32xf32>
    %34 = arith.subf %33, %27 : vector<8x32xf32>
    %35 = arith.mulf %34, %32 : vector<8x32xf32>
    %36 = arith.mulf %27, %3 : vector<8x32xf32>
    %37 = arith.addf %35, %36 : vector<8x32xf32>
    %c0_12 = arith.constant 0 : index
    %38 = arith.index_cast %c0_i32_2 : i32 to index
    %c0_13 = arith.constant 0 : index
    %39 = vector.load %arg4[%c0_12, %38, %c0_13] : memref<8x8x32xf32, #tpu.memory_space<vmem>>, vector<8x1x32xf32>
    %40 = vector.shape_cast %39 : vector<8x1x32xf32> to vector<8x32xf32>
    %41 = vector.shape_cast %37 : vector<8x32xf32> to vector<8x1x32xf32>
    tpu.vector_store %arg4[%c0_12, %38, %c0_13], %41 {strides = array<i32>} : memref<8x8x32xf32, #tpu.memory_space<vmem>>, vector<8x1x32xf32>,
    %c1_i32 = arith.constant 1 : i32
    %c0_14 = arith.constant 0 : index
    %42 = arith.index_cast %c1_i32 : i32 to index
    %c0_15 = arith.constant 0 : index
    %43 = vector.load %arg1[%c0_14, %42, %c0_15] : memref<8x8x96xf32, #tpu.memory_space<vmem>>, vector<8x1x96xf32>
    %44 = vector.shape_cast %43 : vector<8x1x96xf32> to vector<8x96xf32>
    %c0_16 = arith.constant 0 : index
    %c0_17 = arith.constant 0 : index
    %45 = vector.load %arg2[%c0_16, %c0_17] : memref<32x96xf32, #tpu.memory_space<vmem>>, vector<32x96xf32>
    %cst_18 = arith.constant dense<0.000000e+00> : vector<8x96xf32>
    %46 = tpu.matmul %37, %45, %cst_18 {dimension_numbers = #tpu.dot_dimension_numbers<[1], [0], [0], [1], [0, 0, 1, 1], [], []>} : vector<8x32xf32>, vector<32x96xf32>, vector<8x96xf32> -> vector<8x96xf32>
    %c0_19 = arith.constant 0 : index
    %c0_20 = arith.constant 0 : index
    %47 = vector.load %arg3[%c0_19, %c0_20] : memref<1x96xf32, #tpu.memory_space<vmem>>, vector<1x96xf32>
    %48 = vector.broadcast %47 : vector<1x96xf32> to vector<8x96xf32>
    %49 = arith.addf %46, %48 : vector<8x96xf32>
    %50 = vector.extract_strided_slice %44 {offsets = [0, 0], sizes = [8, 32], strides = [1, 1]} : vector<8x96xf32> to vector<8x32xf32>
    %51 = vector.extract_strided_slice %49 {offsets = [0, 0], sizes = [8, 32], strides = [1, 1]} : vector<8x96xf32> to vector<8x32xf32>
    %52 = arith.addf %50, %51 : vector<8x32xf32>
    %53 = arith.negf %52 : vector<8x32xf32>
    %54 = math.exp %53 : vector<8x32xf32>
    %cst_21 = arith.constant 1.000000e+00 : f32
    %55 = vector.broadcast %cst_21 : f32 to vector<8x32xf32>
    %56 = arith.addf %55, %54 : vector<8x32xf32>
    %57 = arith.divf %55, %56 : vector<8x32xf32>
    %58 = vector.extract_strided_slice %44 {offsets = [0, 32], sizes = [8, 32], strides = [1, 1]} : vector<8x96xf32> to vector<8x32xf32>
    %59 = vector.extract_strided_slice %49 {offsets = [0, 32], sizes = [8, 32], strides = [1, 1]} : vector<8x96xf32> to vector<8x32xf32>
    %60 = arith.addf %58, %59 : vector<8x32xf32>
    %61 = arith.negf %60 : vector<8x32xf32>
    %62 = math.exp %61 : vector<8x32xf32>
    %cst_22 = arith.constant 1.000000e+00 : f32
    %63 = vector.broadcast %cst_22 : f32 to vector<8x32xf32>
    %64 = arith.addf %63, %62 : vector<8x32xf32>
    %65 = arith.divf %63, %64 : vector<8x32xf32>
    %66 = vector.extract_strided_slice %44 {offsets = [0, 64], sizes = [8, 32], strides = [1, 1]} : vector<8x96xf32> to vector<8x32xf32>
    %67 = vector.extract_strided_slice %49 {offsets = [0, 64], sizes = [8, 32], strides = [1, 1]} : vector<8x96xf32> to vector<8x32xf32>
    %68 = arith.mulf %57, %67 : vector<8x32xf32>
    %69 = arith.addf %66, %68 : vector<8x32xf32>
    %70 = math.tanh %69 : vector<8x32xf32>
    %cst_23 = arith.constant 1.000000e+00 : f32
    %71 = vector.broadcast %cst_23 : f32 to vector<8x32xf32>
    %72 = arith.subf %71, %65 : vector<8x32xf32>
    %73 = arith.mulf %72, %70 : vector<8x32xf32>
    %74 = arith.mulf %65, %37 : vector<8x32xf32>
    %75 = arith.addf %73, %74 : vector<8x32xf32>
    %c0_24 = arith.constant 0 : index
    %76 = arith.index_cast %c1_i32 : i32 to index
    %c0_25 = arith.constant 0 : index
    %77 = vector.load %arg4[%c0_24, %76, %c0_25] : memref<8x8x32xf32, #tpu.memory_space<vmem>>, vector<8x1x32xf32>
    %78 = vector.shape_cast %77 : vector<8x1x32xf32> to vector<8x32xf32>
    %79 = vector.shape_cast %75 : vector<8x32xf32> to vector<8x1x32xf32>
    tpu.vector_store %arg4[%c0_24, %76, %c0_25], %79 {strides = array<i32>} : memref<8x8x32xf32, #tpu.memory_space<vmem>>, vector<8x1x32xf32>,
    %c2_i32 = arith.constant 2 : i32
    %c0_26 = arith.constant 0 : index
    %80 = arith.index_cast %c2_i32 : i32 to index
    %c0_27 = arith.constant 0 : index
    %81 = vector.load %arg1[%c0_26, %80, %c0_27] : memref<8x8x96xf32, #tpu.memory_space<vmem>>, vector<8x1x96xf32>
    %82 = vector.shape_cast %81 : vector<8x1x96xf32> to vector<8x96xf32>
    %c0_28 = arith.constant 0 : index
    %c0_29 = arith.constant 0 : index
    %83 = vector.load %arg2[%c0_28, %c0_29] : memref<32x96xf32, #tpu.memory_space<vmem>>, vector<32x96xf32>
    %cst_30 = arith.constant dense<0.000000e+00> : vector<8x96xf32>
    %84 = tpu.matmul %75, %83, %cst_30 {dimension_numbers = #tpu.dot_dimension_numbers<[1], [0], [0], [1], [0, 0, 1, 1], [], []>} : vector<8x32xf32>, vector<32x96xf32>, vector<8x96xf32> -> vector<8x96xf32>
    %c0_31 = arith.constant 0 : index
    %c0_32 = arith.constant 0 : index
    %85 = vector.load %arg3[%c0_31, %c0_32] : memref<1x96xf32, #tpu.memory_space<vmem>>, vector<1x96xf32>
    %86 = vector.broadcast %85 : vector<1x96xf32> to vector<8x96xf32>
    %87 = arith.addf %84, %86 : vector<8x96xf32>
    %88 = vector.extract_strided_slice %82 {offsets = [0, 0], sizes = [8, 32], strides = [1, 1]} : vector<8x96xf32> to vector<8x32xf32>
    %89 = vector.extract_strided_slice %87 {offsets = [0, 0], sizes = [8, 32], strides = [1, 1]} : vector<8x96xf32> to vector<8x32xf32>
    %90 = arith.addf %88, %89 : vector<8x32xf32>
    %91 = arith.negf %90 : vector<8x32xf32>
    %92 = math.exp %91 : vector<8x32xf32>
    %cst_33 = arith.constant 1.000000e+00 : f32
    %93 = vector.broadcast %cst_33 : f32 to vector<8x32xf32>
    %94 = arith.addf %93, %92 : vector<8x32xf32>
    %95 = arith.divf %93, %94 : vector<8x32xf32>
    %96 = vector.extract_strided_slice %82 {offsets = [0, 32], sizes = [8, 32], strides = [1, 1]} : vector<8x96xf32> to vector<8x32xf32>
    %97 = vector.extract_strided_slice %87 {offsets = [0, 32], sizes = [8, 32], strides = [1, 1]} : vector<8x96xf32> to vector<8x32xf32>
    %98 = arith.addf %96, %97 : vector<8x32xf32>
    %99 = arith.negf %98 : vector<8x32xf32>
    %100 = math.exp %99 : vector<8x32xf32>
    %cst_34 = arith.constant 1.000000e+00 : f32
    %101 = vector.broadcast %cst_34 : f32 to vector<8x32xf32>
    %102 = arith.addf %101, %100 : vector<8x32xf32>
    %103 = arith.divf %101, %102 : vector<8x32xf32>
    %104 = vector.extract_strided_slice %82 {offsets = [0, 64], sizes = [8, 32], strides = [1, 1]} : vector<8x96xf32> to vector<8x32xf32>
    %105 = vector.extract_strided_slice %87 {offsets = [0, 64], sizes = [8, 32], strides = [1, 1]} : vector<8x96xf32> to vector<8x32xf32>
    %106 = arith.mulf %95, %105 : vector<8x32xf32>
    %107 = arith.addf %104, %106 : vector<8x32xf32>
    %108 = math.tanh %107 : vector<8x32xf32>
    %cst_35 = arith.constant 1.000000e+00 : f32
    %109 = vector.broadcast %cst_35 : f32 to vector<8x32xf32>
    %110 = arith.subf %109, %103 : vector<8x32xf32>
    %111 = arith.mulf %110, %108 : vector<8x32xf32>
    %112 = arith.mulf %103, %75 : vector<8x32xf32>
    %113 = arith.addf %111, %112 : vector<8x32xf32>
    %c0_36 = arith.constant 0 : index
    %114 = arith.index_cast %c2_i32 : i32 to index
    %c0_37 = arith.constant 0 : index
    %115 = vector.load %arg4[%c0_36, %114, %c0_37] : memref<8x8x32xf32, #tpu.memory_space<vmem>>, vector<8x1x32xf32>
    %116 = vector.shape_cast %115 : vector<8x1x32xf32> to vector<8x32xf32>
    %117 = vector.shape_cast %113 : vector<8x32xf32> to vector<8x1x32xf32>
    tpu.vector_store %arg4[%c0_36, %114, %c0_37], %117 {strides = array<i32>} : memref<8x8x32xf32, #tpu.memory_space<vmem>>, vector<8x1x32xf32>,
    %c3_i32 = arith.constant 3 : i32
    %c0_38 = arith.constant 0 : index
    %118 = arith.index_cast %c3_i32 : i32 to index
    %c0_39 = arith.constant 0 : index
    %119 = vector.load %arg1[%c0_38, %118, %c0_39] : memref<8x8x96xf32, #tpu.memory_space<vmem>>, vector<8x1x96xf32>
    %120 = vector.shape_cast %119 : vector<8x1x96xf32> to vector<8x96xf32>
    %c0_40 = arith.constant 0 : index
    %c0_41 = arith.constant 0 : index
    %121 = vector.load %arg2[%c0_40, %c0_41] : memref<32x96xf32, #tpu.memory_space<vmem>>, vector<32x96xf32>
    %cst_42 = arith.constant dense<0.000000e+00> : vector<8x96xf32>
    %122 = tpu.matmul %113, %121, %cst_42 {dimension_numbers = #tpu.dot_dimension_numbers<[1], [0], [0], [1], [0, 0, 1, 1], [], []>} : vector<8x32xf32>, vector<32x96xf32>, vector<8x96xf32> -> vector<8x96xf32>
    %c0_43 = arith.constant 0 : index
    %c0_44 = arith.constant 0 : index
    %123 = vector.load %arg3[%c0_43, %c0_44] : memref<1x96xf32, #tpu.memory_space<vmem>>, vector<1x96xf32>
    %124 = vector.broadcast %123 : vector<1x96xf32> to vector<8x96xf32>
    %125 = arith.addf %122, %124 : vector<8x96xf32>
    %126 = vector.extract_strided_slice %120 {offsets = [0, 0], sizes = [8, 32], strides = [1, 1]} : vector<8x96xf32> to vector<8x32xf32>
    %127 = vector.extract_strided_slice %125 {offsets = [0, 0], sizes = [8, 32], strides = [1, 1]} : vector<8x96xf32> to vector<8x32xf32>
    %128 = arith.addf %126, %127 : vector<8x32xf32>
    %129 = arith.negf %128 : vector<8x32xf32>
    %130 = math.exp %129 : vector<8x32xf32>
    %cst_45 = arith.constant 1.000000e+00 : f32
    %131 = vector.broadcast %cst_45 : f32 to vector<8x32xf32>
    %132 = arith.addf %131, %130 : vector<8x32xf32>
    %133 = arith.divf %131, %132 : vector<8x32xf32>
    %134 = vector.extract_strided_slice %120 {offsets = [0, 32], sizes = [8, 32], strides = [1, 1]} : vector<8x96xf32> to vector<8x32xf32>
    %135 = vector.extract_strided_slice %125 {offsets = [0, 32], sizes = [8, 32], strides = [1, 1]} : vector<8x96xf32> to vector<8x32xf32>
    %136 = arith.addf %134, %135 : vector<8x32xf32>
    %137 = arith.negf %136 : vector<8x32xf32>
    %138 = math.exp %137 : vector<8x32xf32>
    %cst_46 = arith.constant 1.000000e+00 : f32
    %139 = vector.broadcast %cst_46 : f32 to vector<8x32xf32>
    %140 = arith.addf %139, %138 : vector<8x32xf32>
    %141 = arith.divf %139, %140 : vector<8x32xf32>
    %142 = vector.extract_strided_slice %120 {offsets = [0, 64], sizes = [8, 32], strides = [1, 1]} : vector<8x96xf32> to vector<8x32xf32>
    %143 = vector.extract_strided_slice %125 {offsets = [0, 64], sizes = [8, 32], strides = [1, 1]} : vector<8x96xf32> to vector<8x32xf32>
    %144 = arith.mulf %133, %143 : vector<8x32xf32>
    %145 = arith.addf %142, %144 : vector<8x32xf32>
    %146 = math.tanh %145 : vector<8x32xf32>
    %cst_47 = arith.constant 1.000000e+00 : f32
    %147 = vector.broadcast %cst_47 : f32 to vector<8x32xf32>
    %148 = arith.subf %147, %141 : vector<8x32xf32>
    %149 = arith.mulf %148, %146 : vector<8x32xf32>
    %150 = arith.mulf %141, %113 : vector<8x32xf32>
    %151 = arith.addf %149, %150 : vector<8x32xf32>
    %c0_48 = arith.constant 0 : index
    %152 = arith.index_cast %c3_i32 : i32 to index
    %c0_49 = arith.constant 0 : index
    %153 = vector.load %arg4[%c0_48, %152, %c0_49] : memref<8x8x32xf32, #tpu.memory_space<vmem>>, vector<8x1x32xf32>
    %154 = vector.shape_cast %153 : vector<8x1x32xf32> to vector<8x32xf32>
    %155 = vector.shape_cast %151 : vector<8x32xf32> to vector<8x1x32xf32>
    tpu.vector_store %arg4[%c0_48, %152, %c0_49], %155 {strides = array<i32>} : memref<8x8x32xf32, #tpu.memory_space<vmem>>, vector<8x1x32xf32>,
    %c4_i32 = arith.constant 4 : i32
    %c0_50 = arith.constant 0 : index
    %156 = arith.index_cast %c4_i32 : i32 to index
    %c0_51 = arith.constant 0 : index
    %157 = vector.load %arg1[%c0_50, %156, %c0_51] : memref<8x8x96xf32, #tpu.memory_space<vmem>>, vector<8x1x96xf32>
    %158 = vector.shape_cast %157 : vector<8x1x96xf32> to vector<8x96xf32>
    %c0_52 = arith.constant 0 : index
    %c0_53 = arith.constant 0 : index
    %159 = vector.load %arg2[%c0_52, %c0_53] : memref<32x96xf32, #tpu.memory_space<vmem>>, vector<32x96xf32>
    %cst_54 = arith.constant dense<0.000000e+00> : vector<8x96xf32>
    %160 = tpu.matmul %151, %159, %cst_54 {dimension_numbers = #tpu.dot_dimension_numbers<[1], [0], [0], [1], [0, 0, 1, 1], [], []>} : vector<8x32xf32>, vector<32x96xf32>, vector<8x96xf32> -> vector<8x96xf32>
    %c0_55 = arith.constant 0 : index
    %c0_56 = arith.constant 0 : index
    %161 = vector.load %arg3[%c0_55, %c0_56] : memref<1x96xf32, #tpu.memory_space<vmem>>, vector<1x96xf32>
    %162 = vector.broadcast %161 : vector<1x96xf32> to vector<8x96xf32>
    %163 = arith.addf %160, %162 : vector<8x96xf32>
    %164 = vector.extract_strided_slice %158 {offsets = [0, 0], sizes = [8, 32], strides = [1, 1]} : vector<8x96xf32> to vector<8x32xf32>
    %165 = vector.extract_strided_slice %163 {offsets = [0, 0], sizes = [8, 32], strides = [1, 1]} : vector<8x96xf32> to vector<8x32xf32>
    %166 = arith.addf %164, %165 : vector<8x32xf32>
    %167 = arith.negf %166 : vector<8x32xf32>
    %168 = math.exp %167 : vector<8x32xf32>
    %cst_57 = arith.constant 1.000000e+00 : f32
    %169 = vector.broadcast %cst_57 : f32 to vector<8x32xf32>
    %170 = arith.addf %169, %168 : vector<8x32xf32>
    %171 = arith.divf %169, %170 : vector<8x32xf32>
    %172 = vector.extract_strided_slice %158 {offsets = [0, 32], sizes = [8, 32], strides = [1, 1]} : vector<8x96xf32> to vector<8x32xf32>
    %173 = vector.extract_strided_slice %163 {offsets = [0, 32], sizes = [8, 32], strides = [1, 1]} : vector<8x96xf32> to vector<8x32xf32>
    %174 = arith.addf %172, %173 : vector<8x32xf32>
    %175 = arith.negf %174 : vector<8x32xf32>
    %176 = math.exp %175 : vector<8x32xf32>
    %cst_58 = arith.constant 1.000000e+00 : f32
    %177 = vector.broadcast %cst_58 : f32 to vector<8x32xf32>
    %178 = arith.addf %177, %176 : vector<8x32xf32>
    %179 = arith.divf %177, %178 : vector<8x32xf32>
    %180 = vector.extract_strided_slice %158 {offsets = [0, 64], sizes = [8, 32], strides = [1, 1]} : vector<8x96xf32> to vector<8x32xf32>
    %181 = vector.extract_strided_slice %163 {offsets = [0, 64], sizes = [8, 32], strides = [1, 1]} : vector<8x96xf32> to vector<8x32xf32>
    %182 = arith.mulf %171, %181 : vector<8x32xf32>
    %183 = arith.addf %180, %182 : vector<8x32xf32>
    %184 = math.tanh %183 : vector<8x32xf32>
    %cst_59 = arith.constant 1.000000e+00 : f32
    %185 = vector.broadcast %cst_59 : f32 to vector<8x32xf32>
    %186 = arith.subf %185, %179 : vector<8x32xf32>
    %187 = arith.mulf %186, %184 : vector<8x32xf32>
    %188 = arith.mulf %179, %151 : vector<8x32xf32>
    %189 = arith.addf %187, %188 : vector<8x32xf32>
    %c0_60 = arith.constant 0 : index
    %190 = arith.index_cast %c4_i32 : i32 to index
    %c0_61 = arith.constant 0 : index
    %191 = vector.load %arg4[%c0_60, %190, %c0_61] : memref<8x8x32xf32, #tpu.memory_space<vmem>>, vector<8x1x32xf32>
    %192 = vector.shape_cast %191 : vector<8x1x32xf32> to vector<8x32xf32>
    %193 = vector.shape_cast %189 : vector<8x32xf32> to vector<8x1x32xf32>
    tpu.vector_store %arg4[%c0_60, %190, %c0_61], %193 {strides = array<i32>} : memref<8x8x32xf32, #tpu.memory_space<vmem>>, vector<8x1x32xf32>,
    %c5_i32 = arith.constant 5 : i32
    %c0_62 = arith.constant 0 : index
    %194 = arith.index_cast %c5_i32 : i32 to index
    %c0_63 = arith.constant 0 : index
    %195 = vector.load %arg1[%c0_62, %194, %c0_63] : memref<8x8x96xf32, #tpu.memory_space<vmem>>, vector<8x1x96xf32>
    %196 = vector.shape_cast %195 : vector<8x1x96xf32> to vector<8x96xf32>
    %c0_64 = arith.constant 0 : index
    %c0_65 = arith.constant 0 : index
    %197 = vector.load %arg2[%c0_64, %c0_65] : memref<32x96xf32, #tpu.memory_space<vmem>>, vector<32x96xf32>
    %cst_66 = arith.constant dense<0.000000e+00> : vector<8x96xf32>
    %198 = tpu.matmul %189, %197, %cst_66 {dimension_numbers = #tpu.dot_dimension_numbers<[1], [0], [0], [1], [0, 0, 1, 1], [], []>} : vector<8x32xf32>, vector<32x96xf32>, vector<8x96xf32> -> vector<8x96xf32>
    %c0_67 = arith.constant 0 : index
    %c0_68 = arith.constant 0 : index
    %199 = vector.load %arg3[%c0_67, %c0_68] : memref<1x96xf32, #tpu.memory_space<vmem>>, vector<1x96xf32>
    %200 = vector.broadcast %199 : vector<1x96xf32> to vector<8x96xf32>
    %201 = arith.addf %198, %200 : vector<8x96xf32>
    %202 = vector.extract_strided_slice %196 {offsets = [0, 0], sizes = [8, 32], strides = [1, 1]} : vector<8x96xf32> to vector<8x32xf32>
    %203 = vector.extract_strided_slice %201 {offsets = [0, 0], sizes = [8, 32], strides = [1, 1]} : vector<8x96xf32> to vector<8x32xf32>
    %204 = arith.addf %202, %203 : vector<8x32xf32>
    %205 = arith.negf %204 : vector<8x32xf32>
    %206 = math.exp %205 : vector<8x32xf32>
    %cst_69 = arith.constant 1.000000e+00 : f32
    %207 = vector.broadcast %cst_69 : f32 to vector<8x32xf32>
    %208 = arith.addf %207, %206 : vector<8x32xf32>
    %209 = arith.divf %207, %208 : vector<8x32xf32>
    %210 = vector.extract_strided_slice %196 {offsets = [0, 32], sizes = [8, 32], strides = [1, 1]} : vector<8x96xf32> to vector<8x32xf32>
    %211 = vector.extract_strided_slice %201 {offsets = [0, 32], sizes = [8, 32], strides = [1, 1]} : vector<8x96xf32> to vector<8x32xf32>
    %212 = arith.addf %210, %211 : vector<8x32xf32>
    %213 = arith.negf %212 : vector<8x32xf32>
    %214 = math.exp %213 : vector<8x32xf32>
    %cst_70 = arith.constant 1.000000e+00 : f32
    %215 = vector.broadcast %cst_70 : f32 to vector<8x32xf32>
    %216 = arith.addf %215, %214 : vector<8x32xf32>
    %217 = arith.divf %215, %216 : vector<8x32xf32>
    %218 = vector.extract_strided_slice %196 {offsets = [0, 64], sizes = [8, 32], strides = [1, 1]} : vector<8x96xf32> to vector<8x32xf32>
    %219 = vector.extract_strided_slice %201 {offsets = [0, 64], sizes = [8, 32], strides = [1, 1]} : vector<8x96xf32> to vector<8x32xf32>
    %220 = arith.mulf %209, %219 : vector<8x32xf32>
    %221 = arith.addf %218, %220 : vector<8x32xf32>
    %222 = math.tanh %221 : vector<8x32xf32>
    %cst_71 = arith.constant 1.000000e+00 : f32
    %223 = vector.broadcast %cst_71 : f32 to vector<8x32xf32>
    %224 = arith.subf %223, %217 : vector<8x32xf32>
    %225 = arith.mulf %224, %222 : vector<8x32xf32>
    %226 = arith.mulf %217, %189 : vector<8x32xf32>
    %227 = arith.addf %225, %226 : vector<8x32xf32>
    %c0_72 = arith.constant 0 : index
    %228 = arith.index_cast %c5_i32 : i32 to index
    %c0_73 = arith.constant 0 : index
    %229 = vector.load %arg4[%c0_72, %228, %c0_73] : memref<8x8x32xf32, #tpu.memory_space<vmem>>, vector<8x1x32xf32>
    %230 = vector.shape_cast %229 : vector<8x1x32xf32> to vector<8x32xf32>
    %231 = vector.shape_cast %227 : vector<8x32xf32> to vector<8x1x32xf32>
    tpu.vector_store %arg4[%c0_72, %228, %c0_73], %231 {strides = array<i32>} : memref<8x8x32xf32, #tpu.memory_space<vmem>>, vector<8x1x32xf32>,
    %c6_i32 = arith.constant 6 : i32
    %c0_74 = arith.constant 0 : index
    %232 = arith.index_cast %c6_i32 : i32 to index
    %c0_75 = arith.constant 0 : index
    %233 = vector.load %arg1[%c0_74, %232, %c0_75] : memref<8x8x96xf32, #tpu.memory_space<vmem>>, vector<8x1x96xf32>
    %234 = vector.shape_cast %233 : vector<8x1x96xf32> to vector<8x96xf32>
    %c0_76 = arith.constant 0 : index
    %c0_77 = arith.constant 0 : index
    %235 = vector.load %arg2[%c0_76, %c0_77] : memref<32x96xf32, #tpu.memory_space<vmem>>, vector<32x96xf32>
    %cst_78 = arith.constant dense<0.000000e+00> : vector<8x96xf32>
    %236 = tpu.matmul %227, %235, %cst_78 {dimension_numbers = #tpu.dot_dimension_numbers<[1], [0], [0], [1], [0, 0, 1, 1], [], []>} : vector<8x32xf32>, vector<32x96xf32>, vector<8x96xf32> -> vector<8x96xf32>
    %c0_79 = arith.constant 0 : index
    %c0_80 = arith.constant 0 : index
    %237 = vector.load %arg3[%c0_79, %c0_80] : memref<1x96xf32, #tpu.memory_space<vmem>>, vector<1x96xf32>
    %238 = vector.broadcast %237 : vector<1x96xf32> to vector<8x96xf32>
    %239 = arith.addf %236, %238 : vector<8x96xf32>
    %240 = vector.extract_strided_slice %234 {offsets = [0, 0], sizes = [8, 32], strides = [1, 1]} : vector<8x96xf32> to vector<8x32xf32>
    %241 = vector.extract_strided_slice %239 {offsets = [0, 0], sizes = [8, 32], strides = [1, 1]} : vector<8x96xf32> to vector<8x32xf32>
    %242 = arith.addf %240, %241 : vector<8x32xf32>
    %243 = arith.negf %242 : vector<8x32xf32>
    %244 = math.exp %243 : vector<8x32xf32>
    %cst_81 = arith.constant 1.000000e+00 : f32
    %245 = vector.broadcast %cst_81 : f32 to vector<8x32xf32>
    %246 = arith.addf %245, %244 : vector<8x32xf32>
    %247 = arith.divf %245, %246 : vector<8x32xf32>
    %248 = vector.extract_strided_slice %234 {offsets = [0, 32], sizes = [8, 32], strides = [1, 1]} : vector<8x96xf32> to vector<8x32xf32>
    %249 = vector.extract_strided_slice %239 {offsets = [0, 32], sizes = [8, 32], strides = [1, 1]} : vector<8x96xf32> to vector<8x32xf32>
    %250 = arith.addf %248, %249 : vector<8x32xf32>
    %251 = arith.negf %250 : vector<8x32xf32>
    %252 = math.exp %251 : vector<8x32xf32>
    %cst_82 = arith.constant 1.000000e+00 : f32
    %253 = vector.broadcast %cst_82 : f32 to vector<8x32xf32>
    %254 = arith.addf %253, %252 : vector<8x32xf32>
    %255 = arith.divf %253, %254 : vector<8x32xf32>
    %256 = vector.extract_strided_slice %234 {offsets = [0, 64], sizes = [8, 32], strides = [1, 1]} : vector<8x96xf32> to vector<8x32xf32>
    %257 = vector.extract_strided_slice %239 {offsets = [0, 64], sizes = [8, 32], strides = [1, 1]} : vector<8x96xf32> to vector<8x32xf32>
    %258 = arith.mulf %247, %257 : vector<8x32xf32>
    %259 = arith.addf %256, %258 : vector<8x32xf32>
    %260 = math.tanh %259 : vector<8x32xf32>
    %cst_83 = arith.constant 1.000000e+00 : f32
    %261 = vector.broadcast %cst_83 : f32 to vector<8x32xf32>
    %262 = arith.subf %261, %255 : vector<8x32xf32>
    %263 = arith.mulf %262, %260 : vector<8x32xf32>
    %264 = arith.mulf %255, %227 : vector<8x32xf32>
    %265 = arith.addf %263, %264 : vector<8x32xf32>
    %c0_84 = arith.constant 0 : index
    %266 = arith.index_cast %c6_i32 : i32 to index
    %c0_85 = arith.constant 0 : index
    %267 = vector.load %arg4[%c0_84, %266, %c0_85] : memref<8x8x32xf32, #tpu.memory_space<vmem>>, vector<8x1x32xf32>
    %268 = vector.shape_cast %267 : vector<8x1x32xf32> to vector<8x32xf32>
    %269 = vector.shape_cast %265 : vector<8x32xf32> to vector<8x1x32xf32>
    tpu.vector_store %arg4[%c0_84, %266, %c0_85], %269 {strides = array<i32>} : memref<8x8x32xf32, #tpu.memory_space<vmem>>, vector<8x1x32xf32>,
    %c7_i32 = arith.constant 7 : i32
    %c0_86 = arith.constant 0 : index
    %270 = arith.index_cast %c7_i32 : i32 to index
    %c0_87 = arith.constant 0 : index
    %271 = vector.load %arg1[%c0_86, %270, %c0_87] : memref<8x8x96xf32, #tpu.memory_space<vmem>>, vector<8x1x96xf32>
    %272 = vector.shape_cast %271 : vector<8x1x96xf32> to vector<8x96xf32>
    %c0_88 = arith.constant 0 : index
    %c0_89 = arith.constant 0 : index
    %273 = vector.load %arg2[%c0_88, %c0_89] : memref<32x96xf32, #tpu.memory_space<vmem>>, vector<32x96xf32>
    %cst_90 = arith.constant dense<0.000000e+00> : vector<8x96xf32>
    %274 = tpu.matmul %265, %273, %cst_90 {dimension_numbers = #tpu.dot_dimension_numbers<[1], [0], [0], [1], [0, 0, 1, 1], [], []>} : vector<8x32xf32>, vector<32x96xf32>, vector<8x96xf32> -> vector<8x96xf32>
    %c0_91 = arith.constant 0 : index
    %c0_92 = arith.constant 0 : index
    %275 = vector.load %arg3[%c0_91, %c0_92] : memref<1x96xf32, #tpu.memory_space<vmem>>, vector<1x96xf32>
    %276 = vector.broadcast %275 : vector<1x96xf32> to vector<8x96xf32>
    %277 = arith.addf %274, %276 : vector<8x96xf32>
    %278 = vector.extract_strided_slice %272 {offsets = [0, 0], sizes = [8, 32], strides = [1, 1]} : vector<8x96xf32> to vector<8x32xf32>
    %279 = vector.extract_strided_slice %277 {offsets = [0, 0], sizes = [8, 32], strides = [1, 1]} : vector<8x96xf32> to vector<8x32xf32>
    %280 = arith.addf %278, %279 : vector<8x32xf32>
    %281 = arith.negf %280 : vector<8x32xf32>
    %282 = math.exp %281 : vector<8x32xf32>
    %cst_93 = arith.constant 1.000000e+00 : f32
    %283 = vector.broadcast %cst_93 : f32 to vector<8x32xf32>
    %284 = arith.addf %283, %282 : vector<8x32xf32>
    %285 = arith.divf %283, %284 : vector<8x32xf32>
    %286 = vector.extract_strided_slice %272 {offsets = [0, 32], sizes = [8, 32], strides = [1, 1]} : vector<8x96xf32> to vector<8x32xf32>
    %287 = vector.extract_strided_slice %277 {offsets = [0, 32], sizes = [8, 32], strides = [1, 1]} : vector<8x96xf32> to vector<8x32xf32>
    %288 = arith.addf %286, %287 : vector<8x32xf32>
    %289 = arith.negf %288 : vector<8x32xf32>
    %290 = math.exp %289 : vector<8x32xf32>
    %cst_94 = arith.constant 1.000000e+00 : f32
    %291 = vector.broadcast %cst_94 : f32 to vector<8x32xf32>
    %292 = arith.addf %291, %290 : vector<8x32xf32>
    %293 = arith.divf %291, %292 : vector<8x32xf32>
    %294 = vector.extract_strided_slice %272 {offsets = [0, 64], sizes = [8, 32], strides = [1, 1]} : vector<8x96xf32> to vector<8x32xf32>
    %295 = vector.extract_strided_slice %277 {offsets = [0, 64], sizes = [8, 32], strides = [1, 1]} : vector<8x96xf32> to vector<8x32xf32>
    %296 = arith.mulf %285, %295 : vector<8x32xf32>
    %297 = arith.addf %294, %296 : vector<8x32xf32>
    %298 = math.tanh %297 : vector<8x32xf32>
    %cst_95 = arith.constant 1.000000e+00 : f32
    %299 = vector.broadcast %cst_95 : f32 to vector<8x32xf32>
    %300 = arith.subf %299, %293 : vector<8x32xf32>
    %301 = arith.mulf %300, %298 : vector<8x32xf32>
    %302 = arith.mulf %293, %265 : vector<8x32xf32>
    %303 = arith.addf %301, %302 : vector<8x32xf32>
    %c0_96 = arith.constant 0 : index
    %304 = arith.index_cast %c7_i32 : i32 to index
    %c0_97 = arith.constant 0 : index
    %305 = vector.load %arg4[%c0_96, %304, %c0_97] : memref<8x8x32xf32, #tpu.memory_space<vmem>>, vector<8x1x32xf32>
    %306 = vector.shape_cast %305 : vector<8x1x32xf32> to vector<8x32xf32>
    %307 = vector.shape_cast %303 : vector<8x32xf32> to vector<8x1x32xf32>
    tpu.vector_store %arg4[%c0_96, %304, %c0_97], %307 {strides = array<i32>} : memref<8x8x32xf32, #tpu.memory_space<vmem>>, vector<8x1x32xf32>,
    %c8_i32 = arith.constant 8 : i32
    %c0_98 = arith.constant 0 : index
    %c0_99 = arith.constant 0 : index
    %308 = vector.load %arg5[%c0_98, %c0_99] : memref<8x32xf32, #tpu.memory_space<vmem>>, vector<8x32xf32>
    tpu.vector_store %arg5[%c0_98, %c0_99], %303 {strides = array<i32>} : memref<8x32xf32, #tpu.memory_space<vmem>>, vector<8x32xf32>,
    return
  }
  func.func @transform_0(%arg0: i32) -> (i32, i32, i32) {
    %c0_i32 = arith.constant 0 : i32
    %c0_i32_0 = arith.constant 0 : i32
    %c0_i32_1 = arith.constant 0 : i32
    return %c0_i32, %arg0, %c0_i32_0 : i32, i32, i32
  }
  func.func @transform_1(%arg0: i32) -> (i32, i32) {
    %c0_i32 = arith.constant 0 : i32
    %c0_i32_0 = arith.constant 0 : i32
    %c0_i32_1 = arith.constant 0 : i32
    return %c0_i32, %c0_i32_0 : i32, i32
  }
  func.func @transform_2(%arg0: i32) -> (i32, i32) {
    %c0_i32 = arith.constant 0 : i32
    %c0_i32_0 = arith.constant 0 : i32
    %c0_i32_1 = arith.constant 0 : i32
    return %c0_i32, %c0_i32_0 : i32, i32
  }
  func.func @transform_3(%arg0: i32) -> (i32, i32, i32) {
    %c0_i32 = arith.constant 0 : i32
    %c0_i32_0 = arith.constant 0 : i32
    %c0_i32_1 = arith.constant 0 : i32
    return %c0_i32, %arg0, %c0_i32_0 : i32, i32, i32
  }
}

module attributes {stable_mosaic.version = 11 : i64} {
  func.func @matmul_bias_kernel(%arg0: i32, %arg1: memref<64x32xf32, #tpu.memory_space<vmem>>, %arg2: memref<32x96xf32, #tpu.memory_space<vmem>>, %arg3: memref<1x96xf32, #tpu.memory_space<vmem>>, %arg4: memref<64x96xf32, #tpu.memory_space<vmem>>) attributes {dimension_semantics = [#tpu.dimension_semantics<parallel>], iteration_bounds = array<i64: 1>, scalar_prefetch = 0 : i64, scratch_operands = 0 : i64, tpu.core_type = #tpu.core_type<tc>, window_params = [{transform_indices = @transform_0, window_bounds = array<i64: 64, 32>}, {pipeline_mode = #tpu.pipeline_mode<synchronous>, transform_indices = @transform_1, window_bounds = array<i64: 32, 96>}, {pipeline_mode = #tpu.pipeline_mode<synchronous>, transform_indices = @transform_2, window_bounds = array<i64: 1, 96>}, {transform_indices = @transform_3, window_bounds = array<i64: 64, 96>}]} {
    %c0 = arith.constant 0 : index
    %c0_0 = arith.constant 0 : index
    %0 = vector.load %arg1[%c0, %c0_0] : memref<64x32xf32, #tpu.memory_space<vmem>>, vector<64x32xf32>
    %c0_1 = arith.constant 0 : index
    %c0_2 = arith.constant 0 : index
    %1 = vector.load %arg2[%c0_1, %c0_2] : memref<32x96xf32, #tpu.memory_space<vmem>>, vector<32x96xf32>
    %cst = arith.constant dense<0.000000e+00> : vector<64x96xf32>
    %2 = tpu.matmul %0, %1, %cst {dimension_numbers = #tpu.dot_dimension_numbers<[1], [0], [0], [1], [0, 0, 1, 1], [], []>} : vector<64x32xf32>, vector<32x96xf32>, vector<64x96xf32> -> vector<64x96xf32>
    %c0_3 = arith.constant 0 : index
    %c0_4 = arith.constant 0 : index
    %3 = vector.load %arg3[%c0_3, %c0_4] : memref<1x96xf32, #tpu.memory_space<vmem>>, vector<1x96xf32>
    %4 = vector.broadcast %3 : vector<1x96xf32> to vector<64x96xf32>
    %5 = arith.addf %2, %4 : vector<64x96xf32>
    %c0_5 = arith.constant 0 : index
    %c0_6 = arith.constant 0 : index
    %6 = vector.load %arg4[%c0_5, %c0_6] : memref<64x96xf32, #tpu.memory_space<vmem>>, vector<64x96xf32>
    tpu.vector_store %arg4[%c0_5, %c0_6], %5 {strides = array<i32>} : memref<64x96xf32, #tpu.memory_space<vmem>>, vector<64x96xf32>,
    return
  }
  func.func @transform_0(%arg0: i32) -> (i32, i32) {
    %c0_i32 = arith.constant 0 : i32
    %c0_i32_0 = arith.constant 0 : i32
    return %arg0, %c0_i32 : i32, i32
  }
  func.func @transform_1(%arg0: i32) -> (i32, i32) {
    %c0_i32 = arith.constant 0 : i32
    %c0_i32_0 = arith.constant 0 : i32
    %c0_i32_1 = arith.constant 0 : i32
    return %c0_i32, %c0_i32_0 : i32, i32
  }
  func.func @transform_2(%arg0: i32) -> (i32, i32) {
    %c0_i32 = arith.constant 0 : i32
    %c0_i32_0 = arith.constant 0 : i32
    %c0_i32_1 = arith.constant 0 : i32
    return %c0_i32, %c0_i32_0 : i32, i32
  }
  func.func @transform_3(%arg0: i32) -> (i32, i32) {
    %c0_i32 = arith.constant 0 : i32
    %c0_i32_0 = arith.constant 0 : i32
    return %arg0, %c0_i32 : i32, i32
  }
}

module attributes {stable_mosaic.version = 11 : i64} {
  func.func @fc_master_kernel(%arg0: i32, %arg1: memref<16x32xf32, #tpu.memory_space<vmem>>, %arg2: memref<32x128xf32, #tpu.memory_space<vmem>>, %arg3: memref<1x128xf32, #tpu.memory_space<vmem>>, %arg4: memref<16x128xf32, #tpu.memory_space<vmem>>) attributes {dimension_semantics = [#tpu.dimension_semantics<parallel>], iteration_bounds = array<i64: 1>, scalar_prefetch = 0 : i64, scratch_operands = 0 : i64, tpu.core_type = #tpu.core_type<tc>, window_params = [{transform_indices = @transform_0, window_bounds = array<i64: 16, 32>}, {pipeline_mode = #tpu.pipeline_mode<synchronous>, transform_indices = @transform_1, window_bounds = array<i64: 32, 128>}, {pipeline_mode = #tpu.pipeline_mode<synchronous>, transform_indices = @transform_2, window_bounds = array<i64: 1, 128>}, {transform_indices = @transform_3, window_bounds = array<i64: 16, 128>}]} {
    %c0 = arith.constant 0 : index
    %c0_0 = arith.constant 0 : index
    %0 = vector.load %arg1[%c0, %c0_0] : memref<16x32xf32, #tpu.memory_space<vmem>>, vector<16x32xf32>
    %c0_1 = arith.constant 0 : index
    %c0_2 = arith.constant 0 : index
    %1 = vector.load %arg2[%c0_1, %c0_2] : memref<32x128xf32, #tpu.memory_space<vmem>>, vector<32x128xf32>
    %cst = arith.constant dense<0.000000e+00> : vector<16x128xf32>
    %2 = tpu.matmul %0, %1, %cst {dimension_numbers = #tpu.dot_dimension_numbers<[1], [0], [0], [1], [0, 0, 1, 1], [], []>} : vector<16x32xf32>, vector<32x128xf32>, vector<16x128xf32> -> vector<16x128xf32>
    %c0_3 = arith.constant 0 : index
    %c0_4 = arith.constant 0 : index
    %3 = vector.load %arg3[%c0_3, %c0_4] : memref<1x128xf32, #tpu.memory_space<vmem>>, vector<1x128xf32>
    %4 = vector.broadcast %3 : vector<1x128xf32> to vector<16x128xf32>
    %5 = arith.addf %2, %4 : vector<16x128xf32>
    %cst_5 = arith.constant 4.000000e-01 : f32
    %6 = vector.broadcast %cst_5 : f32 to vector<16x128xf32>
    %7 = arith.cmpf oge, %5, %6 : vector<16x128xf32>
    %cst_6 = arith.constant 1.000000e+00 : f32
    %8 = vector.broadcast %cst_6 : f32 to vector<16x128xf32>
    %9 = arith.select %7, %8, %5 : vector<16x128xi1>, vector<16x128xf32>
    %c0_7 = arith.constant 0 : index
    %c0_8 = arith.constant 0 : index
    %10 = vector.load %arg4[%c0_7, %c0_8] : memref<16x128xf32, #tpu.memory_space<vmem>>, vector<16x128xf32>
    tpu.vector_store %arg4[%c0_7, %c0_8], %9 {strides = array<i32>} : memref<16x128xf32, #tpu.memory_space<vmem>>, vector<16x128xf32>,
    return
  }
  func.func @transform_0(%arg0: i32) -> (i32, i32) {
    %c0_i32 = arith.constant 0 : i32
    %c0_i32_0 = arith.constant 0 : i32
    return %arg0, %c0_i32 : i32, i32
  }
  func.func @transform_1(%arg0: i32) -> (i32, i32) {
    %c0_i32 = arith.constant 0 : i32
    %c0_i32_0 = arith.constant 0 : i32
    %c0_i32_1 = arith.constant 0 : i32
    return %c0_i32, %c0_i32_0 : i32, i32
  }
  func.func @transform_2(%arg0: i32) -> (i32, i32) {
    %c0_i32 = arith.constant 0 : i32
    %c0_i32_0 = arith.constant 0 : i32
    %c0_i32_1 = arith.constant 0 : i32
    return %c0_i32, %c0_i32_0 : i32, i32
  }
  func.func @transform_3(%arg0: i32) -> (i32, i32) {
    %c0_i32 = arith.constant 0 : i32
    %c0_i32_0 = arith.constant 0 : i32
    return %arg0, %c0_i32 : i32, i32
  }
}

</mosaic_0001>

<llo_original>
// kernel: mul.101
$region0: #{mul.101}
  %s0 = inlined_call_operand.vmem [shape: f32[16], index: 0, kind: input, shape index: {}]
  %s1 = inlined_call_operand.vmem [shape: f32[2,8], index: 1, kind: output, shape index: {}]
  $region1: #{mul.101} parent=0
    #allocation0 [shape = 'u8[4096]{0}', space=vmem, size = 0x1000, scoped, tag = 'scoped mem for output reshape']
    #allocation1 [shape = 'u8[4096]{0}', space=vmem, size = 0x1000, scoped, tag = 'scoped mem for input reshape']
    %s3 = ssub.s32 2, 1
    %v4 = vld [vmem:[%s0] sm:%s3]
    %5 = vst [vmem:[#allocation1] sm:%s3] %v4
    %v6 = vld [vmem:[#allocation1] sm:$0x1]
    %vm7 = vcmask 64512
    %8 = vst.msk [vmem:[#allocation0] sm:$0x1] %vm7, %v6
    %v9 = vld [vmem:[#allocation1] sm:$0x1]
    %10 = vrot.lane.b32.xlu0 %v9, 120
    %v11 = vpop.permute.xlu0 %10
    %vm12 = vcmask 64512
    %s13 = scalar_lea.vmem [#allocation0], 1
    %14 = vst.msk [vmem:[%s13] sm:$0x1] %vm12, %v11
    %s16 = ssub.s32 4, 1
    %v17 = vld [vmem:[#allocation0] sm:%s16]
    %s19 = ssub.s32 4, 1
    %20 = vst [vmem:[%s1] sm:%s19] %v17

// kernel: grudina_forward.3
$region0: #{grudina_forward.3}
  #allocation0 [shape = 'u32[]', space=smem, size = 0x4, offset = 0x4, fixed_abs, tag = 'smem constant byte address 0x4 - core index']
  #allocation1 [shape = 'u32[72,128]{1,0:T(1,128)}', space=vmem, size = 0x9000, scoped, tag = 'internal scratch']
  %s0 = inlined_call_operand.vmem [shape: f32[64,32], index: 0, kind: input, shape index: {}]
  %s1 = inlined_call_operand.vmem [shape: f32[32,96], index: 1, kind: input, shape index: {}]
  %s2 = inlined_call_operand.vmem [shape: f32[1,96], index: 2, kind: input, shape index: {}]
  %s3 = inlined_call_operand.vmem [shape: f32[64,96], index: 3, kind: output, shape index: {}]
  %s4 = sld [smem:[#allocation0]]
  $region22: #{grudina_forward.3} parent=0
    _
  %s6 = ssub.s32 1, %s4
  %s7 = scalar_select 0, %s6, %s4
  // Predicated region
  $region2: #{grudina_forward.3} parent=0 // pred_check
    _
  $region3: #{grudina_forward.3} parent=0 // pred_check_branch
    %9 = sbr.rel (0) target = $region5
  $region4: #{grudina_forward.3} parent=0 // pred_region
    _
  $region5: #{grudina_forward.3} parent=0 // pred_fallthru
    _
  // Predicated region
  $region6: #{grudina_forward.3} parent=0 // pred_check
    _
  $region7: #{grudina_forward.3} parent=0 // pred_check_branch
    %11 = sbr.rel (0) target = $region9
  $region8: #{grudina_forward.3} parent=0 // pred_region
    _
  $region9: #{grudina_forward.3} parent=0 // pred_fallthru
    _
  // Predicated region
  $region10: #{grudina_forward.3} parent=0 // pred_check
    _
  $region11: #{grudina_forward.3} parent=0 // pred_check_branch
    %13 = sbr.rel (0) target = $region13
  $region12: #{grudina_forward.3} parent=0 // pred_region
    _
  $region13: #{grudina_forward.3} parent=0 // pred_fallthru
    _
  %v14 = vld [vmem:[%s0] sm:$0xff]
  %v15 = vld [vmem:[%s0 + $0x8] sm:$0xff]
  %v16 = vld [vmem:[%s0 + $0x10] sm:$0xff]
  %v17 = vld [vmem:[%s0 + $0x18] sm:$0xff]
  %v18 = vld [vmem:[%s0 + $0x20] sm:$0xff]
  %v19 = vld [vmem:[%s0 + $0x28] sm:$0xff]
  %v20 = vld [vmem:[%s0 + $0x30] sm:$0xff]
  %v21 = vld [vmem:[%s0 + $0x38] sm:$0xff]
  %v22 = vld [vmem:[%s1] sm:$0xff]
  %v23 = vld [vmem:[%s1 + $0x8] sm:$0xff]
  %v24 = vld [vmem:[%s1 + $0x10] sm:$0xff]
  %v25 = vld [vmem:[%s1 + $0x18] sm:$0xff]
  %v26 = vld [vmem:[%s2] sm:$0x1]
  %v28 = vperm.slane %v26, 0
  %vm30 = vcmask 261120
  %v32 = vsel %vm30, %v14, 0
  %v35 = vsel %vm30, %v15, 0
  %v38 = vsel %vm30, %v16, 0
  %v41 = vsel %vm30, %v17, 0
  %v44 = vsel %vm30, %v18, 0
  %v47 = vsel %vm30, %v19, 0
  %v50 = vsel %vm30, %v20, 0
  %v53 = vsel %vm30, %v21, 0
  %55 = vmatpush.msra.mxu0 0.0
  %56 = vmatpush.msra.mxu0 0.0
  %57 = vmatpush.msra.mxu0 0.0
  %58 = vmatpush.msra.mxu0 0.0
  %59 = vmatpush.msra.mxu0 0.0
  %60 = vmatpush.msra.mxu0 0.0
  %61 = vmatpush.msra.mxu0 0.0
  %62 = vmatpush.msra.mxu0 0.0
  %63 = vmatpush.msra.mxu0 0.0
  %64 = vmatpush.msra.mxu0 0.0
  %65 = vmatpush.msra.mxu0 0.0
  %66 = vmatpush.msra.mxu0 0.0
  %67 = vmatpush.msra.mxu0 %v25
  %68 = vmatpush.msra.mxu0 %v24
  %69 = vmatpush.msra.mxu0 %v23
  %70 = vmatpush.msra.mxu0 %v22
  %71 = vmatmul.f32.gmra.mxu0 %v32
  %v72 = vpop.f32.mrf.mxu0
  %v73 = vadd.f32 %v28, %v72
  %74 = vmatmul.f32.gmra.mxu0 %v35
  %v75 = vpop.f32.mrf.mxu0
  %v76 = vadd.f32 %v28, %v75
  %77 = vmatmul.f32.gmra.mxu0 %v38
  %v78 = vpop.f32.mrf.mxu0
  %v79 = vadd.f32 %v28, %v78
  %80 = vmatmul.f32.gmra.mxu0 %v41
  %v81 = vpop.f32.mrf.mxu0
  %v82 = vadd.f32 %v28, %v81
  %83 = vmatmul.f32.gmra.mxu0 %v44
  %v84 = vpop.f32.mrf.mxu0
  %v85 = vadd.f32 %v28, %v84
  %86 = vmatmul.f32.gmra.mxu0 %v47
  %v87 = vpop.f32.mrf.mxu0
  %v88 = vadd.f32 %v28, %v87
  %89 = vmatmul.f32.gmra.mxu0 %v50
  %v90 = vpop.f32.mrf.mxu0
  %v91 = vadd.f32 %v28, %v90
  %92 = vmatmul.f32.gmra.mxu0 %v53
  %v93 = vpop.f32.mrf.mxu0
  %v94 = vadd.f32 %v28, %v93
  %95 = vdwg.mxu0
  %vm96 = vcmask 785408
  %97 = vst.msk [vmem:[%s3] sm:$0xff] %vm96, %v73
  %98 = vst.msk [vmem:[%s3 + $0x8] sm:$0xff] %vm96, %v76
  %99 = vst.msk [vmem:[%s3 + $0x10] sm:$0xff] %vm96, %v79
  %100 = vst.msk [vmem:[%s3 + $0x18] sm:$0xff] %vm96, %v82
  %101 = vst.msk [vmem:[%s3 + $0x20] sm:$0xff] %vm96, %v85
  %102 = vst.msk [vmem:[%s3 + $0x28] sm:$0xff] %vm96, %v88
  %103 = vst.msk [vmem:[%s3 + $0x30] sm:$0xff] %vm96, %v91
  %104 = vst.msk [vmem:[%s3 + $0x38] sm:$0xff] %vm96, %v94
  // Predicated region
  $region14: #{grudina_forward.3} parent=0 // pred_check
    _
  $region15: #{grudina_forward.3} parent=0 // pred_check_branch
    %106 = sbr.rel (0) target = $region17
  $region16: #{grudina_forward.3} parent=0 // pred_region
    _
  $region17: #{grudina_forward.3} parent=0 // pred_fallthru
    _
  // Predicated region
  $region18: #{grudina_forward.3} parent=0 // pred_check
    _
  $region19: #{grudina_forward.3} parent=0 // pred_check_branch
    %108 = sbr.rel (0) target = $region21
  $region20: #{grudina_forward.3} parent=0 // pred_region
    _
  $region21: #{grudina_forward.3} parent=0 // pred_fallthru
    _

// kernel: grudina_forward.5
$region0: #{grudina_forward.5}
  #allocation0 [shape = 'u32[]', space=smem, size = 0x4, offset = 0x4, fixed_abs, tag = 'smem constant byte address 0x4 - core index']
  #allocation1 [shape = 'u32[72,128]{1,0:T(1,128)}', space=vmem, size = 0x9000, scoped, tag = 'internal scratch']
  %s0 = inlined_call_operand.vmem [shape: f32[16,32], index: 0, kind: input, shape index: {}]
  %s1 = inlined_call_operand.vmem [shape: f32[32,128], index: 1, kind: input, shape index: {}]
  %s2 = inlined_call_operand.vmem [shape: f32[1,128], index: 2, kind: input, shape index: {}]
  %s3 = inlined_call_operand.vmem [shape: f32[16,128], index: 3, kind: output, shape index: {}]
  %s4 = sld [smem:[#allocation0]]
  $region22: #{grudina_forward.5} parent=0
    _
  %s6 = ssub.s32 1, %s4
  %s7 = scalar_select 0, %s6, %s4
  // Predicated region
  $region2: #{grudina_forward.5} parent=0 // pred_check
    _
  $region3: #{grudina_forward.5} parent=0 // pred_check_branch
    %9 = sbr.rel (0) target = $region5
  $region4: #{grudina_forward.5} parent=0 // pred_region
    _
  $region5: #{grudina_forward.5} parent=0 // pred_fallthru
    _
  // Predicated region
  $region6: #{grudina_forward.5} parent=0 // pred_check
    _
  $region7: #{grudina_forward.5} parent=0 // pred_check_branch
    %11 = sbr.rel (0) target = $region9
  $region8: #{grudina_forward.5} parent=0 // pred_region
    _
  $region9: #{grudina_forward.5} parent=0 // pred_fallthru
    _
  // Predicated region
  $region10: #{grudina_forward.5} parent=0 // pred_check
    _
  $region11: #{grudina_forward.5} parent=0 // pred_check_branch
    %13 = sbr.rel (0) target = $region13
  $region12: #{grudina_forward.5} parent=0 // pred_region
    _
  $region13: #{grudina_forward.5} parent=0 // pred_fallthru
    _
  %v14 = vld [vmem:[%s0] sm:$0xff]
  %v15 = vld [vmem:[%s0 + $0x8] sm:$0xff]
  %v16 = vld [vmem:[%s1] sm:$0xff]
  %v17 = vld [vmem:[%s1 + $0x8] sm:$0xff]
  %v18 = vld [vmem:[%s1 + $0x10] sm:$0xff]
  %v19 = vld [vmem:[%s1 + $0x18] sm:$0xff]
  %v20 = vld [vmem:[%s2] sm:$0x1]
  %v22 = vperm.slane %v20, 0
  %vm24 = vcmask 261120
  %v26 = vsel %vm24, %v14, 0
  %v29 = vsel %vm24, %v15, 0
  %31 = vmatpush.msra.mxu0 0.0
  %32 = vmatpush.msra.mxu0 0.0
  %33 = vmatpush.msra.mxu0 0.0
  %34 = vmatpush.msra.mxu0 0.0
  %35 = vmatpush.msra.mxu0 0.0
  %36 = vmatpush.msra.mxu0 0.0
  %37 = vmatpush.msra.mxu0 0.0
  %38 = vmatpush.msra.mxu0 0.0
  %39 = vmatpush.msra.mxu0 0.0
  %40 = vmatpush.msra.mxu0 0.0
  %41 = vmatpush.msra.mxu0 0.0
  %42 = vmatpush.msra.mxu0 0.0
  %43 = vmatpush.msra.mxu0 %v19
  %44 = vmatpush.msra.mxu0 %v18
  %45 = vmatpush.msra.mxu0 %v17
  %46 = vmatpush.msra.mxu0 %v16
  %47 = vmatmul.f32.gmra.mxu0 %v26
  %v48 = vpop.f32.mrf.mxu0
  %v49 = vadd.f32 %v22, %v48
  %50 = vmatmul.f32.gmra.mxu0 %v29
  %v51 = vpop.f32.mrf.mxu0
  %v52 = vadd.f32 %v22, %v51
  %53 = vdwg.mxu0
  %vm54 = vcmp.ge.f32.partialorder %v49, 0.4
  %vm55 = vcmp.ge.f32.partialorder %v52, 0.4
  %v56 = vsel %vm54, 1.0, %v49
  %v57 = vsel %vm55, 1.0, %v52
  %58 = vst [vmem:[%s3] sm:$0xff] %v56
  %59 = vst [vmem:[%s3 + $0x8] sm:$0xff] %v57
  // Predicated region
  $region14: #{grudina_forward.5} parent=0 // pred_check
    _
  $region15: #{grudina_forward.5} parent=0 // pred_check_branch
    %61 = sbr.rel (0) target = $region17
  $region16: #{grudina_forward.5} parent=0 // pred_region
    _
  $region17: #{grudina_forward.5} parent=0 // pred_fallthru
    _
  // Predicated region
  $region18: #{grudina_forward.5} parent=0 // pred_check
    _
  $region19: #{grudina_forward.5} parent=0 // pred_check_branch
    %63 = sbr.rel (0) target = $region21
  $region20: #{grudina_forward.5} parent=0 // pred_region
    _
  $region21: #{grudina_forward.5} parent=0 // pred_fallthru
    _

// kernel: custom-call.2
$region0: #{custom-call.2}
  %s0 = inlined_call_operand.vmem [shape: f32[2,8], index: 0, kind: output, shape index: {}]

// kernel: custom-call.18
$region0: #{custom-call.18}
  %s0 = inlined_call_operand.vmem [shape: f32[8,2], index: 0, kind: output, shape index: {}]

// kernel: grudina_forward.4
$region0: #{grudina_forward.4}
  #allocation0 [shape = 'u32[]', space=smem, size = 0x4, offset = 0x4, fixed_abs, tag = 'smem constant byte address 0x4 - core index']
  #allocation1 [shape = 'u32[72,128]{1,0:T(1,128)}', space=vmem, size = 0x9000, scoped, tag = 'internal scratch']
  #allocation2 [shape = 'f32[8,32]{1,0:T(8,128)}', space=vmem, size = 0x1000, scoped, tag = 'scratch operand']
  %s0 = inlined_call_operand.vmem [shape: f32[8,8,96], index: 0, kind: input, shape index: {}]
  %s1 = inlined_call_operand.vmem [shape: f32[32,96], index: 1, kind: input, shape index: {}]
  %s2 = inlined_call_operand.vmem [shape: f32[1,96], index: 2, kind: input, shape index: {}]
  %s3 = inlined_call_operand.vmem [shape: f32[8,8,32], index: 3, kind: output, shape index: {}]
  %s4 = sld [smem:[#allocation0]]
  $region26: #{grudina_forward.4} parent=0
    _
  %s6 = ssub.s32 1, %s4
  %s7 = scalar_select 0, %s6, %s4
  // Predicated region
  $region2: #{grudina_forward.4} parent=0 // pred_check
    _
  $region3: #{grudina_forward.4} parent=0 // pred_check_branch
    %9 = sbr.rel (0) target = $region5
  $region4: #{grudina_forward.4} parent=0 // pred_region
    _
  $region5: #{grudina_forward.4} parent=0 // pred_fallthru
    _
  // Predicated region
  $region6: #{grudina_forward.4} parent=0 // pred_check
    _
  $region7: #{grudina_forward.4} parent=0 // pred_check_branch
    %11 = sbr.rel (0) target = $region9
  $region8: #{grudina_forward.4} parent=0 // pred_region
    _
  $region9: #{grudina_forward.4} parent=0 // pred_fallthru
    _
  // Predicated region
  $region10: #{grudina_forward.4} parent=0 // pred_check
    _
  $region11: #{grudina_forward.4} parent=0 // pred_check_branch
    %13 = sbr.rel (0) target = $region13
  $region12: #{grudina_forward.4} parent=0 // pred_region
    _
  $region13: #{grudina_forward.4} parent=0 // pred_fallthru
    _
  %p14 = scmp.eq.s32.totalorder 0, 0
  // Predicated region
  $region14: #{grudina_forward.4} parent=0 // pred_check
    %p15 = pneg %p14
  $region15: #{grudina_forward.4} parent=0 // pred_check_branch
    %17 = sbr.rel (%p15) target = $region17
  $region16: #{grudina_forward.4} parent=0 // pred_region
    %vm18 = vcmask 261120
    %19 = vst.msk [vmem:[#allocation2] sm:$0xff] %vm18, 0.0
  $region17: #{grudina_forward.4} parent=0 // pred_fallthru
    _
  %v20 = vld [vmem:[#allocation2] sm:$0xff]
  %v21 = vld [vmem:[%s0] sm:$0x1]
  %v22 = vld [vmem:[%s0 + $0x8] sm:$0x1]
  %v23 = vld [vmem:[%s0 + $0x10] sm:$0x1]
  %v24 = vld [vmem:[%s0 + $0x18] sm:$0x1]
  %v25 = vld [vmem:[%s0 + $0x20] sm:$0x1]
  %v26 = vld [vmem:[%s0 + $0x28] sm:$0x1]
  %v27 = vld [vmem:[%s0 + $0x30] sm:$0x1]
  %v28 = vld [vmem:[%s0 + $0x38] sm:$0x1]
  %v29 = vld [vmem:[%s1] sm:$0xff]
  %v30 = vld [vmem:[%s1 + $0x8] sm:$0xff]
  %v31 = vld [vmem:[%s1 + $0x10] sm:$0xff]
  %v32 = vld [vmem:[%s1 + $0x18] sm:$0xff]
  %v33 = vld [vmem:[%s2] sm:$0x1]
  %v35 = vperm.slane %v33, 0
  %vm37 = vcmask 261120
  %v39 = vsel %vm37, %v20, 0
  %41 = vmatpush.msra.mxu0 0.0
  %42 = vmatpush.msra.mxu0 0.0
  %43 = vmatpush.msra.mxu0 0.0
  %44 = vmatpush.msra.mxu0 0.0
  %45 = vmatpush.msra.mxu0 0.0
  %46 = vmatpush.msra.mxu0 0.0
  %47 = vmatpush.msra.mxu0 0.0
  %48 = vmatpush.msra.mxu0 0.0
  %49 = vmatpush.msra.mxu0 0.0
  %50 = vmatpush.msra.mxu0 0.0
  %51 = vmatpush.msra.mxu0 0.0
  %52 = vmatpush.msra.mxu0 0.0
  %53 = vmatpush.msra.mxu0 %v32
  %54 = vmatpush.msra.mxu0 %v31
  %55 = vmatpush.msra.mxu0 %v30
  %56 = vmatpush.msra.mxu0 %v29
  %57 = vmatmul.f32.gmra.mxu0 %v39
  %v58 = vpop.f32.mrf.mxu0
  %v59 = vadd.f32 %v35, %v58
  %60 = vdwg.mxu0
  %v62 = vrot.slane %v59, 1
  %v63 = vrot.slane %v59, 2
  %v64 = vrot.slane %v59, 3
  %v65 = vrot.slane %v59, 4
  %v66 = vrot.slane %v59, 5
  %v67 = vrot.slane %v59, 6
  %v68 = vrot.slane %v59, 7
  %v77 = vadd.f32 %v21, %v59
  %v78 = vadd.f32 %v22, %v62
  %v79 = vadd.f32 %v23, %v63
  %v80 = vadd.f32 %v24, %v64
  %v81 = vadd.f32 %v25, %v65
  %v82 = vadd.f32 %v26, %v66
  %v83 = vadd.f32 %v27, %v67
  %v84 = vadd.f32 %v28, %v68
  %v85 = vxor.u32 %v77, 2147483648
  %v86 = vxor.u32 %v78, 2147483648
  %v87 = vxor.u32 %v79, 2147483648
  %v88 = vxor.u32 %v80, 2147483648
  %v89 = vxor.u32 %v81, 2147483648
  %v90 = vxor.u32 %v82, 2147483648
  %v91 = vxor.u32 %v83, 2147483648
  %v92 = vxor.u32 %v84, 2147483648
  %v93 = vmul.f32 %v85, 1.442695
  %v94 = vpow.pop %v93
  %v95 = vmul.f32 %v86, 1.442695
  %v96 = vpow.pop %v95
  %v97 = vmul.f32 %v87, 1.442695
  %v98 = vpow.pop %v97
  %v99 = vmul.f32 %v88, 1.442695
  %v100 = vpow.pop %v99
  %v101 = vmul.f32 %v89, 1.442695
  %v102 = vpow.pop %v101
  %v103 = vmul.f32 %v90, 1.442695
  %v104 = vpow.pop %v103
  %v105 = vmul.f32 %v91, 1.442695
  %v106 = vpow.pop %v105
  %v107 = vmul.f32 %v92, 1.442695
  %v108 = vpow.pop %v107
  %v109 = vadd.f32 %v94, 1.0
  %v110 = vadd.f32 %v96, 1.0
  %v111 = vadd.f32 %v98, 1.0
  %v112 = vadd.f32 %v100, 1.0
  %v113 = vadd.f32 %v102, 1.0
  %v114 = vadd.f32 %v104, 1.0
  %v115 = vadd.f32 %v106, 1.0
  %v116 = vadd.f32 %v108, 1.0
  %v117 = vrcp.pop %v109
  %v118 = vmul.f32 %v109, %v117
  %v119 = vsub.f32 1.0, %v118
  %v120 = vmul.f32 %v117, %v119
  %v121 = vadd.f32 %v117, %v120
  %vm122 = vweird.f32 %v109
  %vm123 = vweird.f32 %v117
  %vm124 = vmor %vm122, %vm123
  %v125 = vsel %vm124, %v117, %v121
  %v126 = vand.u32 2147483647, %v109
  %vm127 = vcmp.eq.f32.partialorder %v126, 8.507059e+37
  %v128 = vand.u32 %v109, 2147483648
  %v129 = vor.u32 1.1754944e-38, %v128
  %v130 = vsel %vm127, %v129, %v125
  %v131 = vmul.f32 1.0, %v130
  %v132 = vrcp.pop %v110
  %v133 = vmul.f32 %v110, %v132
  %v134 = vsub.f32 1.0, %v133
  %v135 = vmul.f32 %v132, %v134
  %v136 = vadd.f32 %v132, %v135
  %vm137 = vweird.f32 %v110
  %vm138 = vweird.f32 %v132
  %vm139 = vmor %vm137, %vm138
  %v140 = vsel %vm139, %v132, %v136
  %v141 = vand.u32 2147483647, %v110
  %vm142 = vcmp.eq.f32.partialorder %v141, 8.507059e+37
  %v143 = vand.u32 %v110, 2147483648
  %v144 = vor.u32 1.1754944e-38, %v143
  %v145 = vsel %vm142, %v144, %v140
  %v146 = vmul.f32 1.0, %v145
  %v147 = vrcp.pop %v111
  %v148 = vmul.f32 %v111, %v147
  %v149 = vsub.f32 1.0, %v148
  %v150 = vmul.f32 %v147, %v149
  %v151 = vadd.f32 %v147, %v150
  %vm152 = vweird.f32 %v111
  %vm153 = vweird.f32 %v147
  %vm154 = vmor %vm152, %vm153
  %v155 = vsel %vm154, %v147, %v151
  %v156 = vand.u32 2147483647, %v111
  %vm157 = vcmp.eq.f32.partialorder %v156, 8.507059e+37
  %v158 = vand.u32 %v111, 2147483648
  %v159 = vor.u32 1.1754944e-38, %v158
  %v160 = vsel %vm157, %v159, %v155
  %v161 = vmul.f32 1.0, %v160
  %v162 = vrcp.pop %v112
  %v163 = vmul.f32 %v112, %v162
  %v164 = vsub.f32 1.0, %v163
  %v165 = vmul.f32 %v162, %v164
  %v166 = vadd.f32 %v162, %v165
  %vm167 = vweird.f32 %v112
  %vm168 = vweird.f32 %v162
  %vm169 = vmor %vm167, %vm168
  %v170 = vsel %vm169, %v162, %v166
  %v171 = vand.u32 2147483647, %v112
  %vm172 = vcmp.eq.f32.partialorder %v171, 8.507059e+37
  %v173 = vand.u32 %v112, 2147483648
  %v174 = vor.u32 1.1754944e-38, %v173
  %v175 = vsel %vm172, %v174, %v170
  %v176 = vmul.f32 1.0, %v175
  %v177 = vrcp.pop %v113
  %v178 = vmul.f32 %v113, %v177
  %v179 = vsub.f32 1.0, %v178
  %v180 = vmul.f32 %v177, %v179
  %v181 = vadd.f32 %v177, %v180
  %vm182 = vweird.f32 %v113
  %vm183 = vweird.f32 %v177
  %vm184 = vmor %vm182, %vm183
  %v185 = vsel %vm184, %v177, %v181
  %v186 = vand.u32 2147483647, %v113
  %vm187 = vcmp.eq.f32.partialorder %v186, 8.507059e+37
  %v188 = vand.u32 %v113, 2147483648
  %v189 = vor.u32 1.1754944e-38, %v188
  %v190 = vsel %vm187, %v189, %v185
  %v191 = vmul.f32 1.0, %v190
  %v192 = vrcp.pop %v114
  %v193 = vmul.f32 %v114, %v192
  %v194 = vsub.f32 1.0, %v193
  %v195 = vmul.f32 %v192, %v194
  %v196 = vadd.f32 %v192, %v195
  %vm197 = vweird.f32 %v114
  %vm198 = vweird.f32 %v192
  %vm199 = vmor %vm197, %vm198
  %v200 = vsel %vm199, %v192, %v196
  %v201 = vand.u32 2147483647, %v114
  %vm202 = vcmp.eq.f32.partialorder %v201, 8.507059e+37
  %v203 = vand.u32 %v114, 2147483648
  %v204 = vor.u32 1.1754944e-38, %v203
  %v205 = vsel %vm202, %v204, %v200
  %v206 = vmul.f32 1.0, %v205
  %v207 = vrcp.pop %v115
  %v208 = vmul.f32 %v115, %v207
  %v209 = vsub.f32 1.0, %v208
  %v210 = vmul.f32 %v207, %v209
  %v211 = vadd.f32 %v207, %v210
  %vm212 = vweird.f32 %v115
  %vm213 = vweird.f32 %v207
  %vm214 = vmor %vm212, %vm213
  %v215 = vsel %vm214, %v207, %v211
  %v216 = vand.u32 2147483647, %v115
  %vm217 = vcmp.eq.f32.partialorder %v216, 8.507059e+37
  %v218 = vand.u32 %v115, 2147483648
  %v219 = vor.u32 1.1754944e-38, %v218
  %v220 = vsel %vm217, %v219, %v215
  %v221 = vmul.f32 1.0, %v220
  %v222 = vrcp.pop %v116
  %v223 = vmul.f32 %v116, %v222
  %v224 = vsub.f32 1.0, %v223
  %v225 = vmul.f32 %v222, %v224
  %v226 = vadd.f32 %v222, %v225
  %vm227 = vweird.f32 %v116
  %vm228 = vweird.f32 %v222
  %vm229 = vmor %vm227, %vm228
  %v230 = vsel %vm229, %v222, %v226
  %v231 = vand.u32 2147483647, %v116
  %vm232 = vcmp.eq.f32.partialorder %v231, 8.507059e+37
  %v233 = vand.u32 %v116, 2147483648
  %v234 = vor.u32 1.1754944e-38, %v233
  %v235 = vsel %vm232, %v234, %v230
  %v236 = vmul.f32 1.0, %v235
  %237 = vrot.lane.b32.xlu0 %v59, 64
  %v238 = vpop.permute.xlu0 %237
  %239 = vrot.lane.b32.xlu0 %v62, 64
  %v240 = vpop.permute.xlu0 %239
  %241 = vrot.lane.b32.xlu0 %v63, 64
  %v242 = vpop.permute.xlu0 %241
  %243 = vrot.lane.b32.xlu0 %v64, 64
  %v244 = vpop.permute.xlu0 %243
  %245 = vrot.lane.b32.xlu0 %v65, 64
  %v246 = vpop.permute.xlu0 %245
  %247 = vrot.lane.b32.xlu0 %v66, 64
  %v248 = vpop.permute.xlu0 %247
  %249 = vrot.lane.b32.xlu0 %v67, 64
  %v250 = vpop.permute.xlu0 %249
  %251 = vrot.lane.b32.xlu0 %v68, 64
  %v252 = vpop.permute.xlu0 %251
  %v261 = vmul.f32 %v131, %v238
  %v262 = vmul.f32 %v146, %v240
  %v263 = vmul.f32 %v161, %v242
  %v264 = vmul.f32 %v176, %v244
  %v265 = vmul.f32 %v191, %v246
  %v266 = vmul.f32 %v206, %v248
  %v267 = vmul.f32 %v221, %v250
  %v268 = vmul.f32 %v236, %v252
  %277 = vrot.lane.b32.xlu0 %v261, 64
  %v278 = vpop.permute.xlu0 %277
  %279 = vrot.lane.b32.xlu0 %v262, 64
  %v280 = vpop.permute.xlu0 %279
  %281 = vrot.lane.b32.xlu0 %v263, 64
  %v282 = vpop.permute.xlu0 %281
  %283 = vrot.lane.b32.xlu0 %v264, 64
  %v284 = vpop.permute.xlu0 %283
  %285 = vrot.lane.b32.xlu0 %v265, 64
  %v286 = vpop.permute.xlu0 %285
  %287 = vrot.lane.b32.xlu0 %v266, 64
  %v288 = vpop.permute.xlu0 %287
  %289 = vrot.lane.b32.xlu0 %v267, 64
  %v290 = vpop.permute.xlu0 %289
  %291 = vrot.lane.b32.xlu0 %v268, 64
  %v292 = vpop.permute.xlu0 %291
  %v301 = vadd.f32 %v21, %v278
  %v302 = vadd.f32 %v22, %v280
  %v303 = vadd.f32 %v23, %v282
  %v304 = vadd.f32 %v24, %v284
  %v305 = vadd.f32 %v25, %v286
  %v306 = vadd.f32 %v26, %v288
  %v307 = vadd.f32 %v27, %v290
  %v308 = vadd.f32 %v28, %v292
  %v309 = vtanh.pop %v301
  %v310 = vtanh.pop %v302
  %v311 = vtanh.pop %v303
  %v312 = vtanh.pop %v304
  %v313 = vtanh.pop %v305
  %v314 = vtanh.pop %v306
  %v315 = vtanh.pop %v307
  %v316 = vtanh.pop %v308
  %v317 = vsub.f32 1.0, %v131
  %v318 = vsub.f32 1.0, %v146
  %v319 = vsub.f32 1.0, %v161
  %v320 = vsub.f32 1.0, %v176
  %v321 = vsub.f32 1.0, %v191
  %v322 = vsub.f32 1.0, %v206
  %v323 = vsub.f32 1.0, %v221
  %v324 = vsub.f32 1.0, %v236
  %333 = vrot.lane.b32.xlu0 %v309, 96
  %v334 = vpop.permute.xlu0 %333
  %335 = vrot.lane.b32.xlu0 %v310, 96
  %v336 = vpop.permute.xlu0 %335
  %337 = vrot.lane.b32.xlu0 %v311, 96
  %v338 = vpop.permute.xlu0 %337
  %339 = vrot.lane.b32.xlu0 %v312, 96
  %v340 = vpop.permute.xlu0 %339
  %341 = vrot.lane.b32.xlu0 %v313, 96
  %v342 = vpop.permute.xlu0 %341
  %343 = vrot.lane.b32.xlu0 %v314, 96
  %v344 = vpop.permute.xlu0 %343
  %345 = vrot.lane.b32.xlu0 %v315, 96
  %v346 = vpop.permute.xlu0 %345
  %347 = vrot.lane.b32.xlu0 %v316, 96
  %v348 = vpop.permute.xlu0 %347
  %v357 = vmul.f32 %v317, %v334
  %v358 = vmul.f32 %v318, %v336
  %v359 = vmul.f32 %v319, %v338
  %v360 = vmul.f32 %v320, %v340
  %v361 = vmul.f32 %v321, %v342
  %v362 = vmul.f32 %v322, %v344
  %v363 = vmul.f32 %v323, %v346
  %v364 = vmul.f32 %v324, %v348
  %v365 = vrot.slane %v20, 1
  %v366 = vrot.slane %v20, 2
  %v367 = vrot.slane %v20, 3
  %v368 = vrot.slane %v20, 4
  %v369 = vrot.slane %v20, 5
  %v370 = vrot.slane %v20, 6
  %v371 = vrot.slane %v20, 7
  %372 = vrot.lane.b32.xlu0 %v20, 32
  %v373 = vpop.permute.xlu0 %372
  %374 = vrot.lane.b32.xlu0 %v365, 32
  %v375 = vpop.permute.xlu0 %374
  %376 = vrot.lane.b32.xlu0 %v366, 32
  %v377 = vpop.permute.xlu0 %376
  %378 = vrot.lane.b32.xlu0 %v367, 32
  %v379 = vpop.permute.xlu0 %378
  %380 = vrot.lane.b32.xlu0 %v368, 32
  %v381 = vpop.permute.xlu0 %380
  %382 = vrot.lane.b32.xlu0 %v369, 32
  %v383 = vpop.permute.xlu0 %382
  %384 = vrot.lane.b32.xlu0 %v370, 32
  %v385 = vpop.permute.xlu0 %384
  %386 = vrot.lane.b32.xlu0 %v371, 32
  %v387 = vpop.permute.xlu0 %386
  %v396 = vmul.f32 %v131, %v373
  %v397 = vmul.f32 %v146, %v375
  %v398 = vmul.f32 %v161, %v377
  %v399 = vmul.f32 %v176, %v379
  %v400 = vmul.f32 %v191, %v381
  %v401 = vmul.f32 %v206, %v383
  %v402 = vmul.f32 %v221, %v385
  %v403 = vmul.f32 %v236, %v387
  %v404 = vadd.f32 %v357, %v396
  %v405 = vadd.f32 %v358, %v397
  %v406 = vadd.f32 %v359, %v398
  %v407 = vadd.f32 %v360, %v399
  %v408 = vadd.f32 %v361, %v400
  %v409 = vadd.f32 %v362, %v401
  %v410 = vadd.f32 %v363, %v402
  %v411 = vadd.f32 %v364, %v403
  %420 = vrot.lane.b32.xlu0 %v404, 96
  %v421 = vpop.permute.xlu0 %420
  %422 = vrot.lane.b32.xlu0 %v405, 96
  %v423 = vpop.permute.xlu0 %422
  %424 = vrot.lane.b32.xlu0 %v406, 96
  %v425 = vpop.permute.xlu0 %424
  %426 = vrot.lane.b32.xlu0 %v407, 96
  %v427 = vpop.permute.xlu0 %426
  %428 = vrot.lane.b32.xlu0 %v408, 96
  %v429 = vpop.permute.xlu0 %428
  %430 = vrot.lane.b32.xlu0 %v409, 96
  %v431 = vpop.permute.xlu0 %430
  %432 = vrot.lane.b32.xlu0 %v410, 96
  %v433 = vpop.permute.xlu0 %432
  %434 = vrot.lane.b32.xlu0 %v411, 96
  %v435 = vpop.permute.xlu0 %434
  %vm444 = vcmask 253952
  %445 = vst.msk [vmem:[%s3] sm:$0x1] %vm444, %v421
  %446 = vst.msk [vmem:[%s3 + $0x8] sm:$0x1] %vm444, %v423
  %447 = vst.msk [vmem:[%s3 + $0x10] sm:$0x1] %vm444, %v425
  %448 = vst.msk [vmem:[%s3 + $0x18] sm:$0x1] %vm444, %v427
  %449 = vst.msk [vmem:[%s3 + $0x20] sm:$0x1] %vm444, %v429
  %450 = vst.msk [vmem:[%s3 + $0x28] sm:$0x1] %vm444, %v431
  %451 = vst.msk [vmem:[%s3 + $0x30] sm:$0x1] %vm444, %v433
  %452 = vst.msk [vmem:[%s3 + $0x38] sm:$0x1] %vm444, %v435
  %v453 = vld [vmem:[%s0 + $0x1] sm:$0x1]
  %v454 = vld [vmem:[%s0 + $0x9] sm:$0x1]
  %v455 = vld [vmem:[%s0 + $0x11] sm:$0x1]
  %v456 = vld [vmem:[%s0 + $0x19] sm:$0x1]
  %v457 = vld [vmem:[%s0 + $0x21] sm:$0x1]
  %v458 = vld [vmem:[%s0 + $0x29] sm:$0x1]
  %v459 = vld [vmem:[%s0 + $0x31] sm:$0x1]
  %v460 = vld [vmem:[%s0 + $0x39] sm:$0x1]
  %v461 = vld [vmem:[%s1] sm:$0xff]
  %v462 = vld [vmem:[%s1 + $0x8] sm:$0xff]
  %v463 = vld [vmem:[%s1 + $0x10] sm:$0xff]
  %v464 = vld [vmem:[%s1 + $0x18] sm:$0xff]
  %v465 = vld [vmem:[%s2] sm:$0x1]
  %v467 = vperm.slane %v465, 0
  %v469 = vrot.slane %v405, 7
  %vm470 = vcmask 1041409
  %v471 = vsel %vm470, %v469, %v404
  %v472 = vrot.slane %v406, 6
  %vm473 = vcmask 1042434
  %v474 = vsel %vm473, %v472, %v471
  %v475 = vrot.slane %v407, 5
  %vm476 = vcmask 1043459
  %v477 = vsel %vm476, %v475, %v474
  %v478 = vrot.slane %v408, 4
  %vm479 = vcmask 1044484
  %v480 = vsel %vm479, %v478, %v477
  %v481 = vrot.slane %v409, 3
  %vm482 = vcmask 1045509
  %v483 = vsel %vm482, %v481, %v480
  %v484 = vrot.slane %v410, 2
  %vm485 = vcmask 1046534
  %v486 = vsel %vm485, %v484, %v483
  %v487 = vrot.slane %v411, 1
  %vm488 = vcmask 1047559
  %v489 = vsel %vm488, %v487, %v486
  %490 = vrot.lane.b32.xlu0 %v489, 96
  %v491 = vpop.permute.xlu0 %490
  %v492 = vsel %vm37, %v491, 0
  %494 = vmatpush.msra.mxu0 0.0
  %495 = vmatpush.msra.mxu0 0.0
  %496 = vmatpush.msra.mxu0 0.0
  %497 = vmatpush.msra.mxu0 0.0
  %498 = vmatpush.msra.mxu0 0.0
  %499 = vmatpush.msra.mxu0 0.0
  %500 = vmatpush.msra.mxu0 0.0
  %501 = vmatpush.msra.mxu0 0.0
  %502 = vmatpush.msra.mxu0 0.0
  %503 = vmatpush.msra.mxu0 0.0
  %504 = vmatpush.msra.mxu0 0.0
  %505 = vmatpush.msra.mxu0 0.0
  %506 = vmatpush.msra.mxu0 %v464
  %507 = vmatpush.msra.mxu0 %v463
  %508 = vmatpush.msra.mxu0 %v462
  %509 = vmatpush.msra.mxu0 %v461
  %510 = vmatmul.f32.gmra.mxu0 %v492
  %v511 = vpop.f32.mrf.mxu0
  %v512 = vadd.f32 %v467, %v511
  %513 = vdwg.mxu0
  %v515 = vrot.slane %v512, 1
  %v516 = vrot.slane %v512, 2
  %v517 = vrot.slane %v512, 3
  %v518 = vrot.slane %v512, 4
  %v519 = vrot.slane %v512, 5
  %v520 = vrot.slane %v512, 6
  %v521 = vrot.slane %v512, 7
  %v530 = vadd.f32 %v453, %v512
  %v531 = vadd.f32 %v454, %v515
  %v532 = vadd.f32 %v455, %v516
  %v533 = vadd.f32 %v456, %v517
  %v534 = vadd.f32 %v457, %v518
  %v535 = vadd.f32 %v458, %v519
  %v536 = vadd.f32 %v459, %v520
  %v537 = vadd.f32 %v460, %v521
  %v538 = vxor.u32 %v530, 2147483648
  %v539 = vxor.u32 %v531, 2147483648
  %v540 = vxor.u32 %v532, 2147483648
  %v541 = vxor.u32 %v533, 2147483648
  %v542 = vxor.u32 %v534, 2147483648
  %v543 = vxor.u32 %v535, 2147483648
  %v544 = vxor.u32 %v536, 2147483648
  %v545 = vxor.u32 %v537, 2147483648
  %v546 = vmul.f32 %v538, 1.442695
  %v547 = vpow.pop %v546
  %v548 = vmul.f32 %v539, 1.442695
  %v549 = vpow.pop %v548
  %v550 = vmul.f32 %v540, 1.442695
  %v551 = vpow.pop %v550
  %v552 = vmul.f32 %v541, 1.442695
  %v553 = vpow.pop %v552
  %v554 = vmul.f32 %v542, 1.442695
  %v555 = vpow.pop %v554
  %v556 = vmul.f32 %v543, 1.442695
  %v557 = vpow.pop %v556
  %v558 = vmul.f32 %v544, 1.442695
  %v559 = vpow.pop %v558
  %v560 = vmul.f32 %v545, 1.442695
  %v561 = vpow.pop %v560
  %v562 = vadd.f32 %v547, 1.0
  %v563 = vadd.f32 %v549, 1.0
  %v564 = vadd.f32 %v551, 1.0
  %v565 = vadd.f32 %v553, 1.0
  %v566 = vadd.f32 %v555, 1.0
  %v567 = vadd.f32 %v557, 1.0
  %v568 = vadd.f32 %v559, 1.0
  %v569 = vadd.f32 %v561, 1.0
  %v570 = vrcp.pop %v562
  %v571 = vmul.f32 %v562, %v570
  %v572 = vsub.f32 1.0, %v571
  %v573 = vmul.f32 %v570, %v572
  %v574 = vadd.f32 %v570, %v573
  %vm575 = vweird.f32 %v562
  %vm576 = vweird.f32 %v570
  %vm577 = vmor %vm575, %vm576
  %v578 = vsel %vm577, %v570, %v574
  %v579 = vand.u32 2147483647, %v562
  %vm580 = vcmp.eq.f32.partialorder %v579, 8.507059e+37
  %v581 = vand.u32 %v562, 2147483648
  %v582 = vor.u32 1.1754944e-38, %v581
  %v583 = vsel %vm580, %v582, %v578
  %v584 = vmul.f32 1.0, %v583
  %v585 = vrcp.pop %v563
  %v586 = vmul.f32 %v563, %v585
  %v587 = vsub.f32 1.0, %v586
  %v588 = vmul.f32 %v585, %v587
  %v589 = vadd.f32 %v585, %v588
  %vm590 = vweird.f32 %v563
  %vm591 = vweird.f32 %v585
  %vm592 = vmor %vm590, %vm591
  %v593 = vsel %vm592, %v585, %v589
  %v594 = vand.u32 2147483647, %v563
  %vm595 = vcmp.eq.f32.partialorder %v594, 8.507059e+37
  %v596 = vand.u32 %v563, 2147483648
  %v597 = vor.u32 1.1754944e-38, %v596
  %v598 = vsel %vm595, %v597, %v593
  %v599 = vmul.f32 1.0, %v598
  %v600 = vrcp.pop %v564
  %v601 = vmul.f32 %v564, %v600
  %v602 = vsub.f32 1.0, %v601
  %v603 = vmul.f32 %v600, %v602
  %v604 = vadd.f32 %v600, %v603
  %vm605 = vweird.f32 %v564
  %vm606 = vweird.f32 %v600
  %vm607 = vmor %vm605, %vm606
  %v608 = vsel %vm607, %v600, %v604
  %v609 = vand.u32 2147483647, %v564
  %vm610 = vcmp.eq.f32.partialorder %v609, 8.507059e+37
  %v611 = vand.u32 %v564, 2147483648
  %v612 = vor.u32 1.1754944e-38, %v611
  %v613 = vsel %vm610, %v612, %v608
  %v614 = vmul.f32 1.0, %v613
  %v615 = vrcp.pop %v565
  %v616 = vmul.f32 %v565, %v615
  %v617 = vsub.f32 1.0, %v616
  %v618 = vmul.f32 %v615, %v617
  %v619 = vadd.f32 %v615, %v618
  %vm620 = vweird.f32 %v565
  %vm621 = vweird.f32 %v615
  %vm622 = vmor %vm620, %vm621
  %v623 = vsel %vm622, %v615, %v619
  %v624 = vand.u32 2147483647, %v565
  %vm625 = vcmp.eq.f32.partialorder %v624, 8.507059e+37
  %v626 = vand.u32 %v565, 2147483648
  %v627 = vor.u32 1.1754944e-38, %v626
  %v628 = vsel %vm625, %v627, %v623
  %v629 = vmul.f32 1.0, %v628
  %v630 = vrcp.pop %v566
  %v631 = vmul.f32 %v566, %v630
  %v632 = vsub.f32 1.0, %v631
  %v633 = vmul.f32 %v630, %v632
  %v634 = vadd.f32 %v630, %v633
  %vm635 = vweird.f32 %v566
  %vm636 = vweird.f32 %v630
  %vm637 = vmor %vm635, %vm636
  %v638 = vsel %vm637, %v630, %v634
  %v639 = vand.u32 2147483647, %v566
  %vm640 = vcmp.eq.f32.partialorder %v639, 8.507059e+37
  %v641 = vand.u32 %v566, 2147483648
  %v642 = vor.u32 1.1754944e-38, %v641
  %v643 = vsel %vm640, %v642, %v638
  %v644 = vmul.f32 1.0, %v643
  %v645 = vrcp.pop %v567
  %v646 = vmul.f32 %v567, %v645
  %v647 = vsub.f32 1.0, %v646
  %v648 = vmul.f32 %v645, %v647
  %v649 = vadd.f32 %v645, %v648
  %vm650 = vweird.f32 %v567
  %vm651 = vweird.f32 %v645
  %vm652 = vmor %vm650, %vm651
  %v653 = vsel %vm652, %v645, %v649
  %v654 = vand.u32 2147483647, %v567
  %vm655 = vcmp.eq.f32.partialorder %v654, 8.507059e+37
  %v656 = vand.u32 %v567, 2147483648
  %v657 = vor.u32 1.1754944e-38, %v656
  %v658 = vsel %vm655, %v657, %v653
  %v659 = vmul.f32 1.0, %v658
  %v660 = vrcp.pop %v568
  %v661 = vmul.f32 %v568, %v660
  %v662 = vsub.f32 1.0, %v661
  %v663 = vmul.f32 %v660, %v662
  %v664 = vadd.f32 %v660, %v663
  %vm665 = vweird.f32 %v568
  %vm666 = vweird.f32 %v660
  %vm667 = vmor %vm665, %vm666
  %v668 = vsel %vm667, %v660, %v664
  %v669 = vand.u32 2147483647, %v568
  %vm670 = vcmp.eq.f32.partialorder %v669, 8.507059e+37
  %v671 = vand.u32 %v568, 2147483648
  %v672 = vor.u32 1.1754944e-38, %v671
  %v673 = vsel %vm670, %v672, %v668
  %v674 = vmul.f32 1.0, %v673
  %v675 = vrcp.pop %v569
  %v676 = vmul.f32 %v569, %v675
  %v677 = vsub.f32 1.0, %v676
  %v678 = vmul.f32 %v675, %v677
  %v679 = vadd.f32 %v675, %v678
  %vm680 = vweird.f32 %v569
  %vm681 = vweird.f32 %v675
  %vm682 = vmor %vm680, %vm681
  %v683 = vsel %vm682, %v675, %v679
  %v684 = vand.u32 2147483647, %v569
  %vm685 = vcmp.eq.f32.partialorder %v684, 8.507059e+37
  %v686 = vand.u32 %v569, 2147483648
  %v687 = vor.u32 1.1754944e-38, %v686
  %v688 = vsel %vm685, %v687, %v683
  %v689 = vmul.f32 1.0, %v688
  %690 = vrot.lane.b32.xlu0 %v512, 64
  %v691 = vpop.permute.xlu0 %690
  %692 = vrot.lane.b32.xlu0 %v515, 64
  %v693 = vpop.permute.xlu0 %692
  %694 = vrot.lane.b32.xlu0 %v516, 64
  %v695 = vpop.permute.xlu0 %694
  %696 = vrot.lane.b32.xlu0 %v517, 64
  %v697 = vpop.permute.xlu0 %696
  %698 = vrot.lane.b32.xlu0 %v518, 64
  %v699 = vpop.permute.xlu0 %698
  %700 = vrot.lane.b32.xlu0 %v519, 64
  %v701 = vpop.permute.xlu0 %700
  %702 = vrot.lane.b32.xlu0 %v520, 64
  %v703 = vpop.permute.xlu0 %702
  %704 = vrot.lane.b32.xlu0 %v521, 64
  %v705 = vpop.permute.xlu0 %704
  %v714 = vmul.f32 %v584, %v691
  %v715 = vmul.f32 %v599, %v693
  %v716 = vmul.f32 %v614, %v695
  %v717 = vmul.f32 %v629, %v697
  %v718 = vmul.f32 %v644, %v699
  %v719 = vmul.f32 %v659, %v701
  %v720 = vmul.f32 %v674, %v703
  %v721 = vmul.f32 %v689, %v705
  %730 = vrot.lane.b32.xlu0 %v714, 64
  %v731 = vpop.permute.xlu0 %730
  %732 = vrot.lane.b32.xlu0 %v715, 64
  %v733 = vpop.permute.xlu0 %732
  %734 = vrot.lane.b32.xlu0 %v716, 64
  %v735 = vpop.permute.xlu0 %734
  %736 = vrot.lane.b32.xlu0 %v717, 64
  %v737 = vpop.permute.xlu0 %736
  %738 = vrot.lane.b32.xlu0 %v718, 64
  %v739 = vpop.permute.xlu0 %738
  %740 = vrot.lane.b32.xlu0 %v719, 64
  %v741 = vpop.permute.xlu0 %740
  %742 = vrot.lane.b32.xlu0 %v720, 64
  %v743 = vpop.permute.xlu0 %742
  %744 = vrot.lane.b32.xlu0 %v721, 64
  %v745 = vpop.permute.xlu0 %744
  %v754 = vadd.f32 %v453, %v731
  %v755 = vadd.f32 %v454, %v733
  %v756 = vadd.f32 %v455, %v735
  %v757 = vadd.f32 %v456, %v737
  %v758 = vadd.f32 %v457, %v739
  %v759 = vadd.f32 %v458, %v741
  %v760 = vadd.f32 %v459, %v743
  %v761 = vadd.f32 %v460, %v745
  %v762 = vtanh.pop %v754
  %v763 = vtanh.pop %v755
  %v764 = vtanh.pop %v756
  %v765 = vtanh.pop %v757
  %v766 = vtanh.pop %v758
  %v767 = vtanh.pop %v759
  %v768 = vtanh.pop %v760
  %v769 = vtanh.pop %v761
  %v770 = vsub.f32 1.0, %v584
  %v771 = vsub.f32 1.0, %v599
  %v772 = vsub.f32 1.0, %v614
  %v773 = vsub.f32 1.0, %v629
  %v774 = vsub.f32 1.0, %v644
  %v775 = vsub.f32 1.0, %v659
  %v776 = vsub.f32 1.0, %v674
  %v777 = vsub.f32 1.0, %v689
  %786 = vrot.lane.b32.xlu0 %v762, 96
  %v787 = vpop.permute.xlu0 %786
  %788 = vrot.lane.b32.xlu0 %v763, 96
  %v789 = vpop.permute.xlu0 %788
  %790 = vrot.lane.b32.xlu0 %v764, 96
  %v791 = vpop.permute.xlu0 %790
  %792 = vrot.lane.b32.xlu0 %v765, 96
  %v793 = vpop.permute.xlu0 %792
  %794 = vrot.lane.b32.xlu0 %v766, 96
  %v795 = vpop.permute.xlu0 %794
  %796 = vrot.lane.b32.xlu0 %v767, 96
  %v797 = vpop.permute.xlu0 %796
  %798 = vrot.lane.b32.xlu0 %v768, 96
  %v799 = vpop.permute.xlu0 %798
  %800 = vrot.lane.b32.xlu0 %v769, 96
  %v801 = vpop.permute.xlu0 %800
  %v810 = vmul.f32 %v770, %v787
  %v811 = vmul.f32 %v771, %v789
  %v812 = vmul.f32 %v772, %v791
  %v813 = vmul.f32 %v773, %v793
  %v814 = vmul.f32 %v774, %v795
  %v815 = vmul.f32 %v775, %v797
  %v816 = vmul.f32 %v776, %v799
  %v817 = vmul.f32 %v777, %v801
  %v818 = vmul.f32 %v584, %v404
  %v819 = vmul.f32 %v599, %v405
  %v820 = vmul.f32 %v614, %v406
  %v821 = vmul.f32 %v629, %v407
  %v822 = vmul.f32 %v644, %v408
  %v823 = vmul.f32 %v659, %v409
  %v824 = vmul.f32 %v674, %v410
  %v825 = vmul.f32 %v689, %v411
  %v826 = vadd.f32 %v810, %v818
  %v827 = vadd.f32 %v811, %v819
  %v828 = vadd.f32 %v812, %v820
  %v829 = vadd.f32 %v813, %v821
  %v830 = vadd.f32 %v814, %v822
  %v831 = vadd.f32 %v815, %v823
  %v832 = vadd.f32 %v816, %v824
  %v833 = vadd.f32 %v817, %v825
  %842 = vrot.lane.b32.xlu0 %v826, 96
  %v843 = vpop.permute.xlu0 %842
  %844 = vrot.lane.b32.xlu0 %v827, 96
  %v845 = vpop.permute.xlu0 %844
  %846 = vrot.lane.b32.xlu0 %v828, 96
  %v847 = vpop.permute.xlu0 %846
  %848 = vrot.lane.b32.xlu0 %v829, 96
  %v849 = vpop.permute.xlu0 %848
  %850 = vrot.lane.b32.xlu0 %v830, 96
  %v851 = vpop.permute.xlu0 %850
  %852 = vrot.lane.b32.xlu0 %v831, 96
  %v853 = vpop.permute.xlu0 %852
  %854 = vrot.lane.b32.xlu0 %v832, 96
  %v855 = vpop.permute.xlu0 %854
  %856 = vrot.lane.b32.xlu0 %v833, 96
  %v857 = vpop.permute.xlu0 %856
  %866 = vst.msk [vmem:[%s3 + $0x1] sm:$0x1] %vm444, %v843
  %867 = vst.msk [vmem:[%s3 + $0x9] sm:$0x1] %vm444, %v845
  %868 = vst.msk [vmem:[%s3 + $0x11] sm:$0x1] %vm444, %v847
  %869 = vst.msk [vmem:[%s3 + $0x19] sm:$0x1] %vm444, %v849
  %870 = vst.msk [vmem:[%s3 + $0x21] sm:$0x1] %vm444, %v851
  %871 = vst.msk [vmem:[%s3 + $0x29] sm:$0x1] %vm444, %v853
  %872 = vst.msk [vmem:[%s3 + $0x31] sm:$0x1] %vm444, %v855
  %873 = vst.msk [vmem:[%s3 + $0x39] sm:$0x1] %vm444, %v857
  %v874 = vld [vmem:[%s0 + $0x2] sm:$0x1]
  %v875 = vld [vmem:[%s0 + $0xa] sm:$0x1]
  %v876 = vld [vmem:[%s0 + $0x12] sm:$0x1]
  %v877 = vld [vmem:[%s0 + $0x1a] sm:$0x1]
  %v878 = vld [vmem:[%s0 + $0x22] sm:$0x1]
  %v879 = vld [vmem:[%s0 + $0x2a] sm:$0x1]
  %v880 = vld [vmem:[%s0 + $0x32] sm:$0x1]
  %v881 = vld [vmem:[%s0 + $0x3a] sm:$0x1]
  %v882 = vld [vmem:[%s1] sm:$0xff]
  %v883 = vld [vmem:[%s1 + $0x8] sm:$0xff]
  %v884 = vld [vmem:[%s1 + $0x10] sm:$0xff]
  %v885 = vld [vmem:[%s1 + $0x18] sm:$0xff]
  %v886 = vld [vmem:[%s2] sm:$0x1]
  %v888 = vperm.slane %v886, 0
  %v890 = vrot.slane %v827, 7
  %v891 = vsel %vm470, %v890, %v826
  %v892 = vrot.slane %v828, 6
  %v893 = vsel %vm473, %v892, %v891
  %v894 = vrot.slane %v829, 5
  %v895 = vsel %vm476, %v894, %v893
  %v896 = vrot.slane %v830, 4
  %v897 = vsel %vm479, %v896, %v895
  %v898 = vrot.slane %v831, 3
  %v899 = vsel %vm482, %v898, %v897
  %v900 = vrot.slane %v832, 2
  %v901 = vsel %vm485, %v900, %v899
  %v902 = vrot.slane %v833, 1
  %v903 = vsel %vm488, %v902, %v901
  %904 = vrot.lane.b32.xlu0 %v903, 96
  %v905 = vpop.permute.xlu0 %904
  %v906 = vsel %vm37, %v905, 0
  %908 = vmatpush.msra.mxu0 0.0
  %909 = vmatpush.msra.mxu0 0.0
  %910 = vmatpush.msra.mxu0 0.0
  %911 = vmatpush.msra.mxu0 0.0
  %912 = vmatpush.msra.mxu0 0.0
  %913 = vmatpush.msra.mxu0 0.0
  %914 = vmatpush.msra.mxu0 0.0
  %915 = vmatpush.msra.mxu0 0.0
  %916 = vmatpush.msra.mxu0 0.0
  %917 = vmatpush.msra.mxu0 0.0
  %918 = vmatpush.msra.mxu0 0.0
  %919 = vmatpush.msra.mxu0 0.0
  %920 = vmatpush.msra.mxu0 %v885
  %921 = vmatpush.msra.mxu0 %v884
  %922 = vmatpush.msra.mxu0 %v883
  %923 = vmatpush.msra.mxu0 %v882
  %924 = vmatmul.f32.gmra.mxu0 %v906
  %v925 = vpop.f32.mrf.mxu0
  %v926 = vadd.f32 %v888, %v925
  %927 = vdwg.mxu0
  %v929 = vrot.slane %v926, 1
  %v930 = vrot.slane %v926, 2
  %v931 = vrot.slane %v926, 3
  %v932 = vrot.slane %v926, 4
  %v933 = vrot.slane %v926, 5
  %v934 = vrot.slane %v926, 6
  %v935 = vrot.slane %v926, 7
  %v944 = vadd.f32 %v874, %v926
  %v945 = vadd.f32 %v875, %v929
  %v946 = vadd.f32 %v876, %v930
  %v947 = vadd.f32 %v877, %v931
  %v948 = vadd.f32 %v878, %v932
  %v949 = vadd.f32 %v879, %v933
  %v950 = vadd.f32 %v880, %v934
  %v951 = vadd.f32 %v881, %v935
  %v952 = vxor.u32 %v944, 2147483648
  %v953 = vxor.u32 %v945, 2147483648
  %v954 = vxor.u32 %v946, 2147483648
  %v955 = vxor.u32 %v947, 2147483648
  %v956 = vxor.u32 %v948, 2147483648
  %v957 = vxor.u32 %v949, 2147483648
  %v958 = vxor.u32 %v950, 2147483648
  %v959 = vxor.u32 %v951, 2147483648
  %v960 = vmul.f32 %v952, 1.442695
  %v961 = vpow.pop %v960
  %v962 = vmul.f32 %v953, 1.442695
  %v963 = vpow.pop %v962
  %v964 = vmul.f32 %v954, 1.442695
  %v965 = vpow.pop %v964
  %v966 = vmul.f32 %v955, 1.442695
  %v967 = vpow.pop %v966
  %v968 = vmul.f32 %v956, 1.442695
  %v969 = vpow.pop %v968
  %v970 = vmul.f32 %v957, 1.442695
  %v971 = vpow.pop %v970
  %v972 = vmul.f32 %v958, 1.442695
  %v973 = vpow.pop %v972
  %v974 = vmul.f32 %v959, 1.442695
  %v975 = vpow.pop %v974
  %v976 = vadd.f32 %v961, 1.0
  %v977 = vadd.f32 %v963, 1.0
  %v978 = vadd.f32 %v965, 1.0
  %v979 = vadd.f32 %v967, 1.0
  %v980 = vadd.f32 %v969, 1.0
  %v981 = vadd.f32 %v971, 1.0
  %v982 = vadd.f32 %v973, 1.0
  %v983 = vadd.f32 %v975, 1.0
  %v984 = vrcp.pop %v976
  %v985 = vmul.f32 %v976, %v984
  %v986 = vsub.f32 1.0, %v985
  %v987 = vmul.f32 %v984, %v986
  %v988 = vadd.f32 %v984, %v987
  %vm989 = vweird.f32 %v976
  %vm990 = vweird.f32 %v984
  %vm991 = vmor %vm989, %vm990
  %v992 = vsel %vm991, %v984, %v988
  %v993 = vand.u32 2147483647, %v976
  %vm994 = vcmp.eq.f32.partialorder %v993, 8.507059e+37
  %v995 = vand.u32 %v976, 2147483648
  %v996 = vor.u32 1.1754944e-38, %v995
  %v997 = vsel %vm994, %v996, %v992
  %v998 = vmul.f32 1.0, %v997
  %v999 = vrcp.pop %v977
  %v1000 = vmul.f32 %v977, %v999
  %v1001 = vsub.f32 1.0, %v1000
  %v1002 = vmul.f32 %v999, %v1001
  %v1003 = vadd.f32 %v999, %v1002
  %vm1004 = vweird.f32 %v977
  %vm1005 = vweird.f32 %v999
  %vm1006 = vmor %vm1004, %vm1005
  %v1007 = vsel %vm1006, %v999, %v1003
  %v1008 = vand.u32 2147483647, %v977
  %vm1009 = vcmp.eq.f32.partialorder %v1008, 8.507059e+37
  %v1010 = vand.u32 %v977, 2147483648
  %v1011 = vor.u32 1.1754944e-38, %v1010
  %v1012 = vsel %vm1009, %v1011, %v1007
  %v1013 = vmul.f32 1.0, %v1012
  %v1014 = vrcp.pop %v978
  %v1015 = vmul.f32 %v978, %v1014
  %v1016 = vsub.f32 1.0, %v1015
  %v1017 = vmul.f32 %v1014, %v1016
  %v1018 = vadd.f32 %v1014, %v1017
  %vm1019 = vweird.f32 %v978
  %vm1020 = vweird.f32 %v1014
  %vm1021 = vmor %vm1019, %vm1020
  %v1022 = vsel %vm1021, %v1014, %v1018
  %v1023 = vand.u32 2147483647, %v978
  %vm1024 = vcmp.eq.f32.partialorder %v1023, 8.507059e+37
  %v1025 = vand.u32 %v978, 2147483648
  %v1026 = vor.u32 1.1754944e-38, %v1025
  %v1027 = vsel %vm1024, %v1026, %v1022
  %v1028 = vmul.f32 1.0, %v1027
  %v1029 = vrcp.pop %v979
  %v1030 = vmul.f32 %v979, %v1029
  %v1031 = vsub.f32 1.0, %v1030
  %v1032 = vmul.f32 %v1029, %v1031
  %v1033 = vadd.f32 %v1029, %v1032
  %vm1034 = vweird.f32 %v979
  %vm1035 = vweird.f32 %v1029
  %vm1036 = vmor %vm1034, %vm1035
  %v1037 = vsel %vm1036, %v1029, %v1033
  %v1038 = vand.u32 2147483647, %v979
  %vm1039 = vcmp.eq.f32.partialorder %v1038, 8.507059e+37
  %v1040 = vand.u32 %v979, 2147483648
  %v1041 = vor.u32 1.1754944e-38, %v1040
  %v1042 = vsel %vm1039, %v1041, %v1037
  %v1043 = vmul.f32 1.0, %v1042
  %v1044 = vrcp.pop %v980
  %v1045 = vmul.f32 %v980, %v1044
  %v1046 = vsub.f32 1.0, %v1045
  %v1047 = vmul.f32 %v1044, %v1046
  %v1048 = vadd.f32 %v1044, %v1047
  %vm1049 = vweird.f32 %v980
  %vm1050 = vweird.f32 %v1044
  %vm1051 = vmor %vm1049, %vm1050
  %v1052 = vsel %vm1051, %v1044, %v1048
  %v1053 = vand.u32 2147483647, %v980
  %vm1054 = vcmp.eq.f32.partialorder %v1053, 8.507059e+37
  %v1055 = vand.u32 %v980, 2147483648
  %v1056 = vor.u32 1.1754944e-38, %v1055
  %v1057 = vsel %vm1054, %v1056, %v1052
  %v1058 = vmul.f32 1.0, %v1057
  %v1059 = vrcp.pop %v981
  %v1060 = vmul.f32 %v981, %v1059
  %v1061 = vsub.f32 1.0, %v1060
  %v1062 = vmul.f32 %v1059, %v1061
  %v1063 = vadd.f32 %v1059, %v1062
  %vm1064 = vweird.f32 %v981
  %vm1065 = vweird.f32 %v1059
  %vm1066 = vmor %vm1064, %vm1065
  %v1067 = vsel %vm1066, %v1059, %v1063
  %v1068 = vand.u32 2147483647, %v981
  %vm1069 = vcmp.eq.f32.partialorder %v1068, 8.507059e+37
  %v1070 = vand.u32 %v981, 2147483648
  %v1071 = vor.u32 1.1754944e-38, %v1070
  %v1072 = vsel %vm1069, %v1071, %v1067
  %v1073 = vmul.f32 1.0, %v1072
  %v1074 = vrcp.pop %v982
  %v1075 = vmul.f32 %v982, %v1074
  %v1076 = vsub.f32 1.0, %v1075
  %v1077 = vmul.f32 %v1074, %v1076
  %v1078 = vadd.f32 %v1074, %v1077
  %vm1079 = vweird.f32 %v982
  %vm1080 = vweird.f32 %v1074
  %vm1081 = vmor %vm1079, %vm1080
  %v1082 = vsel %vm1081, %v1074, %v1078
  %v1083 = vand.u32 2147483647, %v982
  %vm1084 = vcmp.eq.f32.partialorder %v1083, 8.507059e+37
  %v1085 = vand.u32 %v982, 2147483648
  %v1086 = vor.u32 1.1754944e-38, %v1085
  %v1087 = vsel %vm1084, %v1086, %v1082
  %v1088 = vmul.f32 1.0, %v1087
  %v1089 = vrcp.pop %v983
  %v1090 = vmul.f32 %v983, %v1089
  %v1091 = vsub.f32 1.0, %v1090
  %v1092 = vmul.f32 %v1089, %v1091
  %v1093 = vadd.f32 %v1089, %v1092
  %vm1094 = vweird.f32 %v983
  %vm1095 = vweird.f32 %v1089
  %vm1096 = vmor %vm1094, %vm1095
  %v1097 = vsel %vm1096, %v1089, %v1093
  %v1098 = vand.u32 2147483647, %v983
  %vm1099 = vcmp.eq.f32.partialorder %v1098, 8.507059e+37
  %v1100 = vand.u32 %v983, 2147483648
  %v1101 = vor.u32 1.1754944e-38, %v1100
  %v1102 = vsel %vm1099, %v1101, %v1097
  %v1103 = vmul.f32 1.0, %v1102
  %1104 = vrot.lane.b32.xlu0 %v926, 64
  %v1105 = vpop.permute.xlu0 %1104
  %1106 = vrot.lane.b32.xlu0 %v929, 64
  %v1107 = vpop.permute.xlu0 %1106
  %1108 = vrot.lane.b32.xlu0 %v930, 64
  %v1109 = vpop.permute.xlu0 %1108
  %1110 = vrot.lane.b32.xlu0 %v931, 64
  %v1111 = vpop.permute.xlu0 %1110
  %1112 = vrot.lane.b32.xlu0 %v932, 64
  %v1113 = vpop.permute.xlu0 %1112
  %1114 = vrot.lane.b32.xlu0 %v933, 64
  %v1115 = vpop.permute.xlu0 %1114
  %1116 = vrot.lane.b32.xlu0 %v934, 64
  %v1117 = vpop.permute.xlu0 %1116
  %1118 = vrot.lane.b32.xlu0 %v935, 64
  %v1119 = vpop.permute.xlu0 %1118
  %v1128 = vmul.f32 %v998, %v1105
  %v1129 = vmul.f32 %v1013, %v1107
  %v1130 = vmul.f32 %v1028, %v1109
  %v1131 = vmul.f32 %v1043, %v1111
  %v1132 = vmul.f32 %v1058, %v1113
  %v1133 = vmul.f32 %v1073, %v1115
  %v1134 = vmul.f32 %v1088, %v1117
  %v1135 = vmul.f32 %v1103, %v1119
  %1144 = vrot.lane.b32.xlu0 %v1128, 64
  %v1145 = vpop.permute.xlu0 %1144
  %1146 = vrot.lane.b32.xlu0 %v1129, 64
  %v1147 = vpop.permute.xlu0 %1146
  %1148 = vrot.lane.b32.xlu0 %v1130, 64
  %v1149 = vpop.permute.xlu0 %1148
  %1150 = vrot.lane.b32.xlu0 %v1131, 64
  %v1151 = vpop.permute.xlu0 %1150
  %1152 = vrot.lane.b32.xlu0 %v1132, 64
  %v1153 = vpop.permute.xlu0 %1152
  %1154 = vrot.lane.b32.xlu0 %v1133, 64
  %v1155 = vpop.permute.xlu0 %1154
  %1156 = vrot.lane.b32.xlu0 %v1134, 64
  %v1157 = vpop.permute.xlu0 %1156
  %1158 = vrot.lane.b32.xlu0 %v1135, 64
  %v1159 = vpop.permute.xlu0 %1158
  %v1168 = vadd.f32 %v874, %v1145
  %v1169 = vadd.f32 %v875, %v1147
  %v1170 = vadd.f32 %v876, %v1149
  %v1171 = vadd.f32 %v877, %v1151
  %v1172 = vadd.f32 %v878, %v1153
  %v1173 = vadd.f32 %v879, %v1155
  %v1174 = vadd.f32 %v880, %v1157
  %v1175 = vadd.f32 %v881, %v1159
  %v1176 = vtanh.pop %v1168
  %v1177 = vtanh.pop %v1169
  %v1178 = vtanh.pop %v1170
  %v1179 = vtanh.pop %v1171
  %v1180 = vtanh.pop %v1172
  %v1181 = vtanh.pop %v1173
  %v1182 = vtanh.pop %v1174
  %v1183 = vtanh.pop %v1175
  %v1184 = vsub.f32 1.0, %v998
  %v1185 = vsub.f32 1.0, %v1013
  %v1186 = vsub.f32 1.0, %v1028
  %v1187 = vsub.f32 1.0, %v1043
  %v1188 = vsub.f32 1.0, %v1058
  %v1189 = vsub.f32 1.0, %v1073
  %v1190 = vsub.f32 1.0, %v1088
  %v1191 = vsub.f32 1.0, %v1103
  %1200 = vrot.lane.b32.xlu0 %v1176, 96
  %v1201 = vpop.permute.xlu0 %1200
  %1202 = vrot.lane.b32.xlu0 %v1177, 96
  %v1203 = vpop.permute.xlu0 %1202
  %1204 = vrot.lane.b32.xlu0 %v1178, 96
  %v1205 = vpop.permute.xlu0 %1204
  %1206 = vrot.lane.b32.xlu0 %v1179, 96
  %v1207 = vpop.permute.xlu0 %1206
  %1208 = vrot.lane.b32.xlu0 %v1180, 96
  %v1209 = vpop.permute.xlu0 %1208
  %1210 = vrot.lane.b32.xlu0 %v1181, 96
  %v1211 = vpop.permute.xlu0 %1210
  %1212 = vrot.lane.b32.xlu0 %v1182, 96
  %v1213 = vpop.permute.xlu0 %1212
  %1214 = vrot.lane.b32.xlu0 %v1183, 96
  %v1215 = vpop.permute.xlu0 %1214
  %v1224 = vmul.f32 %v1184, %v1201
  %v1225 = vmul.f32 %v1185, %v1203
  %v1226 = vmul.f32 %v1186, %v1205
  %v1227 = vmul.f32 %v1187, %v1207
  %v1228 = vmul.f32 %v1188, %v1209
  %v1229 = vmul.f32 %v1189, %v1211
  %v1230 = vmul.f32 %v1190, %v1213
  %v1231 = vmul.f32 %v1191, %v1215
  %v1232 = vmul.f32 %v998, %v826
  %v1233 = vmul.f32 %v1013, %v827
  %v1234 = vmul.f32 %v1028, %v828
  %v1235 = vmul.f32 %v1043, %v829
  %v1236 = vmul.f32 %v1058, %v830
  %v1237 = vmul.f32 %v1073, %v831
  %v1238 = vmul.f32 %v1088, %v832
  %v1239 = vmul.f32 %v1103, %v833
  %v1240 = vadd.f32 %v1224, %v1232
  %v1241 = vadd.f32 %v1225, %v1233
  %v1242 = vadd.f32 %v1226, %v1234
  %v1243 = vadd.f32 %v1227, %v1235
  %v1244 = vadd.f32 %v1228, %v1236
  %v1245 = vadd.f32 %v1229, %v1237
  %v1246 = vadd.f32 %v1230, %v1238
  %v1247 = vadd.f32 %v1231, %v1239
  %1256 = vrot.lane.b32.xlu0 %v1240, 96
  %v1257 = vpop.permute.xlu0 %1256
  %1258 = vrot.lane.b32.xlu0 %v1241, 96
  %v1259 = vpop.permute.xlu0 %1258
  %1260 = vrot.lane.b32.xlu0 %v1242, 96
  %v1261 = vpop.permute.xlu0 %1260
  %1262 = vrot.lane.b32.xlu0 %v1243, 96
  %v1263 = vpop.permute.xlu0 %1262
  %1264 = vrot.lane.b32.xlu0 %v1244, 96
  %v1265 = vpop.permute.xlu0 %1264
  %1266 = vrot.lane.b32.xlu0 %v1245, 96
  %v1267 = vpop.permute.xlu0 %1266
  %1268 = vrot.lane.b32.xlu0 %v1246, 96
  %v1269 = vpop.permute.xlu0 %1268
  %1270 = vrot.lane.b32.xlu0 %v1247, 96
  %v1271 = vpop.permute.xlu0 %1270
  %1280 = vst.msk [vmem:[%s3 + $0x2] sm:$0x1] %vm444, %v1257
  %1281 = vst.msk [vmem:[%s3 + $0xa] sm:$0x1] %vm444, %v1259
  %1282 = vst.msk [vmem:[%s3 + $0x12] sm:$0x1] %vm444, %v1261
  %1283 = vst.msk [vmem:[%s3 + $0x1a] sm:$0x1] %vm444, %v1263
  %1284 = vst.msk [vmem:[%s3 + $0x22] sm:$0x1] %vm444, %v1265
  %1285 = vst.msk [vmem:[%s3 + $0x2a] sm:$0x1] %vm444, %v1267
  %1286 = vst.msk [vmem:[%s3 + $0x32] sm:$0x1] %vm444, %v1269
  %1287 = vst.msk [vmem:[%s3 + $0x3a] sm:$0x1] %vm444, %v1271
  %v1288 = vld [vmem:[%s0 + $0x3] sm:$0x1]
  %v1289 = vld [vmem:[%s0 + $0xb] sm:$0x1]
  %v1290 = vld [vmem:[%s0 + $0x13] sm:$0x1]
  %v1291 = vld [vmem:[%s0 + $0x1b] sm:$0x1]
  %v1292 = vld [vmem:[%s0 + $0x23] sm:$0x1]
  %v1293 = vld [vmem:[%s0 + $0x2b] sm:$0x1]
  %v1294 = vld [vmem:[%s0 + $0x33] sm:$0x1]
  %v1295 = vld [vmem:[%s0 + $0x3b] sm:$0x1]
  %v1296 = vld [vmem:[%s1] sm:$0xff]
  %v1297 = vld [vmem:[%s1 + $0x8] sm:$0xff]
  %v1298 = vld [vmem:[%s1 + $0x10] sm:$0xff]
  %v1299 = vld [vmem:[%s1 + $0x18] sm:$0xff]
  %v1300 = vld [vmem:[%s2] sm:$0x1]
  %v1302 = vperm.slane %v1300, 0
  %v1304 = vrot.slane %v1241, 7
  %v1305 = vsel %vm470, %v1304, %v1240
  %v1306 = vrot.slane %v1242, 6
  %v1307 = vsel %vm473, %v1306, %v1305
  %v1308 = vrot.slane %v1243, 5
  %v1309 = vsel %vm476, %v1308, %v1307
  %v1310 = vrot.slane %v1244, 4
  %v1311 = vsel %vm479, %v1310, %v1309
  %v1312 = vrot.slane %v1245, 3
  %v1313 = vsel %vm482, %v1312, %v1311
  %v1314 = vrot.slane %v1246, 2
  %v1315 = vsel %vm485, %v1314, %v1313
  %v1316 = vrot.slane %v1247, 1
  %v1317 = vsel %vm488, %v1316, %v1315
  %1318 = vrot.lane.b32.xlu0 %v1317, 96
  %v1319 = vpop.permute.xlu0 %1318
  %v1320 = vsel %vm37, %v1319, 0
  %1322 = vmatpush.msra.mxu0 0.0
  %1323 = vmatpush.msra.mxu0 0.0
  %1324 = vmatpush.msra.mxu0 0.0
  %1325 = vmatpush.msra.mxu0 0.0
  %1326 = vmatpush.msra.mxu0 0.0
  %1327 = vmatpush.msra.mxu0 0.0
  %1328 = vmatpush.msra.mxu0 0.0
  %1329 = vmatpush.msra.mxu0 0.0
  %1330 = vmatpush.msra.mxu0 0.0
  %1331 = vmatpush.msra.mxu0 0.0
  %1332 = vmatpush.msra.mxu0 0.0
  %1333 = vmatpush.msra.mxu0 0.0
  %1334 = vmatpush.msra.mxu0 %v1299
  %1335 = vmatpush.msra.mxu0 %v1298
  %1336 = vmatpush.msra.mxu0 %v1297
  %1337 = vmatpush.msra.mxu0 %v1296
  %1338 = vmatmul.f32.gmra.mxu0 %v1320
  %v1339 = vpop.f32.mrf.mxu0
  %v1340 = vadd.f32 %v1302, %v1339
  %1341 = vdwg.mxu0
  %v1343 = vrot.slane %v1340, 1
  %v1344 = vrot.slane %v1340, 2
  %v1345 = vrot.slane %v1340, 3
  %v1346 = vrot.slane %v1340, 4
  %v1347 = vrot.slane %v1340, 5
  %v1348 = vrot.slane %v1340, 6
  %v1349 = vrot.slane %v1340, 7
  %v1358 = vadd.f32 %v1288, %v1340
  %v1359 = vadd.f32 %v1289, %v1343
  %v1360 = vadd.f32 %v1290, %v1344
  %v1361 = vadd.f32 %v1291, %v1345
  %v1362 = vadd.f32 %v1292, %v1346
  %v1363 = vadd.f32 %v1293, %v1347
  %v1364 = vadd.f32 %v1294, %v1348
  %v1365 = vadd.f32 %v1295, %v1349
  %v1366 = vxor.u32 %v1358, 2147483648
  %v1367 = vxor.u32 %v1359, 2147483648
  %v1368 = vxor.u32 %v1360, 2147483648
  %v1369 = vxor.u32 %v1361, 2147483648
  %v1370 = vxor.u32 %v1362, 2147483648
  %v1371 = vxor.u32 %v1363, 2147483648
  %v1372 = vxor.u32 %v1364, 2147483648
  %v1373 = vxor.u32 %v1365, 2147483648
  %v1374 = vmul.f32 %v1366, 1.442695
  %v1375 = vpow.pop %v1374
  %v1376 = vmul.f32 %v1367, 1.442695
  %v1377 = vpow.pop %v1376
  %v1378 = vmul.f32 %v1368, 1.442695
  %v1379 = vpow.pop %v1378
  %v1380 = vmul.f32 %v1369, 1.442695
  %v1381 = vpow.pop %v1380
  %v1382 = vmul.f32 %v1370, 1.442695
  %v1383 = vpow.pop %v1382
  %v1384 = vmul.f32 %v1371, 1.442695
  %v1385 = vpow.pop %v1384
  %v1386 = vmul.f32 %v1372, 1.442695
  %v1387 = vpow.pop %v1386
  %v1388 = vmul.f32 %v1373, 1.442695
  %v1389 = vpow.pop %v1388
  %v1390 = vadd.f32 %v1375, 1.0
  %v1391 = vadd.f32 %v1377, 1.0
  %v1392 = vadd.f32 %v1379, 1.0
  %v1393 = vadd.f32 %v1381, 1.0
  %v1394 = vadd.f32 %v1383, 1.0
  %v1395 = vadd.f32 %v1385, 1.0
  %v1396 = vadd.f32 %v1387, 1.0
  %v1397 = vadd.f32 %v1389, 1.0
  %v1398 = vrcp.pop %v1390
  %v1399 = vmul.f32 %v1390, %v1398
  %v1400 = vsub.f32 1.0, %v1399
  %v1401 = vmul.f32 %v1398, %v1400
  %v1402 = vadd.f32 %v1398, %v1401
  %vm1403 = vweird.f32 %v1390
  %vm1404 = vweird.f32 %v1398
  %vm1405 = vmor %vm1403, %vm1404
  %v1406 = vsel %vm1405, %v1398, %v1402
  %v1407 = vand.u32 2147483647, %v1390
  %vm1408 = vcmp.eq.f32.partialorder %v1407, 8.507059e+37
  %v1409 = vand.u32 %v1390, 2147483648
  %v1410 = vor.u32 1.1754944e-38, %v1409
  %v1411 = vsel %vm1408, %v1410, %v1406
  %v1412 = vmul.f32 1.0, %v1411
  %v1413 = vrcp.pop %v1391
  %v1414 = vmul.f32 %v1391, %v1413
  %v1415 = vsub.f32 1.0, %v1414
  %v1416 = vmul.f32 %v1413, %v1415
  %v1417 = vadd.f32 %v1413, %v1416
  %vm1418 = vweird.f32 %v1391
  %vm1419 = vweird.f32 %v1413
  %vm1420 = vmor %vm1418, %vm1419
  %v1421 = vsel %vm1420, %v1413, %v1417
  %v1422 = vand.u32 2147483647, %v1391
  %vm1423 = vcmp.eq.f32.partialorder %v1422, 8.507059e+37
  %v1424 = vand.u32 %v1391, 2147483648
  %v1425 = vor.u32 1.1754944e-38, %v1424
  %v1426 = vsel %vm1423, %v1425, %v1421
  %v1427 = vmul.f32 1.0, %v1426
  %v1428 = vrcp.pop %v1392
  %v1429 = vmul.f32 %v1392, %v1428
  %v1430 = vsub.f32 1.0, %v1429
  %v1431 = vmul.f32 %v1428, %v1430
  %v1432 = vadd.f32 %v1428, %v1431
  %vm1433 = vweird.f32 %v1392
  %vm1434 = vweird.f32 %v1428
  %vm1435 = vmor %vm1433, %vm1434
  %v1436 = vsel %vm1435, %v1428, %v1432
  %v1437 = vand.u32 2147483647, %v1392
  %vm1438 = vcmp.eq.f32.partialorder %v1437, 8.507059e+37
  %v1439 = vand.u32 %v1392, 2147483648
  %v1440 = vor.u32 1.1754944e-38, %v1439
  %v1441 = vsel %vm1438, %v1440, %v1436
  %v1442 = vmul.f32 1.0, %v1441
  %v1443 = vrcp.pop %v1393
  %v1444 = vmul.f32 %v1393, %v1443
  %v1445 = vsub.f32 1.0, %v1444
  %v1446 = vmul.f32 %v1443, %v1445
  %v1447 = vadd.f32 %v1443, %v1446
  %vm1448 = vweird.f32 %v1393
  %vm1449 = vweird.f32 %v1443
  %vm1450 = vmor %vm1448, %vm1449
  %v1451 = vsel %vm1450, %v1443, %v1447
  %v1452 = vand.u32 2147483647, %v1393
  %vm1453 = vcmp.eq.f32.partialorder %v1452, 8.507059e+37
  %v1454 = vand.u32 %v1393, 2147483648
  %v1455 = vor.u32 1.1754944e-38, %v1454
  %v1456 = vsel %vm1453, %v1455, %v1451
  %v1457 = vmul.f32 1.0, %v1456
  %v1458 = vrcp.pop %v1394
  %v1459 = vmul.f32 %v1394, %v1458
  %v1460 = vsub.f32 1.0, %v1459
  %v1461 = vmul.f32 %v1458, %v1460
  %v1462 = vadd.f32 %v1458, %v1461
  %vm1463 = vweird.f32 %v1394
  %vm1464 = vweird.f32 %v1458
  %vm1465 = vmor %vm1463, %vm1464
  %v1466 = vsel %vm1465, %v1458, %v1462
  %v1467 = vand.u32 2147483647, %v1394
  %vm1468 = vcmp.eq.f32.partialorder %v1467, 8.507059e+37
  %v1469 = vand.u32 %v1394, 2147483648
  %v1470 = vor.u32 1.1754944e-38, %v1469
  %v1471 = vsel %vm1468, %v1470, %v1466
  %v1472 = vmul.f32 1.0, %v1471
  %v1473 = vrcp.pop %v1395
  %v1474 = vmul.f32 %v1395, %v1473
  %v1475 = vsub.f32 1.0, %v1474
  %v1476 = vmul.f32 %v1473, %v1475
  %v1477 = vadd.f32 %v1473, %v1476
  %vm1478 = vweird.f32 %v1395
  %vm1479 = vweird.f32 %v1473
  %vm1480 = vmor %vm1478, %vm1479
  %v1481 = vsel %vm1480, %v1473, %v1477
  %v1482 = vand.u32 2147483647, %v1395
  %vm1483 = vcmp.eq.f32.partialorder %v1482, 8.507059e+37
  %v1484 = vand.u32 %v1395, 2147483648
  %v1485 = vor.u32 1.1754944e-38, %v1484
  %v1486 = vsel %vm1483, %v1485, %v1481
  %v1487 = vmul.f32 1.0, %v1486
  %v1488 = vrcp.pop %v1396
  %v1489 = vmul.f32 %v1396, %v1488
  %v1490 = vsub.f32 1.0, %v1489
  %v1491 = vmul.f32 %v1488, %v1490
  %v1492 = vadd.f32 %v1488, %v1491
  %vm1493 = vweird.f32 %v1396
  %vm1494 = vweird.f32 %v1488
  %vm1495 = vmor %vm1493, %vm1494
  %v1496 = vsel %vm1495, %v1488, %v1492
  %v1497 = vand.u32 2147483647, %v1396
  %vm1498 = vcmp.eq.f32.partialorder %v1497, 8.507059e+37
  %v1499 = vand.u32 %v1396, 2147483648
  %v1500 = vor.u32 1.1754944e-38, %v1499
  %v1501 = vsel %vm1498, %v1500, %v1496
  %v1502 = vmul.f32 1.0, %v1501
  %v1503 = vrcp.pop %v1397
  %v1504 = vmul.f32 %v1397, %v1503
  %v1505 = vsub.f32 1.0, %v1504
  %v1506 = vmul.f32 %v1503, %v1505
  %v1507 = vadd.f32 %v1503, %v1506
  %vm1508 = vweird.f32 %v1397
  %vm1509 = vweird.f32 %v1503
  %vm1510 = vmor %vm1508, %vm1509
  %v1511 = vsel %vm1510, %v1503, %v1507
  %v1512 = vand.u32 2147483647, %v1397
  %vm1513 = vcmp.eq.f32.partialorder %v1512, 8.507059e+37
  %v1514 = vand.u32 %v1397, 2147483648
  %v1515 = vor.u32 1.1754944e-38, %v1514
  %v1516 = vsel %vm1513, %v1515, %v1511
  %v1517 = vmul.f32 1.0, %v1516
  %1518 = vrot.lane.b32.xlu0 %v1340, 64
  %v1519 = vpop.permute.xlu0 %1518
  %1520 = vrot.lane.b32.xlu0 %v1343, 64
  %v1521 = vpop.permute.xlu0 %1520
  %1522 = vrot.lane.b32.xlu0 %v1344, 64
  %v1523 = vpop.permute.xlu0 %1522
  %1524 = vrot.lane.b32.xlu0 %v1345, 64
  %v1525 = vpop.permute.xlu0 %1524
  %1526 = vrot.lane.b32.xlu0 %v1346, 64
  %v1527 = vpop.permute.xlu0 %1526
  %1528 = vrot.lane.b32.xlu0 %v1347, 64
  %v1529 = vpop.permute.xlu0 %1528
  %1530 = vrot.lane.b32.xlu0 %v1348, 64
  %v1531 = vpop.permute.xlu0 %1530
  %1532 = vrot.lane.b32.xlu0 %v1349, 64
  %v1533 = vpop.permute.xlu0 %1532
  %v1542 = vmul.f32 %v1412, %v1519
  %v1543 = vmul.f32 %v1427, %v1521
  %v1544 = vmul.f32 %v1442, %v1523
  %v1545 = vmul.f32 %v1457, %v1525
  %v1546 = vmul.f32 %v1472, %v1527
  %v1547 = vmul.f32 %v1487, %v1529
  %v1548 = vmul.f32 %v1502, %v1531
  %v1549 = vmul.f32 %v1517, %v1533
  %1558 = vrot.lane.b32.xlu0 %v1542, 64
  %v1559 = vpop.permute.xlu0 %1558
  %1560 = vrot.lane.b32.xlu0 %v1543, 64
  %v1561 = vpop.permute.xlu0 %1560
  %1562 = vrot.lane.b32.xlu0 %v1544, 64
  %v1563 = vpop.permute.xlu0 %1562
  %1564 = vrot.lane.b32.xlu0 %v1545, 64
  %v1565 = vpop.permute.xlu0 %1564
  %1566 = vrot.lane.b32.xlu0 %v1546, 64
  %v1567 = vpop.permute.xlu0 %1566
  %1568 = vrot.lane.b32.xlu0 %v1547, 64
  %v1569 = vpop.permute.xlu0 %1568
  %1570 = vrot.lane.b32.xlu0 %v1548, 64
  %v1571 = vpop.permute.xlu0 %1570
  %1572 = vrot.lane.b32.xlu0 %v1549, 64
  %v1573 = vpop.permute.xlu0 %1572
  %v1582 = vadd.f32 %v1288, %v1559
  %v1583 = vadd.f32 %v1289, %v1561
  %v1584 = vadd.f32 %v1290, %v1563
  %v1585 = vadd.f32 %v1291, %v1565
  %v1586 = vadd.f32 %v1292, %v1567
  %v1587 = vadd.f32 %v1293, %v1569
  %v1588 = vadd.f32 %v1294, %v1571
  %v1589 = vadd.f32 %v1295, %v1573
  %v1590 = vtanh.pop %v1582
  %v1591 = vtanh.pop %v1583
  %v1592 = vtanh.pop %v1584
  %v1593 = vtanh.pop %v1585
  %v1594 = vtanh.pop %v1586
  %v1595 = vtanh.pop %v1587
  %v1596 = vtanh.pop %v1588
  %v1597 = vtanh.pop %v1589
  %v1598 = vsub.f32 1.0, %v1412
  %v1599 = vsub.f32 1.0, %v1427
  %v1600 = vsub.f32 1.0, %v1442
  %v1601 = vsub.f32 1.0, %v1457
  %v1602 = vsub.f32 1.0, %v1472
  %v1603 = vsub.f32 1.0, %v1487
  %v1604 = vsub.f32 1.0, %v1502
  %v1605 = vsub.f32 1.0, %v1517
  %1614 = vrot.lane.b32.xlu0 %v1590, 96
  %v1615 = vpop.permute.xlu0 %1614
  %1616 = vrot.lane.b32.xlu0 %v1591, 96
  %v1617 = vpop.permute.xlu0 %1616
  %1618 = vrot.lane.b32.xlu0 %v1592, 96
  %v1619 = vpop.permute.xlu0 %1618
  %1620 = vrot.lane.b32.xlu0 %v1593, 96
  %v1621 = vpop.permute.xlu0 %1620
  %1622 = vrot.lane.b32.xlu0 %v1594, 96
  %v1623 = vpop.permute.xlu0 %1622
  %1624 = vrot.lane.b32.xlu0 %v1595, 96
  %v1625 = vpop.permute.xlu0 %1624
  %1626 = vrot.lane.b32.xlu0 %v1596, 96
  %v1627 = vpop.permute.xlu0 %1626
  %1628 = vrot.lane.b32.xlu0 %v1597, 96
  %v1629 = vpop.permute.xlu0 %1628
  %v1638 = vmul.f32 %v1598, %v1615
  %v1639 = vmul.f32 %v1599, %v1617
  %v1640 = vmul.f32 %v1600, %v1619
  %v1641 = vmul.f32 %v1601, %v1621
  %v1642 = vmul.f32 %v1602, %v1623
  %v1643 = vmul.f32 %v1603, %v1625
  %v1644 = vmul.f32 %v1604, %v1627
  %v1645 = vmul.f32 %v1605, %v1629
  %v1646 = vmul.f32 %v1412, %v1240
  %v1647 = vmul.f32 %v1427, %v1241
  %v1648 = vmul.f32 %v1442, %v1242
  %v1649 = vmul.f32 %v1457, %v1243
  %v1650 = vmul.f32 %v1472, %v1244
  %v1651 = vmul.f32 %v1487, %v1245
  %v1652 = vmul.f32 %v1502, %v1246
  %v1653 = vmul.f32 %v1517, %v1247
  %v1654 = vadd.f32 %v1638, %v1646
  %v1655 = vadd.f32 %v1639, %v1647
  %v1656 = vadd.f32 %v1640, %v1648
  %v1657 = vadd.f32 %v1641, %v1649
  %v1658 = vadd.f32 %v1642, %v1650
  %v1659 = vadd.f32 %v1643, %v1651
  %v1660 = vadd.f32 %v1644, %v1652
  %v1661 = vadd.f32 %v1645, %v1653
  %1670 = vrot.lane.b32.xlu0 %v1654, 96
  %v1671 = vpop.permute.xlu0 %1670
  %1672 = vrot.lane.b32.xlu0 %v1655, 96
  %v1673 = vpop.permute.xlu0 %1672
  %1674 = vrot.lane.b32.xlu0 %v1656, 96
  %v1675 = vpop.permute.xlu0 %1674
  %1676 = vrot.lane.b32.xlu0 %v1657, 96
  %v1677 = vpop.permute.xlu0 %1676
  %1678 = vrot.lane.b32.xlu0 %v1658, 96
  %v1679 = vpop.permute.xlu0 %1678
  %1680 = vrot.lane.b32.xlu0 %v1659, 96
  %v1681 = vpop.permute.xlu0 %1680
  %1682 = vrot.lane.b32.xlu0 %v1660, 96
  %v1683 = vpop.permute.xlu0 %1682
  %1684 = vrot.lane.b32.xlu0 %v1661, 96
  %v1685 = vpop.permute.xlu0 %1684
  %1694 = vst.msk [vmem:[%s3 + $0x3] sm:$0x1] %vm444, %v1671
  %1695 = vst.msk [vmem:[%s3 + $0xb] sm:$0x1] %vm444, %v1673
  %1696 = vst.msk [vmem:[%s3 + $0x13] sm:$0x1] %vm444, %v1675
  %1697 = vst.msk [vmem:[%s3 + $0x1b] sm:$0x1] %vm444, %v1677
  %1698 = vst.msk [vmem:[%s3 + $0x23] sm:$0x1] %vm444, %v1679
  %1699 = vst.msk [vmem:[%s3 + $0x2b] sm:$0x1] %vm444, %v1681
  %1700 = vst.msk [vmem:[%s3 + $0x33] sm:$0x1] %vm444, %v1683
  %1701 = vst.msk [vmem:[%s3 + $0x3b] sm:$0x1] %vm444, %v1685
  %v1702 = vld [vmem:[%s0 + $0x4] sm:$0x1]
  %v1703 = vld [vmem:[%s0 + $0xc] sm:$0x1]
  %v1704 = vld [vmem:[%s0 + $0x14] sm:$0x1]
  %v1705 = vld [vmem:[%s0 + $0x1c] sm:$0x1]
  %v1706 = vld [vmem:[%s0 + $0x24] sm:$0x1]
  %v1707 = vld [vmem:[%s0 + $0x2c] sm:$0x1]
  %v1708 = vld [vmem:[%s0 + $0x34] sm:$0x1]
  %v1709 = vld [vmem:[%s0 + $0x3c] sm:$0x1]
  %v1710 = vld [vmem:[%s1] sm:$0xff]
  %v1711 = vld [vmem:[%s1 + $0x8] sm:$0xff]
  %v1712 = vld [vmem:[%s1 + $0x10] sm:$0xff]
  %v1713 = vld [vmem:[%s1 + $0x18] sm:$0xff]
  %v1714 = vld [vmem:[%s2] sm:$0x1]
  %v1716 = vperm.slane %v1714, 0
  %v1718 = vrot.slane %v1655, 7
  %v1719 = vsel %vm470, %v1718, %v1654
  %v1720 = vrot.slane %v1656, 6
  %v1721 = vsel %vm473, %v1720, %v1719
  %v1722 = vrot.slane %v1657, 5
  %v1723 = vsel %vm476, %v1722, %v1721
  %v1724 = vrot.slane %v1658, 4
  %v1725 = vsel %vm479, %v1724, %v1723
  %v1726 = vrot.slane %v1659, 3
  %v1727 = vsel %vm482, %v1726, %v1725
  %v1728 = vrot.slane %v1660, 2
  %v1729 = vsel %vm485, %v1728, %v1727
  %v1730 = vrot.slane %v1661, 1
  %v1731 = vsel %vm488, %v1730, %v1729
  %1732 = vrot.lane.b32.xlu0 %v1731, 96
  %v1733 = vpop.permute.xlu0 %1732
  %v1734 = vsel %vm37, %v1733, 0
  %1736 = vmatpush.msra.mxu0 0.0
  %1737 = vmatpush.msra.mxu0 0.0
  %1738 = vmatpush.msra.mxu0 0.0
  %1739 = vmatpush.msra.mxu0 0.0
  %1740 = vmatpush.msra.mxu0 0.0
  %1741 = vmatpush.msra.mxu0 0.0
  %1742 = vmatpush.msra.mxu0 0.0
  %1743 = vmatpush.msra.mxu0 0.0
  %1744 = vmatpush.msra.mxu0 0.0
  %1745 = vmatpush.msra.mxu0 0.0
  %1746 = vmatpush.msra.mxu0 0.0
  %1747 = vmatpush.msra.mxu0 0.0
  %1748 = vmatpush.msra.mxu0 %v1713
  %1749 = vmatpush.msra.mxu0 %v1712
  %1750 = vmatpush.msra.mxu0 %v1711
  %1751 = vmatpush.msra.mxu0 %v1710
  %1752 = vmatmul.f32.gmra.mxu0 %v1734
  %v1753 = vpop.f32.mrf.mxu0
  %v1754 = vadd.f32 %v1716, %v1753
  %1755 = vdwg.mxu0
  %v1757 = vrot.slane %v1754, 1
  %v1758 = vrot.slane %v1754, 2
  %v1759 = vrot.slane %v1754, 3
  %v1760 = vrot.slane %v1754, 4
  %v1761 = vrot.slane %v1754, 5
  %v1762 = vrot.slane %v1754, 6
  %v1763 = vrot.slane %v1754, 7
  %v1772 = vadd.f32 %v1702, %v1754
  %v1773 = vadd.f32 %v1703, %v1757
  %v1774 = vadd.f32 %v1704, %v1758
  %v1775 = vadd.f32 %v1705, %v1759
  %v1776 = vadd.f32 %v1706, %v1760
  %v1777 = vadd.f32 %v1707, %v1761
  %v1778 = vadd.f32 %v1708, %v1762
  %v1779 = vadd.f32 %v1709, %v1763
  %v1780 = vxor.u32 %v1772, 2147483648
  %v1781 = vxor.u32 %v1773, 2147483648
  %v1782 = vxor.u32 %v1774, 2147483648
  %v1783 = vxor.u32 %v1775, 2147483648
  %v1784 = vxor.u32 %v1776, 2147483648
  %v1785 = vxor.u32 %v1777, 2147483648
  %v1786 = vxor.u32 %v1778, 2147483648
  %v1787 = vxor.u32 %v1779, 2147483648
  %v1788 = vmul.f32 %v1780, 1.442695
  %v1789 = vpow.pop %v1788
  %v1790 = vmul.f32 %v1781, 1.442695
  %v1791 = vpow.pop %v1790
  %v1792 = vmul.f32 %v1782, 1.442695
  %v1793 = vpow.pop %v1792
  %v1794 = vmul.f32 %v1783, 1.442695
  %v1795 = vpow.pop %v1794
  %v1796 = vmul.f32 %v1784, 1.442695
  %v1797 = vpow.pop %v1796
  %v1798 = vmul.f32 %v1785, 1.442695
  %v1799 = vpow.pop %v1798
  %v1800 = vmul.f32 %v1786, 1.442695
  %v1801 = vpow.pop %v1800
  %v1802 = vmul.f32 %v1787, 1.442695
  %v1803 = vpow.pop %v1802
  %v1804 = vadd.f32 %v1789, 1.0
  %v1805 = vadd.f32 %v1791, 1.0
  %v1806 = vadd.f32 %v1793, 1.0
  %v1807 = vadd.f32 %v1795, 1.0
  %v1808 = vadd.f32 %v1797, 1.0
  %v1809 = vadd.f32 %v1799, 1.0
  %v1810 = vadd.f32 %v1801, 1.0
  %v1811 = vadd.f32 %v1803, 1.0
  %v1812 = vrcp.pop %v1804
  %v1813 = vmul.f32 %v1804, %v1812
  %v1814 = vsub.f32 1.0, %v1813
  %v1815 = vmul.f32 %v1812, %v1814
  %v1816 = vadd.f32 %v1812, %v1815
  %vm1817 = vweird.f32 %v1804
  %vm1818 = vweird.f32 %v1812
  %vm1819 = vmor %vm1817, %vm1818
  %v1820 = vsel %vm1819, %v1812, %v1816
  %v1821 = vand.u32 2147483647, %v1804
  %vm1822 = vcmp.eq.f32.partialorder %v1821, 8.507059e+37
  %v1823 = vand.u32 %v1804, 2147483648
  %v1824 = vor.u32 1.1754944e-38, %v1823
  %v1825 = vsel %vm1822, %v1824, %v1820
  %v1826 = vmul.f32 1.0, %v1825
  %v1827 = vrcp.pop %v1805
  %v1828 = vmul.f32 %v1805, %v1827
  %v1829 = vsub.f32 1.0, %v1828
  %v1830 = vmul.f32 %v1827, %v1829
  %v1831 = vadd.f32 %v1827, %v1830
  %vm1832 = vweird.f32 %v1805
  %vm1833 = vweird.f32 %v1827
  %vm1834 = vmor %vm1832, %vm1833
  %v1835 = vsel %vm1834, %v1827, %v1831
  %v1836 = vand.u32 2147483647, %v1805
  %vm1837 = vcmp.eq.f32.partialorder %v1836, 8.507059e+37
  %v1838 = vand.u32 %v1805, 2147483648
  %v1839 = vor.u32 1.1754944e-38, %v1838
  %v1840 = vsel %vm1837, %v1839, %v1835
  %v1841 = vmul.f32 1.0, %v1840
  %v1842 = vrcp.pop %v1806
  %v1843 = vmul.f32 %v1806, %v1842
  %v1844 = vsub.f32 1.0, %v1843
  %v1845 = vmul.f32 %v1842, %v1844
  %v1846 = vadd.f32 %v1842, %v1845
  %vm1847 = vweird.f32 %v1806
  %vm1848 = vweird.f32 %v1842
  %vm1849 = vmor %vm1847, %vm1848
  %v1850 = vsel %vm1849, %v1842, %v1846
  %v1851 = vand.u32 2147483647, %v1806
  %vm1852 = vcmp.eq.f32.partialorder %v1851, 8.507059e+37
  %v1853 = vand.u32 %v1806, 2147483648
  %v1854 = vor.u32 1.1754944e-38, %v1853
  %v1855 = vsel %vm1852, %v1854, %v1850
  %v1856 = vmul.f32 1.0, %v1855
  %v1857 = vrcp.pop %v1807
  %v1858 = vmul.f32 %v1807, %v1857
  %v1859 = vsub.f32 1.0, %v1858
  %v1860 = vmul.f32 %v1857, %v1859
  %v1861 = vadd.f32 %v1857, %v1860
  %vm1862 = vweird.f32 %v1807
  %vm1863 = vweird.f32 %v1857
  %vm1864 = vmor %vm1862, %vm1863
  %v1865 = vsel %vm1864, %v1857, %v1861
  %v1866 = vand.u32 2147483647, %v1807
  %vm1867 = vcmp.eq.f32.partialorder %v1866, 8.507059e+37
  %v1868 = vand.u32 %v1807, 2147483648
  %v1869 = vor.u32 1.1754944e-38, %v1868
  %v1870 = vsel %vm1867, %v1869, %v1865
  %v1871 = vmul.f32 1.0, %v1870
  %v1872 = vrcp.pop %v1808
  %v1873 = vmul.f32 %v1808, %v1872
  %v1874 = vsub.f32 1.0, %v1873
  %v1875 = vmul.f32 %v1872, %v1874
  %v1876 = vadd.f32 %v1872, %v1875
  %vm1877 = vweird.f32 %v1808
  %vm1878 = vweird.f32 %v1872
  %vm1879 = vmor %vm1877, %vm1878
  %v1880 = vsel %vm1879, %v1872, %v1876
  %v1881 = vand.u32 2147483647, %v1808
  %vm1882 = vcmp.eq.f32.partialorder %v1881, 8.507059e+37
  %v1883 = vand.u32 %v1808, 2147483648
  %v1884 = vor.u32 1.1754944e-38, %v1883
  %v1885 = vsel %vm1882, %v1884, %v1880
  %v1886 = vmul.f32 1.0, %v1885
  %v1887 = vrcp.pop %v1809
  %v1888 = vmul.f32 %v1809, %v1887
  %v1889 = vsub.f32 1.0, %v1888
  %v1890 = vmul.f32 %v1887, %v1889
  %v1891 = vadd.f32 %v1887, %v1890
  %vm1892 = vweird.f32 %v1809
  %vm1893 = vweird.f32 %v1887
  %vm1894 = vmor %vm1892, %vm1893
  %v1895 = vsel %vm1894, %v1887, %v1891
  %v1896 = vand.u32 2147483647, %v1809
  %vm1897 = vcmp.eq.f32.partialorder %v1896, 8.507059e+37
  %v1898 = vand.u32 %v1809, 2147483648
  %v1899 = vor.u32 1.1754944e-38, %v1898
  %v1900 = vsel %vm1897, %v1899, %v1895
  %v1901 = vmul.f32 1.0, %v1900
  %v1902 = vrcp.pop %v1810
  %v1903 = vmul.f32 %v1810, %v1902
  %v1904 = vsub.f32 1.0, %v1903
  %v1905 = vmul.f32 %v1902, %v1904
  %v1906 = vadd.f32 %v1902, %v1905
  %vm1907 = vweird.f32 %v1810
  %vm1908 = vweird.f32 %v1902
  %vm1909 = vmor %vm1907, %vm1908
  %v1910 = vsel %vm1909, %v1902, %v1906
  %v1911 = vand.u32 2147483647, %v1810
  %vm1912 = vcmp.eq.f32.partialorder %v1911, 8.507059e+37
  %v1913 = vand.u32 %v1810, 2147483648
  %v1914 = vor.u32 1.1754944e-38, %v1913
  %v1915 = vsel %vm1912, %v1914, %v1910
  %v1916 = vmul.f32 1.0, %v1915
  %v1917 = vrcp.pop %v1811
  %v1918 = vmul.f32 %v1811, %v1917
  %v1919 = vsub.f32 1.0, %v1918
  %v1920 = vmul.f32 %v1917, %v1919
  %v1921 = vadd.f32 %v1917, %v1920
  %vm1922 = vweird.f32 %v1811
  %vm1923 = vweird.f32 %v1917
  %vm1924 = vmor %vm1922, %vm1923
  %v1925 = vsel %vm1924, %v1917, %v1921
  %v1926 = vand.u32 2147483647, %v1811
  %vm1927 = vcmp.eq.f32.partialorder %v1926, 8.507059e+37
  %v1928 = vand.u32 %v1811, 2147483648
  %v1929 = vor.u32 1.1754944e-38, %v1928
  %v1930 = vsel %vm1927, %v1929, %v1925
  %v1931 = vmul.f32 1.0, %v1930
  %1932 = vrot.lane.b32.xlu0 %v1754, 64
  %v1933 = vpop.permute.xlu0 %1932
  %1934 = vrot.lane.b32.xlu0 %v1757, 64
  %v1935 = vpop.permute.xlu0 %1934
  %1936 = vrot.lane.b32.xlu0 %v1758, 64
  %v1937 = vpop.permute.xlu0 %1936
  %1938 = vrot.lane.b32.xlu0 %v1759, 64
  %v1939 = vpop.permute.xlu0 %1938
  %1940 = vrot.lane.b32.xlu0 %v1760, 64
  %v1941 = vpop.permute.xlu0 %1940
  %1942 = vrot.lane.b32.xlu0 %v1761, 64
  %v1943 = vpop.permute.xlu0 %1942
  %1944 = vrot.lane.b32.xlu0 %v1762, 64
  %v1945 = vpop.permute.xlu0 %1944
  %1946 = vrot.lane.b32.xlu0 %v1763, 64
  %v1947 = vpop.permute.xlu0 %1946
  %v1956 = vmul.f32 %v1826, %v1933
  %v1957 = vmul.f32 %v1841, %v1935
  %v1958 = vmul.f32 %v1856, %v1937
  %v1959 = vmul.f32 %v1871, %v1939
  %v1960 = vmul.f32 %v1886, %v1941
  %v1961 = vmul.f32 %v1901, %v1943
  %v1962 = vmul.f32 %v1916, %v1945
  %v1963 = vmul.f32 %v1931, %v1947
  %1972 = vrot.lane.b32.xlu0 %v1956, 64
  %v1973 = vpop.permute.xlu0 %1972
  %1974 = vrot.lane.b32.xlu0 %v1957, 64
  %v1975 = vpop.permute.xlu0 %1974
  %1976 = vrot.lane.b32.xlu0 %v1958, 64
  %v1977 = vpop.permute.xlu0 %1976
  %1978 = vrot.lane.b32.xlu0 %v1959, 64
  %v1979 = vpop.permute.xlu0 %1978
  %1980 = vrot.lane.b32.xlu0 %v1960, 64
  %v1981 = vpop.permute.xlu0 %1980
  %1982 = vrot.lane.b32.xlu0 %v1961, 64
  %v1983 = vpop.permute.xlu0 %1982
  %1984 = vrot.lane.b32.xlu0 %v1962, 64
  %v1985 = vpop.permute.xlu0 %1984
  %1986 = vrot.lane.b32.xlu0 %v1963, 64
  %v1987 = vpop.permute.xlu0 %1986
  %v1996 = vadd.f32 %v1702, %v1973
  %v1997 = vadd.f32 %v1703, %v1975
  %v1998 = vadd.f32 %v1704, %v1977
  %v1999 = vadd.f32 %v1705, %v1979
  %v2000 = vadd.f32 %v1706, %v1981
  %v2001 = vadd.f32 %v1707, %v1983
  %v2002 = vadd.f32 %v1708, %v1985
  %v2003 = vadd.f32 %v1709, %v1987
  %v2004 = vtanh.pop %v1996
  %v2005 = vtanh.pop %v1997
  %v2006 = vtanh.pop %v1998
  %v2007 = vtanh.pop %v1999
  %v2008 = vtanh.pop %v2000
  %v2009 = vtanh.pop %v2001
  %v2010 = vtanh.pop %v2002
  %v2011 = vtanh.pop %v2003
  %v2012 = vsub.f32 1.0, %v1826
  %v2013 = vsub.f32 1.0, %v1841
  %v2014 = vsub.f32 1.0, %v1856
  %v2015 = vsub.f32 1.0, %v1871
  %v2016 = vsub.f32 1.0, %v1886
  %v2017 = vsub.f32 1.0, %v1901
  %v2018 = vsub.f32 1.0, %v1916
  %v2019 = vsub.f32 1.0, %v1931
  %2028 = vrot.lane.b32.xlu0 %v2004, 96
  %v2029 = vpop.permute.xlu0 %2028
  %2030 = vrot.lane.b32.xlu0 %v2005, 96
  %v2031 = vpop.permute.xlu0 %2030
  %2032 = vrot.lane.b32.xlu0 %v2006, 96
  %v2033 = vpop.permute.xlu0 %2032
  %2034 = vrot.lane.b32.xlu0 %v2007, 96
  %v2035 = vpop.permute.xlu0 %2034
  %2036 = vrot.lane.b32.xlu0 %v2008, 96
  %v2037 = vpop.permute.xlu0 %2036
  %2038 = vrot.lane.b32.xlu0 %v2009, 96
  %v2039 = vpop.permute.xlu0 %2038
  %2040 = vrot.lane.b32.xlu0 %v2010, 96
  %v2041 = vpop.permute.xlu0 %2040
  %2042 = vrot.lane.b32.xlu0 %v2011, 96
  %v2043 = vpop.permute.xlu0 %2042
  %v2052 = vmul.f32 %v2012, %v2029
  %v2053 = vmul.f32 %v2013, %v2031
  %v2054 = vmul.f32 %v2014, %v2033
  %v2055 = vmul.f32 %v2015, %v2035
  %v2056 = vmul.f32 %v2016, %v2037
  %v2057 = vmul.f32 %v2017, %v2039
  %v2058 = vmul.f32 %v2018, %v2041
  %v2059 = vmul.f32 %v2019, %v2043
  %v2060 = vmul.f32 %v1826, %v1654
  %v2061 = vmul.f32 %v1841, %v1655
  %v2062 = vmul.f32 %v1856, %v1656
  %v2063 = vmul.f32 %v1871, %v1657
  %v2064 = vmul.f32 %v1886, %v1658
  %v2065 = vmul.f32 %v1901, %v1659
  %v2066 = vmul.f32 %v1916, %v1660
  %v2067 = vmul.f32 %v1931, %v1661
  %v2068 = vadd.f32 %v2052, %v2060
  %v2069 = vadd.f32 %v2053, %v2061
  %v2070 = vadd.f32 %v2054, %v2062
  %v2071 = vadd.f32 %v2055, %v2063
  %v2072 = vadd.f32 %v2056, %v2064
  %v2073 = vadd.f32 %v2057, %v2065
  %v2074 = vadd.f32 %v2058, %v2066
  %v2075 = vadd.f32 %v2059, %v2067
  %2084 = vrot.lane.b32.xlu0 %v2068, 96
  %v2085 = vpop.permute.xlu0 %2084
  %2086 = vrot.lane.b32.xlu0 %v2069, 96
  %v2087 = vpop.permute.xlu0 %2086
  %2088 = vrot.lane.b32.xlu0 %v2070, 96
  %v2089 = vpop.permute.xlu0 %2088
  %2090 = vrot.lane.b32.xlu0 %v2071, 96
  %v2091 = vpop.permute.xlu0 %2090
  %2092 = vrot.lane.b32.xlu0 %v2072, 96
  %v2093 = vpop.permute.xlu0 %2092
  %2094 = vrot.lane.b32.xlu0 %v2073, 96
  %v2095 = vpop.permute.xlu0 %2094
  %2096 = vrot.lane.b32.xlu0 %v2074, 96
  %v2097 = vpop.permute.xlu0 %2096
  %2098 = vrot.lane.b32.xlu0 %v2075, 96
  %v2099 = vpop.permute.xlu0 %2098
  %2108 = vst.msk [vmem:[%s3 + $0x4] sm:$0x1] %vm444, %v2085
  %2109 = vst.msk [vmem:[%s3 + $0xc] sm:$0x1] %vm444, %v2087
  %2110 = vst.msk [vmem:[%s3 + $0x14] sm:$0x1] %vm444, %v2089
  %2111 = vst.msk [vmem:[%s3 + $0x1c] sm:$0x1] %vm444, %v2091
  %2112 = vst.msk [vmem:[%s3 + $0x24] sm:$0x1] %vm444, %v2093
  %2113 = vst.msk [vmem:[%s3 + $0x2c] sm:$0x1] %vm444, %v2095
  %2114 = vst.msk [vmem:[%s3 + $0x34] sm:$0x1] %vm444, %v2097
  %2115 = vst.msk [vmem:[%s3 + $0x3c] sm:$0x1] %vm444, %v2099
  %v2116 = vld [vmem:[%s0 + $0x5] sm:$0x1]
  %v2117 = vld [vmem:[%s0 + $0xd] sm:$0x1]
  %v2118 = vld [vmem:[%s0 + $0x15] sm:$0x1]
  %v2119 = vld [vmem:[%s0 + $0x1d] sm:$0x1]
  %v2120 = vld [vmem:[%s0 + $0x25] sm:$0x1]
  %v2121 = vld [vmem:[%s0 + $0x2d] sm:$0x1]
  %v2122 = vld [vmem:[%s0 + $0x35] sm:$0x1]
  %v2123 = vld [vmem:[%s0 + $0x3d] sm:$0x1]
  %v2124 = vld [vmem:[%s1] sm:$0xff]
  %v2125 = vld [vmem:[%s1 + $0x8] sm:$0xff]
  %v2126 = vld [vmem:[%s1 + $0x10] sm:$0xff]
  %v2127 = vld [vmem:[%s1 + $0x18] sm:$0xff]
  %v2128 = vld [vmem:[%s2] sm:$0x1]
  %v2130 = vperm.slane %v2128, 0
  %v2132 = vrot.slane %v2069, 7
  %v2133 = vsel %vm470, %v2132, %v2068
  %v2134 = vrot.slane %v2070, 6
  %v2135 = vsel %vm473, %v2134, %v2133
  %v2136 = vrot.slane %v2071, 5
  %v2137 = vsel %vm476, %v2136, %v2135
  %v2138 = vrot.slane %v2072, 4
  %v2139 = vsel %vm479, %v2138, %v2137
  %v2140 = vrot.slane %v2073, 3
  %v2141 = vsel %vm482, %v2140, %v2139
  %v2142 = vrot.slane %v2074, 2
  %v2143 = vsel %vm485, %v2142, %v2141
  %v2144 = vrot.slane %v2075, 1
  %v2145 = vsel %vm488, %v2144, %v2143
  %2146 = vrot.lane.b32.xlu0 %v2145, 96
  %v2147 = vpop.permute.xlu0 %2146
  %v2148 = vsel %vm37, %v2147, 0
  %2150 = vmatpush.msra.mxu0 0.0
  %2151 = vmatpush.msra.mxu0 0.0
  %2152 = vmatpush.msra.mxu0 0.0
  %2153 = vmatpush.msra.mxu0 0.0
  %2154 = vmatpush.msra.mxu0 0.0
  %2155 = vmatpush.msra.mxu0 0.0
  %2156 = vmatpush.msra.mxu0 0.0
  %2157 = vmatpush.msra.mxu0 0.0
  %2158 = vmatpush.msra.mxu0 0.0
  %2159 = vmatpush.msra.mxu0 0.0
  %2160 = vmatpush.msra.mxu0 0.0
  %2161 = vmatpush.msra.mxu0 0.0
  %2162 = vmatpush.msra.mxu0 %v2127
  %2163 = vmatpush.msra.mxu0 %v2126
  %2164 = vmatpush.msra.mxu0 %v2125
  %2165 = vmatpush.msra.mxu0 %v2124
  %2166 = vmatmul.f32.gmra.mxu0 %v2148
  %v2167 = vpop.f32.mrf.mxu0
  %v2168 = vadd.f32 %v2130, %v2167
  %2169 = vdwg.mxu0
  %v2171 = vrot.slane %v2168, 1
  %v2172 = vrot.slane %v2168, 2
  %v2173 = vrot.slane %v2168, 3
  %v2174 = vrot.slane %v2168, 4
  %v2175 = vrot.slane %v2168, 5
  %v2176 = vrot.slane %v2168, 6
  %v2177 = vrot.slane %v2168, 7
  %v2186 = vadd.f32 %v2116, %v2168
  %v2187 = vadd.f32 %v2117, %v2171
  %v2188 = vadd.f32 %v2118, %v2172
  %v2189 = vadd.f32 %v2119, %v2173
  %v2190 = vadd.f32 %v2120, %v2174
  %v2191 = vadd.f32 %v2121, %v2175
  %v2192 = vadd.f32 %v2122, %v2176
  %v2193 = vadd.f32 %v2123, %v2177
  %v2194 = vxor.u32 %v2186, 2147483648
  %v2195 = vxor.u32 %v2187, 2147483648
  %v2196 = vxor.u32 %v2188, 2147483648
  %v2197 = vxor.u32 %v2189, 2147483648
  %v2198 = vxor.u32 %v2190, 2147483648
  %v2199 = vxor.u32 %v2191, 2147483648
  %v2200 = vxor.u32 %v2192, 2147483648
  %v2201 = vxor.u32 %v2193, 2147483648
  %v2202 = vmul.f32 %v2194, 1.442695
  %v2203 = vpow.pop %v2202
  %v2204 = vmul.f32 %v2195, 1.442695
  %v2205 = vpow.pop %v2204
  %v2206 = vmul.f32 %v2196, 1.442695
  %v2207 = vpow.pop %v2206
  %v2208 = vmul.f32 %v2197, 1.442695
  %v2209 = vpow.pop %v2208
  %v2210 = vmul.f32 %v2198, 1.442695
  %v2211 = vpow.pop %v2210
  %v2212 = vmul.f32 %v2199, 1.442695
  %v2213 = vpow.pop %v2212
  %v2214 = vmul.f32 %v2200, 1.442695
  %v2215 = vpow.pop %v2214
  %v2216 = vmul.f32 %v2201, 1.442695
  %v2217 = vpow.pop %v2216
  %v2218 = vadd.f32 %v2203, 1.0
  %v2219 = vadd.f32 %v2205, 1.0
  %v2220 = vadd.f32 %v2207, 1.0
  %v2221 = vadd.f32 %v2209, 1.0
  %v2222 = vadd.f32 %v2211, 1.0
  %v2223 = vadd.f32 %v2213, 1.0
  %v2224 = vadd.f32 %v2215, 1.0
  %v2225 = vadd.f32 %v2217, 1.0
  %v2226 = vrcp.pop %v2218
  %v2227 = vmul.f32 %v2218, %v2226
  %v2228 = vsub.f32 1.0, %v2227
  %v2229 = vmul.f32 %v2226, %v2228
  %v2230 = vadd.f32 %v2226, %v2229
  %vm2231 = vweird.f32 %v2218
  %vm2232 = vweird.f32 %v2226
  %vm2233 = vmor %vm2231, %vm2232
  %v2234 = vsel %vm2233, %v2226, %v2230
  %v2235 = vand.u32 2147483647, %v2218
  %vm2236 = vcmp.eq.f32.partialorder %v2235, 8.507059e+37
  %v2237 = vand.u32 %v2218, 2147483648
  %v2238 = vor.u32 1.1754944e-38, %v2237
  %v2239 = vsel %vm2236, %v2238, %v2234
  %v2240 = vmul.f32 1.0, %v2239
  %v2241 = vrcp.pop %v2219
  %v2242 = vmul.f32 %v2219, %v2241
  %v2243 = vsub.f32 1.0, %v2242
  %v2244 = vmul.f32 %v2241, %v2243
  %v2245 = vadd.f32 %v2241, %v2244
  %vm2246 = vweird.f32 %v2219
  %vm2247 = vweird.f32 %v2241
  %vm2248 = vmor %vm2246, %vm2247
  %v2249 = vsel %vm2248, %v2241, %v2245
  %v2250 = vand.u32 2147483647, %v2219
  %vm2251 = vcmp.eq.f32.partialorder %v2250, 8.507059e+37
  %v2252 = vand.u32 %v2219, 2147483648
  %v2253 = vor.u32 1.1754944e-38, %v2252
  %v2254 = vsel %vm2251, %v2253, %v2249
  %v2255 = vmul.f32 1.0, %v2254
  %v2256 = vrcp.pop %v2220
  %v2257 = vmul.f32 %v2220, %v2256
  %v2258 = vsub.f32 1.0, %v2257
  %v2259 = vmul.f32 %v2256, %v2258
  %v2260 = vadd.f32 %v2256, %v2259
  %vm2261 = vweird.f32 %v2220
  %vm2262 = vweird.f32 %v2256
  %vm2263 = vmor %vm2261, %vm2262
  %v2264 = vsel %vm2263, %v2256, %v2260
  %v2265 = vand.u32 2147483647, %v2220
  %vm2266 = vcmp.eq.f32.partialorder %v2265, 8.507059e+37
  %v2267 = vand.u32 %v2220, 2147483648
  %v2268 = vor.u32 1.1754944e-38, %v2267
  %v2269 = vsel %vm2266, %v2268, %v2264
  %v2270 = vmul.f32 1.0, %v2269
  %v2271 = vrcp.pop %v2221
  %v2272 = vmul.f32 %v2221, %v2271
  %v2273 = vsub.f32 1.0, %v2272
  %v2274 = vmul.f32 %v2271, %v2273
  %v2275 = vadd.f32 %v2271, %v2274
  %vm2276 = vweird.f32 %v2221
  %vm2277 = vweird.f32 %v2271
  %vm2278 = vmor %vm2276, %vm2277
  %v2279 = vsel %vm2278, %v2271, %v2275
  %v2280 = vand.u32 2147483647, %v2221
  %vm2281 = vcmp.eq.f32.partialorder %v2280, 8.507059e+37
  %v2282 = vand.u32 %v2221, 2147483648
  %v2283 = vor.u32 1.1754944e-38, %v2282
  %v2284 = vsel %vm2281, %v2283, %v2279
  %v2285 = vmul.f32 1.0, %v2284
  %v2286 = vrcp.pop %v2222
  %v2287 = vmul.f32 %v2222, %v2286
  %v2288 = vsub.f32 1.0, %v2287
  %v2289 = vmul.f32 %v2286, %v2288
  %v2290 = vadd.f32 %v2286, %v2289
  %vm2291 = vweird.f32 %v2222
  %vm2292 = vweird.f32 %v2286
  %vm2293 = vmor %vm2291, %vm2292
  %v2294 = vsel %vm2293, %v2286, %v2290
  %v2295 = vand.u32 2147483647, %v2222
  %vm2296 = vcmp.eq.f32.partialorder %v2295, 8.507059e+37
  %v2297 = vand.u32 %v2222, 2147483648
  %v2298 = vor.u32 1.1754944e-38, %v2297
  %v2299 = vsel %vm2296, %v2298, %v2294
  %v2300 = vmul.f32 1.0, %v2299
  %v2301 = vrcp.pop %v2223
  %v2302 = vmul.f32 %v2223, %v2301
  %v2303 = vsub.f32 1.0, %v2302
  %v2304 = vmul.f32 %v2301, %v2303
  %v2305 = vadd.f32 %v2301, %v2304
  %vm2306 = vweird.f32 %v2223
  %vm2307 = vweird.f32 %v2301
  %vm2308 = vmor %vm2306, %vm2307
  %v2309 = vsel %vm2308, %v2301, %v2305
  %v2310 = vand.u32 2147483647, %v2223
  %vm2311 = vcmp.eq.f32.partialorder %v2310, 8.507059e+37
  %v2312 = vand.u32 %v2223, 2147483648
  %v2313 = vor.u32 1.1754944e-38, %v2312
  %v2314 = vsel %vm2311, %v2313, %v2309
  %v2315 = vmul.f32 1.0, %v2314
  %v2316 = vrcp.pop %v2224
  %v2317 = vmul.f32 %v2224, %v2316
  %v2318 = vsub.f32 1.0, %v2317
  %v2319 = vmul.f32 %v2316, %v2318
  %v2320 = vadd.f32 %v2316, %v2319
  %vm2321 = vweird.f32 %v2224
  %vm2322 = vweird.f32 %v2316
  %vm2323 = vmor %vm2321, %vm2322
  %v2324 = vsel %vm2323, %v2316, %v2320
  %v2325 = vand.u32 2147483647, %v2224
  %vm2326 = vcmp.eq.f32.partialorder %v2325, 8.507059e+37
  %v2327 = vand.u32 %v2224, 2147483648
  %v2328 = vor.u32 1.1754944e-38, %v2327
  %v2329 = vsel %vm2326, %v2328, %v2324
  %v2330 = vmul.f32 1.0, %v2329
  %v2331 = vrcp.pop %v2225
  %v2332 = vmul.f32 %v2225, %v2331
  %v2333 = vsub.f32 1.0, %v2332
  %v2334 = vmul.f32 %v2331, %v2333
  %v2335 = vadd.f32 %v2331, %v2334
  %vm2336 = vweird.f32 %v2225
  %vm2337 = vweird.f32 %v2331
  %vm2338 = vmor %vm2336, %vm2337
  %v2339 = vsel %vm2338, %v2331, %v2335
  %v2340 = vand.u32 2147483647, %v2225
  %vm2341 = vcmp.eq.f32.partialorder %v2340, 8.507059e+37
  %v2342 = vand.u32 %v2225, 2147483648
  %v2343 = vor.u32 1.1754944e-38, %v2342
  %v2344 = vsel %vm2341, %v2343, %v2339
  %v2345 = vmul.f32 1.0, %v2344
  %2346 = vrot.lane.b32.xlu0 %v2168, 64
  %v2347 = vpop.permute.xlu0 %2346
  %2348 = vrot.lane.b32.xlu0 %v2171, 64
  %v2349 = vpop.permute.xlu0 %2348
  %2350 = vrot.lane.b32.xlu0 %v2172, 64
  %v2351 = vpop.permute.xlu0 %2350
  %2352 = vrot.lane.b32.xlu0 %v2173, 64
  %v2353 = vpop.permute.xlu0 %2352
  %2354 = vrot.lane.b32.xlu0 %v2174, 64
  %v2355 = vpop.permute.xlu0 %2354
  %2356 = vrot.lane.b32.xlu0 %v2175, 64
  %v2357 = vpop.permute.xlu0 %2356
  %2358 = vrot.lane.b32.xlu0 %v2176, 64
  %v2359 = vpop.permute.xlu0 %2358
  %2360 = vrot.lane.b32.xlu0 %v2177, 64
  %v2361 = vpop.permute.xlu0 %2360
  %v2370 = vmul.f32 %v2240, %v2347
  %v2371 = vmul.f32 %v2255, %v2349
  %v2372 = vmul.f32 %v2270, %v2351
  %v2373 = vmul.f32 %v2285, %v2353
  %v2374 = vmul.f32 %v2300, %v2355
  %v2375 = vmul.f32 %v2315, %v2357
  %v2376 = vmul.f32 %v2330, %v2359
  %v2377 = vmul.f32 %v2345, %v2361
  %2386 = vrot.lane.b32.xlu0 %v2370, 64
  %v2387 = vpop.permute.xlu0 %2386
  %2388 = vrot.lane.b32.xlu0 %v2371, 64
  %v2389 = vpop.permute.xlu0 %2388
  %2390 = vrot.lane.b32.xlu0 %v2372, 64
  %v2391 = vpop.permute.xlu0 %2390
  %2392 = vrot.lane.b32.xlu0 %v2373, 64
  %v2393 = vpop.permute.xlu0 %2392
  %2394 = vrot.lane.b32.xlu0 %v2374, 64
  %v2395 = vpop.permute.xlu0 %2394
  %2396 = vrot.lane.b32.xlu0 %v2375, 64
  %v2397 = vpop.permute.xlu0 %2396
  %2398 = vrot.lane.b32.xlu0 %v2376, 64
  %v2399 = vpop.permute.xlu0 %2398
  %2400 = vrot.lane.b32.xlu0 %v2377, 64
  %v2401 = vpop.permute.xlu0 %2400
  %v2410 = vadd.f32 %v2116, %v2387
  %v2411 = vadd.f32 %v2117, %v2389
  %v2412 = vadd.f32 %v2118, %v2391
  %v2413 = vadd.f32 %v2119, %v2393
  %v2414 = vadd.f32 %v2120, %v2395
  %v2415 = vadd.f32 %v2121, %v2397
  %v2416 = vadd.f32 %v2122, %v2399
  %v2417 = vadd.f32 %v2123, %v2401
  %v2418 = vtanh.pop %v2410
  %v2419 = vtanh.pop %v2411
  %v2420 = vtanh.pop %v2412
  %v2421 = vtanh.pop %v2413
  %v2422 = vtanh.pop %v2414
  %v2423 = vtanh.pop %v2415
  %v2424 = vtanh.pop %v2416
  %v2425 = vtanh.pop %v2417
  %v2426 = vsub.f32 1.0, %v2240
  %v2427 = vsub.f32 1.0, %v2255
  %v2428 = vsub.f32 1.0, %v2270
  %v2429 = vsub.f32 1.0, %v2285
  %v2430 = vsub.f32 1.0, %v2300
  %v2431 = vsub.f32 1.0, %v2315
  %v2432 = vsub.f32 1.0, %v2330
  %v2433 = vsub.f32 1.0, %v2345
  %2442 = vrot.lane.b32.xlu0 %v2418, 96
  %v2443 = vpop.permute.xlu0 %2442
  %2444 = vrot.lane.b32.xlu0 %v2419, 96
  %v2445 = vpop.permute.xlu0 %2444
  %2446 = vrot.lane.b32.xlu0 %v2420, 96
  %v2447 = vpop.permute.xlu0 %2446
  %2448 = vrot.lane.b32.xlu0 %v2421, 96
  %v2449 = vpop.permute.xlu0 %2448
  %2450 = vrot.lane.b32.xlu0 %v2422, 96
  %v2451 = vpop.permute.xlu0 %2450
  %2452 = vrot.lane.b32.xlu0 %v2423, 96
  %v2453 = vpop.permute.xlu0 %2452
  %2454 = vrot.lane.b32.xlu0 %v2424, 96
  %v2455 = vpop.permute.xlu0 %2454
  %2456 = vrot.lane.b32.xlu0 %v2425, 96
  %v2457 = vpop.permute.xlu0 %2456
  %v2466 = vmul.f32 %v2426, %v2443
  %v2467 = vmul.f32 %v2427, %v2445
  %v2468 = vmul.f32 %v2428, %v2447
  %v2469 = vmul.f32 %v2429, %v2449
  %v2470 = vmul.f32 %v2430, %v2451
  %v2471 = vmul.f32 %v2431, %v2453
  %v2472 = vmul.f32 %v2432, %v2455
  %v2473 = vmul.f32 %v2433, %v2457
  %v2474 = vmul.f32 %v2240, %v2068
  %v2475 = vmul.f32 %v2255, %v2069
  %v2476 = vmul.f32 %v2270, %v2070
  %v2477 = vmul.f32 %v2285, %v2071
  %v2478 = vmul.f32 %v2300, %v2072
  %v2479 = vmul.f32 %v2315, %v2073
  %v2480 = vmul.f32 %v2330, %v2074
  %v2481 = vmul.f32 %v2345, %v2075
  %v2482 = vadd.f32 %v2466, %v2474
  %v2483 = vadd.f32 %v2467, %v2475
  %v2484 = vadd.f32 %v2468, %v2476
  %v2485 = vadd.f32 %v2469, %v2477
  %v2486 = vadd.f32 %v2470, %v2478
  %v2487 = vadd.f32 %v2471, %v2479
  %v2488 = vadd.f32 %v2472, %v2480
  %v2489 = vadd.f32 %v2473, %v2481
  %2498 = vrot.lane.b32.xlu0 %v2482, 96
  %v2499 = vpop.permute.xlu0 %2498
  %2500 = vrot.lane.b32.xlu0 %v2483, 96
  %v2501 = vpop.permute.xlu0 %2500
  %2502 = vrot.lane.b32.xlu0 %v2484, 96
  %v2503 = vpop.permute.xlu0 %2502
  %2504 = vrot.lane.b32.xlu0 %v2485, 96
  %v2505 = vpop.permute.xlu0 %2504
  %2506 = vrot.lane.b32.xlu0 %v2486, 96
  %v2507 = vpop.permute.xlu0 %2506
  %2508 = vrot.lane.b32.xlu0 %v2487, 96
  %v2509 = vpop.permute.xlu0 %2508
  %2510 = vrot.lane.b32.xlu0 %v2488, 96
  %v2511 = vpop.permute.xlu0 %2510
  %2512 = vrot.lane.b32.xlu0 %v2489, 96
  %v2513 = vpop.permute.xlu0 %2512
  %2522 = vst.msk [vmem:[%s3 + $0x5] sm:$0x1] %vm444, %v2499
  %2523 = vst.msk [vmem:[%s3 + $0xd] sm:$0x1] %vm444, %v2501
  %2524 = vst.msk [vmem:[%s3 + $0x15] sm:$0x1] %vm444, %v2503
  %2525 = vst.msk [vmem:[%s3 + $0x1d] sm:$0x1] %vm444, %v2505
  %2526 = vst.msk [vmem:[%s3 + $0x25] sm:$0x1] %vm444, %v2507
  %2527 = vst.msk [vmem:[%s3 + $0x2d] sm:$0x1] %vm444, %v2509
  %2528 = vst.msk [vmem:[%s3 + $0x35] sm:$0x1] %vm444, %v2511
  %2529 = vst.msk [vmem:[%s3 + $0x3d] sm:$0x1] %vm444, %v2513
  %v2530 = vld [vmem:[%s0 + $0x6] sm:$0x1]
  %v2531 = vld [vmem:[%s0 + $0xe] sm:$0x1]
  %v2532 = vld [vmem:[%s0 + $0x16] sm:$0x1]
  %v2533 = vld [vmem:[%s0 + $0x1e] sm:$0x1]
  %v2534 = vld [vmem:[%s0 + $0x26] sm:$0x1]
  %v2535 = vld [vmem:[%s0 + $0x2e] sm:$0x1]
  %v2536 = vld [vmem:[%s0 + $0x36] sm:$0x1]
  %v2537 = vld [vmem:[%s0 + $0x3e] sm:$0x1]
  %v2538 = vld [vmem:[%s1] sm:$0xff]
  %v2539 = vld [vmem:[%s1 + $0x8] sm:$0xff]
  %v2540 = vld [vmem:[%s1 + $0x10] sm:$0xff]
  %v2541 = vld [vmem:[%s1 + $0x18] sm:$0xff]
  %v2542 = vld [vmem:[%s2] sm:$0x1]
  %v2544 = vperm.slane %v2542, 0
  %v2546 = vrot.slane %v2483, 7
  %v2547 = vsel %vm470, %v2546, %v2482
  %v2548 = vrot.slane %v2484, 6
  %v2549 = vsel %vm473, %v2548, %v2547
  %v2550 = vrot.slane %v2485, 5
  %v2551 = vsel %vm476, %v2550, %v2549
  %v2552 = vrot.slane %v2486, 4
  %v2553 = vsel %vm479, %v2552, %v2551
  %v2554 = vrot.slane %v2487, 3
  %v2555 = vsel %vm482, %v2554, %v2553
  %v2556 = vrot.slane %v2488, 2
  %v2557 = vsel %vm485, %v2556, %v2555
  %v2558 = vrot.slane %v2489, 1
  %v2559 = vsel %vm488, %v2558, %v2557
  %2560 = vrot.lane.b32.xlu0 %v2559, 96
  %v2561 = vpop.permute.xlu0 %2560
  %v2562 = vsel %vm37, %v2561, 0
  %2564 = vmatpush.msra.mxu0 0.0
  %2565 = vmatpush.msra.mxu0 0.0
  %2566 = vmatpush.msra.mxu0 0.0
  %2567 = vmatpush.msra.mxu0 0.0
  %2568 = vmatpush.msra.mxu0 0.0
  %2569 = vmatpush.msra.mxu0 0.0
  %2570 = vmatpush.msra.mxu0 0.0
  %2571 = vmatpush.msra.mxu0 0.0
  %2572 = vmatpush.msra.mxu0 0.0
  %2573 = vmatpush.msra.mxu0 0.0
  %2574 = vmatpush.msra.mxu0 0.0
  %2575 = vmatpush.msra.mxu0 0.0
  %2576 = vmatpush.msra.mxu0 %v2541
  %2577 = vmatpush.msra.mxu0 %v2540
  %2578 = vmatpush.msra.mxu0 %v2539
  %2579 = vmatpush.msra.mxu0 %v2538
  %2580 = vmatmul.f32.gmra.mxu0 %v2562
  %v2581 = vpop.f32.mrf.mxu0
  %v2582 = vadd.f32 %v2544, %v2581
  %2583 = vdwg.mxu0
  %v2585 = vrot.slane %v2582, 1
  %v2586 = vrot.slane %v2582, 2
  %v2587 = vrot.slane %v2582, 3
  %v2588 = vrot.slane %v2582, 4
  %v2589 = vrot.slane %v2582, 5
  %v2590 = vrot.slane %v2582, 6
  %v2591 = vrot.slane %v2582, 7
  %v2600 = vadd.f32 %v2530, %v2582
  %v2601 = vadd.f32 %v2531, %v2585
  %v2602 = vadd.f32 %v2532, %v2586
  %v2603 = vadd.f32 %v2533, %v2587
  %v2604 = vadd.f32 %v2534, %v2588
  %v2605 = vadd.f32 %v2535, %v2589
  %v2606 = vadd.f32 %v2536, %v2590
  %v2607 = vadd.f32 %v2537, %v2591
  %v2608 = vxor.u32 %v2600, 2147483648
  %v2609 = vxor.u32 %v2601, 2147483648
  %v2610 = vxor.u32 %v2602, 2147483648
  %v2611 = vxor.u32 %v2603, 2147483648
  %v2612 = vxor.u32 %v2604, 2147483648
  %v2613 = vxor.u32 %v2605, 2147483648
  %v2614 = vxor.u32 %v2606, 2147483648
  %v2615 = vxor.u32 %v2607, 2147483648
  %v2616 = vmul.f32 %v2608, 1.442695
  %v2617 = vpow.pop %v2616
  %v2618 = vmul.f32 %v2609, 1.442695
  %v2619 = vpow.pop %v2618
  %v2620 = vmul.f32 %v2610, 1.442695
  %v2621 = vpow.pop %v2620
  %v2622 = vmul.f32 %v2611, 1.442695
  %v2623 = vpow.pop %v2622
  %v2624 = vmul.f32 %v2612, 1.442695
  %v2625 = vpow.pop %v2624
  %v2626 = vmul.f32 %v2613, 1.442695
  %v2627 = vpow.pop %v2626
  %v2628 = vmul.f32 %v2614, 1.442695
  %v2629 = vpow.pop %v2628
  %v2630 = vmul.f32 %v2615, 1.442695
  %v2631 = vpow.pop %v2630
  %v2632 = vadd.f32 %v2617, 1.0
  %v2633 = vadd.f32 %v2619, 1.0
  %v2634 = vadd.f32 %v2621, 1.0
  %v2635 = vadd.f32 %v2623, 1.0
  %v2636 = vadd.f32 %v2625, 1.0
  %v2637 = vadd.f32 %v2627, 1.0
  %v2638 = vadd.f32 %v2629, 1.0
  %v2639 = vadd.f32 %v2631, 1.0
  %v2640 = vrcp.pop %v2632
  %v2641 = vmul.f32 %v2632, %v2640
  %v2642 = vsub.f32 1.0, %v2641
  %v2643 = vmul.f32 %v2640, %v2642
  %v2644 = vadd.f32 %v2640, %v2643
  %vm2645 = vweird.f32 %v2632
  %vm2646 = vweird.f32 %v2640
  %vm2647 = vmor %vm2645, %vm2646
  %v2648 = vsel %vm2647, %v2640, %v2644
  %v2649 = vand.u32 2147483647, %v2632
  %vm2650 = vcmp.eq.f32.partialorder %v2649, 8.507059e+37
  %v2651 = vand.u32 %v2632, 2147483648
  %v2652 = vor.u32 1.1754944e-38, %v2651
  %v2653 = vsel %vm2650, %v2652, %v2648
  %v2654 = vmul.f32 1.0, %v2653
  %v2655 = vrcp.pop %v2633
  %v2656 = vmul.f32 %v2633, %v2655
  %v2657 = vsub.f32 1.0, %v2656
  %v2658 = vmul.f32 %v2655, %v2657
  %v2659 = vadd.f32 %v2655, %v2658
  %vm2660 = vweird.f32 %v2633
  %vm2661 = vweird.f32 %v2655
  %vm2662 = vmor %vm2660, %vm2661
  %v2663 = vsel %vm2662, %v2655, %v2659
  %v2664 = vand.u32 2147483647, %v2633
  %vm2665 = vcmp.eq.f32.partialorder %v2664, 8.507059e+37
  %v2666 = vand.u32 %v2633, 2147483648
  %v2667 = vor.u32 1.1754944e-38, %v2666
  %v2668 = vsel %vm2665, %v2667, %v2663
  %v2669 = vmul.f32 1.0, %v2668
  %v2670 = vrcp.pop %v2634
  %v2671 = vmul.f32 %v2634, %v2670
  %v2672 = vsub.f32 1.0, %v2671
  %v2673 = vmul.f32 %v2670, %v2672
  %v2674 = vadd.f32 %v2670, %v2673
  %vm2675 = vweird.f32 %v2634
  %vm2676 = vweird.f32 %v2670
  %vm2677 = vmor %vm2675, %vm2676
  %v2678 = vsel %vm2677, %v2670, %v2674
  %v2679 = vand.u32 2147483647, %v2634
  %vm2680 = vcmp.eq.f32.partialorder %v2679, 8.507059e+37
  %v2681 = vand.u32 %v2634, 2147483648
  %v2682 = vor.u32 1.1754944e-38, %v2681
  %v2683 = vsel %vm2680, %v2682, %v2678
  %v2684 = vmul.f32 1.0, %v2683
  %v2685 = vrcp.pop %v2635
  %v2686 = vmul.f32 %v2635, %v2685
  %v2687 = vsub.f32 1.0, %v2686
  %v2688 = vmul.f32 %v2685, %v2687
  %v2689 = vadd.f32 %v2685, %v2688
  %vm2690 = vweird.f32 %v2635
  %vm2691 = vweird.f32 %v2685
  %vm2692 = vmor %vm2690, %vm2691
  %v2693 = vsel %vm2692, %v2685, %v2689
  %v2694 = vand.u32 2147483647, %v2635
  %vm2695 = vcmp.eq.f32.partialorder %v2694, 8.507059e+37
  %v2696 = vand.u32 %v2635, 2147483648
  %v2697 = vor.u32 1.1754944e-38, %v2696
  %v2698 = vsel %vm2695, %v2697, %v2693
  %v2699 = vmul.f32 1.0, %v2698
  %v2700 = vrcp.pop %v2636
  %v2701 = vmul.f32 %v2636, %v2700
  %v2702 = vsub.f32 1.0, %v2701
  %v2703 = vmul.f32 %v2700, %v2702
  %v2704 = vadd.f32 %v2700, %v2703
  %vm2705 = vweird.f32 %v2636
  %vm2706 = vweird.f32 %v2700
  %vm2707 = vmor %vm2705, %vm2706
  %v2708 = vsel %vm2707, %v2700, %v2704
  %v2709 = vand.u32 2147483647, %v2636
  %vm2710 = vcmp.eq.f32.partialorder %v2709, 8.507059e+37
  %v2711 = vand.u32 %v2636, 2147483648
  %v2712 = vor.u32 1.1754944e-38, %v2711
  %v2713 = vsel %vm2710, %v2712, %v2708
  %v2714 = vmul.f32 1.0, %v2713
  %v2715 = vrcp.pop %v2637
  %v2716 = vmul.f32 %v2637, %v2715
  %v2717 = vsub.f32 1.0, %v2716
  %v2718 = vmul.f32 %v2715, %v2717
  %v2719 = vadd.f32 %v2715, %v2718
  %vm2720 = vweird.f32 %v2637
  %vm2721 = vweird.f32 %v2715
  %vm2722 = vmor %vm2720, %vm2721
  %v2723 = vsel %vm2722, %v2715, %v2719
  %v2724 = vand.u32 2147483647, %v2637
  %vm2725 = vcmp.eq.f32.partialorder %v2724, 8.507059e+37
  %v2726 = vand.u32 %v2637, 2147483648
  %v2727 = vor.u32 1.1754944e-38, %v2726
  %v2728 = vsel %vm2725, %v2727, %v2723
  %v2729 = vmul.f32 1.0, %v2728
  %v2730 = vrcp.pop %v2638
  %v2731 = vmul.f32 %v2638, %v2730
  %v2732 = vsub.f32 1.0, %v2731
  %v2733 = vmul.f32 %v2730, %v2732
  %v2734 = vadd.f32 %v2730, %v2733
  %vm2735 = vweird.f32 %v2638
  %vm2736 = vweird.f32 %v2730
  %vm2737 = vmor %vm2735, %vm2736
  %v2738 = vsel %vm2737, %v2730, %v2734
  %v2739 = vand.u32 2147483647, %v2638
  %vm2740 = vcmp.eq.f32.partialorder %v2739, 8.507059e+37
  %v2741 = vand.u32 %v2638, 2147483648
  %v2742 = vor.u32 1.1754944e-38, %v2741
  %v2743 = vsel %vm2740, %v2742, %v2738
  %v2744 = vmul.f32 1.0, %v2743
  %v2745 = vrcp.pop %v2639
  %v2746 = vmul.f32 %v2639, %v2745
  %v2747 = vsub.f32 1.0, %v2746
  %v2748 = vmul.f32 %v2745, %v2747
  %v2749 = vadd.f32 %v2745, %v2748
  %vm2750 = vweird.f32 %v2639
  %vm2751 = vweird.f32 %v2745
  %vm2752 = vmor %vm2750, %vm2751
  %v2753 = vsel %vm2752, %v2745, %v2749
  %v2754 = vand.u32 2147483647, %v2639
  %vm2755 = vcmp.eq.f32.partialorder %v2754, 8.507059e+37
  %v2756 = vand.u32 %v2639, 2147483648
  %v2757 = vor.u32 1.1754944e-38, %v2756
  %v2758 = vsel %vm2755, %v2757, %v2753
  %v2759 = vmul.f32 1.0, %v2758
  %2760 = vrot.lane.b32.xlu0 %v2582, 64
  %v2761 = vpop.permute.xlu0 %2760
  %2762 = vrot.lane.b32.xlu0 %v2585, 64
  %v2763 = vpop.permute.xlu0 %2762
  %2764 = vrot.lane.b32.xlu0 %v2586, 64
  %v2765 = vpop.permute.xlu0 %2764
  %2766 = vrot.lane.b32.xlu0 %v2587, 64
  %v2767 = vpop.permute.xlu0 %2766
  %2768 = vrot.lane.b32.xlu0 %v2588, 64
  %v2769 = vpop.permute.xlu0 %2768
  %2770 = vrot.lane.b32.xlu0 %v2589, 64
  %v2771 = vpop.permute.xlu0 %2770
  %2772 = vrot.lane.b32.xlu0 %v2590, 64
  %v2773 = vpop.permute.xlu0 %2772
  %2774 = vrot.lane.b32.xlu0 %v2591, 64
  %v2775 = vpop.permute.xlu0 %2774
  %v2784 = vmul.f32 %v2654, %v2761
  %v2785 = vmul.f32 %v2669, %v2763
  %v2786 = vmul.f32 %v2684, %v2765
  %v2787 = vmul.f32 %v2699, %v2767
  %v2788 = vmul.f32 %v2714, %v2769
  %v2789 = vmul.f32 %v2729, %v2771
  %v2790 = vmul.f32 %v2744, %v2773
  %v2791 = vmul.f32 %v2759, %v2775
  %2800 = vrot.lane.b32.xlu0 %v2784, 64
  %v2801 = vpop.permute.xlu0 %2800
  %2802 = vrot.lane.b32.xlu0 %v2785, 64
  %v2803 = vpop.permute.xlu0 %2802
  %2804 = vrot.lane.b32.xlu0 %v2786, 64
  %v2805 = vpop.permute.xlu0 %2804
  %2806 = vrot.lane.b32.xlu0 %v2787, 64
  %v2807 = vpop.permute.xlu0 %2806
  %2808 = vrot.lane.b32.xlu0 %v2788, 64
  %v2809 = vpop.permute.xlu0 %2808
  %2810 = vrot.lane.b32.xlu0 %v2789, 64
  %v2811 = vpop.permute.xlu0 %2810
  %2812 = vrot.lane.b32.xlu0 %v2790, 64
  %v2813 = vpop.permute.xlu0 %2812
  %2814 = vrot.lane.b32.xlu0 %v2791, 64
  %v2815 = vpop.permute.xlu0 %2814
  %v2824 = vadd.f32 %v2530, %v2801
  %v2825 = vadd.f32 %v2531, %v2803
  %v2826 = vadd.f32 %v2532, %v2805
  %v2827 = vadd.f32 %v2533, %v2807
  %v2828 = vadd.f32 %v2534, %v2809
  %v2829 = vadd.f32 %v2535, %v2811
  %v2830 = vadd.f32 %v2536, %v2813
  %v2831 = vadd.f32 %v2537, %v2815
  %v2832 = vtanh.pop %v2824
  %v2833 = vtanh.pop %v2825
  %v2834 = vtanh.pop %v2826
  %v2835 = vtanh.pop %v2827
  %v2836 = vtanh.pop %v2828
  %v2837 = vtanh.pop %v2829
  %v2838 = vtanh.pop %v2830
  %v2839 = vtanh.pop %v2831
  %v2840 = vsub.f32 1.0, %v2654
  %v2841 = vsub.f32 1.0, %v2669
  %v2842 = vsub.f32 1.0, %v2684
  %v2843 = vsub.f32 1.0, %v2699
  %v2844 = vsub.f32 1.0, %v2714
  %v2845 = vsub.f32 1.0, %v2729
  %v2846 = vsub.f32 1.0, %v2744
  %v2847 = vsub.f32 1.0, %v2759
  %2856 = vrot.lane.b32.xlu0 %v2832, 96
  %v2857 = vpop.permute.xlu0 %2856
  %2858 = vrot.lane.b32.xlu0 %v2833, 96
  %v2859 = vpop.permute.xlu0 %2858
  %2860 = vrot.lane.b32.xlu0 %v2834, 96
  %v2861 = vpop.permute.xlu0 %2860
  %2862 = vrot.lane.b32.xlu0 %v2835, 96
  %v2863 = vpop.permute.xlu0 %2862
  %2864 = vrot.lane.b32.xlu0 %v2836, 96
  %v2865 = vpop.permute.xlu0 %2864
  %2866 = vrot.lane.b32.xlu0 %v2837, 96
  %v2867 = vpop.permute.xlu0 %2866
  %2868 = vrot.lane.b32.xlu0 %v2838, 96
  %v2869 = vpop.permute.xlu0 %2868
  %2870 = vrot.lane.b32.xlu0 %v2839, 96
  %v2871 = vpop.permute.xlu0 %2870
  %v2880 = vmul.f32 %v2840, %v2857
  %v2881 = vmul.f32 %v2841, %v2859
  %v2882 = vmul.f32 %v2842, %v2861
  %v2883 = vmul.f32 %v2843, %v2863
  %v2884 = vmul.f32 %v2844, %v2865
  %v2885 = vmul.f32 %v2845, %v2867
  %v2886 = vmul.f32 %v2846, %v2869
  %v2887 = vmul.f32 %v2847, %v2871
  %v2888 = vmul.f32 %v2654, %v2482
  %v2889 = vmul.f32 %v2669, %v2483
  %v2890 = vmul.f32 %v2684, %v2484
  %v2891 = vmul.f32 %v2699, %v2485
  %v2892 = vmul.f32 %v2714, %v2486
  %v2893 = vmul.f32 %v2729, %v2487
  %v2894 = vmul.f32 %v2744, %v2488
  %v2895 = vmul.f32 %v2759, %v2489
  %v2896 = vadd.f32 %v2880, %v2888
  %v2897 = vadd.f32 %v2881, %v2889
  %v2898 = vadd.f32 %v2882, %v2890
  %v2899 = vadd.f32 %v2883, %v2891
  %v2900 = vadd.f32 %v2884, %v2892
  %v2901 = vadd.f32 %v2885, %v2893
  %v2902 = vadd.f32 %v2886, %v2894
  %v2903 = vadd.f32 %v2887, %v2895
  %2912 = vrot.lane.b32.xlu0 %v2896, 96
  %v2913 = vpop.permute.xlu0 %2912
  %2914 = vrot.lane.b32.xlu0 %v2897, 96
  %v2915 = vpop.permute.xlu0 %2914
  %2916 = vrot.lane.b32.xlu0 %v2898, 96
  %v2917 = vpop.permute.xlu0 %2916
  %2918 = vrot.lane.b32.xlu0 %v2899, 96
  %v2919 = vpop.permute.xlu0 %2918
  %2920 = vrot.lane.b32.xlu0 %v2900, 96
  %v2921 = vpop.permute.xlu0 %2920
  %2922 = vrot.lane.b32.xlu0 %v2901, 96
  %v2923 = vpop.permute.xlu0 %2922
  %2924 = vrot.lane.b32.xlu0 %v2902, 96
  %v2925 = vpop.permute.xlu0 %2924
  %2926 = vrot.lane.b32.xlu0 %v2903, 96
  %v2927 = vpop.permute.xlu0 %2926
  %2936 = vst.msk [vmem:[%s3 + $0x6] sm:$0x1] %vm444, %v2913
  %2937 = vst.msk [vmem:[%s3 + $0xe] sm:$0x1] %vm444, %v2915
  %2938 = vst.msk [vmem:[%s3 + $0x16] sm:$0x1] %vm444, %v2917
  %2939 = vst.msk [vmem:[%s3 + $0x1e] sm:$0x1] %vm444, %v2919
  %2940 = vst.msk [vmem:[%s3 + $0x26] sm:$0x1] %vm444, %v2921
  %2941 = vst.msk [vmem:[%s3 + $0x2e] sm:$0x1] %vm444, %v2923
  %2942 = vst.msk [vmem:[%s3 + $0x36] sm:$0x1] %vm444, %v2925
  %2943 = vst.msk [vmem:[%s3 + $0x3e] sm:$0x1] %vm444, %v2927
  %v2944 = vld [vmem:[%s0 + $0x7] sm:$0x1]
  %v2945 = vld [vmem:[%s0 + $0xf] sm:$0x1]
  %v2946 = vld [vmem:[%s0 + $0x17] sm:$0x1]
  %v2947 = vld [vmem:[%s0 + $0x1f] sm:$0x1]
  %v2948 = vld [vmem:[%s0 + $0x27] sm:$0x1]
  %v2949 = vld [vmem:[%s0 + $0x2f] sm:$0x1]
  %v2950 = vld [vmem:[%s0 + $0x37] sm:$0x1]
  %v2951 = vld [vmem:[%s0 + $0x3f] sm:$0x1]
  %v2952 = vld [vmem:[%s1] sm:$0xff]
  %v2953 = vld [vmem:[%s1 + $0x8] sm:$0xff]
  %v2954 = vld [vmem:[%s1 + $0x10] sm:$0xff]
  %v2955 = vld [vmem:[%s1 + $0x18] sm:$0xff]
  %v2956 = vld [vmem:[%s2] sm:$0x1]
  %v2958 = vperm.slane %v2956, 0
  %v2960 = vrot.slane %v2897, 7
  %v2961 = vsel %vm470, %v2960, %v2896
  %v2962 = vrot.slane %v2898, 6
  %v2963 = vsel %vm473, %v2962, %v2961
  %v2964 = vrot.slane %v2899, 5
  %v2965 = vsel %vm476, %v2964, %v2963
  %v2966 = vrot.slane %v2900, 4
  %v2967 = vsel %vm479, %v2966, %v2965
  %v2968 = vrot.slane %v2901, 3
  %v2969 = vsel %vm482, %v2968, %v2967
  %v2970 = vrot.slane %v2902, 2
  %v2971 = vsel %vm485, %v2970, %v2969
  %v2972 = vrot.slane %v2903, 1
  %v2973 = vsel %vm488, %v2972, %v2971
  %2974 = vrot.lane.b32.xlu0 %v2973, 96
  %v2975 = vpop.permute.xlu0 %2974
  %v2976 = vsel %vm37, %v2975, 0
  %2978 = vmatpush.msra.mxu0 0.0
  %2979 = vmatpush.msra.mxu0 0.0
  %2980 = vmatpush.msra.mxu0 0.0
  %2981 = vmatpush.msra.mxu0 0.0
  %2982 = vmatpush.msra.mxu0 0.0
  %2983 = vmatpush.msra.mxu0 0.0
  %2984 = vmatpush.msra.mxu0 0.0
  %2985 = vmatpush.msra.mxu0 0.0
  %2986 = vmatpush.msra.mxu0 0.0
  %2987 = vmatpush.msra.mxu0 0.0
  %2988 = vmatpush.msra.mxu0 0.0
  %2989 = vmatpush.msra.mxu0 0.0
  %2990 = vmatpush.msra.mxu0 %v2955
  %2991 = vmatpush.msra.mxu0 %v2954
  %2992 = vmatpush.msra.mxu0 %v2953
  %2993 = vmatpush.msra.mxu0 %v2952
  %2994 = vmatmul.f32.gmra.mxu0 %v2976
  %v2995 = vpop.f32.mrf.mxu0
  %v2996 = vadd.f32 %v2958, %v2995
  %2997 = vdwg.mxu0
  %v2999 = vrot.slane %v2996, 1
  %v3000 = vrot.slane %v2996, 2
  %v3001 = vrot.slane %v2996, 3
  %v3002 = vrot.slane %v2996, 4
  %v3003 = vrot.slane %v2996, 5
  %v3004 = vrot.slane %v2996, 6
  %v3005 = vrot.slane %v2996, 7
  %v3014 = vadd.f32 %v2944, %v2996
  %v3015 = vadd.f32 %v2945, %v2999
  %v3016 = vadd.f32 %v2946, %v3000
  %v3017 = vadd.f32 %v2947, %v3001
  %v3018 = vadd.f32 %v2948, %v3002
  %v3019 = vadd.f32 %v2949, %v3003
  %v3020 = vadd.f32 %v2950, %v3004
  %v3021 = vadd.f32 %v2951, %v3005
  %v3022 = vxor.u32 %v3014, 2147483648
  %v3023 = vxor.u32 %v3015, 2147483648
  %v3024 = vxor.u32 %v3016, 2147483648
  %v3025 = vxor.u32 %v3017, 2147483648
  %v3026 = vxor.u32 %v3018, 2147483648
  %v3027 = vxor.u32 %v3019, 2147483648
  %v3028 = vxor.u32 %v3020, 2147483648
  %v3029 = vxor.u32 %v3021, 2147483648
  %v3030 = vmul.f32 %v3022, 1.442695
  %v3031 = vpow.pop %v3030
  %v3032 = vmul.f32 %v3023, 1.442695
  %v3033 = vpow.pop %v3032
  %v3034 = vmul.f32 %v3024, 1.442695
  %v3035 = vpow.pop %v3034
  %v3036 = vmul.f32 %v3025, 1.442695
  %v3037 = vpow.pop %v3036
  %v3038 = vmul.f32 %v3026, 1.442695
  %v3039 = vpow.pop %v3038
  %v3040 = vmul.f32 %v3027, 1.442695
  %v3041 = vpow.pop %v3040
  %v3042 = vmul.f32 %v3028, 1.442695
  %v3043 = vpow.pop %v3042
  %v3044 = vmul.f32 %v3029, 1.442695
  %v3045 = vpow.pop %v3044
  %v3046 = vadd.f32 %v3031, 1.0
  %v3047 = vadd.f32 %v3033, 1.0
  %v3048 = vadd.f32 %v3035, 1.0
  %v3049 = vadd.f32 %v3037, 1.0
  %v3050 = vadd.f32 %v3039, 1.0
  %v3051 = vadd.f32 %v3041, 1.0
  %v3052 = vadd.f32 %v3043, 1.0
  %v3053 = vadd.f32 %v3045, 1.0
  %v3054 = vrcp.pop %v3046
  %v3055 = vmul.f32 %v3046, %v3054
  %v3056 = vsub.f32 1.0, %v3055
  %v3057 = vmul.f32 %v3054, %v3056
  %v3058 = vadd.f32 %v3054, %v3057
  %vm3059 = vweird.f32 %v3046
  %vm3060 = vweird.f32 %v3054
  %vm3061 = vmor %vm3059, %vm3060
  %v3062 = vsel %vm3061, %v3054, %v3058
  %v3063 = vand.u32 2147483647, %v3046
  %vm3064 = vcmp.eq.f32.partialorder %v3063, 8.507059e+37
  %v3065 = vand.u32 %v3046, 2147483648
  %v3066 = vor.u32 1.1754944e-38, %v3065
  %v3067 = vsel %vm3064, %v3066, %v3062
  %v3068 = vmul.f32 1.0, %v3067
  %v3069 = vrcp.pop %v3047
  %v3070 = vmul.f32 %v3047, %v3069
  %v3071 = vsub.f32 1.0, %v3070
  %v3072 = vmul.f32 %v3069, %v3071
  %v3073 = vadd.f32 %v3069, %v3072
  %vm3074 = vweird.f32 %v3047
  %vm3075 = vweird.f32 %v3069
  %vm3076 = vmor %vm3074, %vm3075
  %v3077 = vsel %vm3076, %v3069, %v3073
  %v3078 = vand.u32 2147483647, %v3047
  %vm3079 = vcmp.eq.f32.partialorder %v3078, 8.507059e+37
  %v3080 = vand.u32 %v3047, 2147483648
  %v3081 = vor.u32 1.1754944e-38, %v3080
  %v3082 = vsel %vm3079, %v3081, %v3077
  %v3083 = vmul.f32 1.0, %v3082
  %v3084 = vrcp.pop %v3048
  %v3085 = vmul.f32 %v3048, %v3084
  %v3086 = vsub.f32 1.0, %v3085
  %v3087 = vmul.f32 %v3084, %v3086
  %v3088 = vadd.f32 %v3084, %v3087
  %vm3089 = vweird.f32 %v3048
  %vm3090 = vweird.f32 %v3084
  %vm3091 = vmor %vm3089, %vm3090
  %v3092 = vsel %vm3091, %v3084, %v3088
  %v3093 = vand.u32 2147483647, %v3048
  %vm3094 = vcmp.eq.f32.partialorder %v3093, 8.507059e+37
  %v3095 = vand.u32 %v3048, 2147483648
  %v3096 = vor.u32 1.1754944e-38, %v3095
  %v3097 = vsel %vm3094, %v3096, %v3092
  %v3098 = vmul.f32 1.0, %v3097
  %v3099 = vrcp.pop %v3049
  %v3100 = vmul.f32 %v3049, %v3099
  %v3101 = vsub.f32 1.0, %v3100
  %v3102 = vmul.f32 %v3099, %v3101
  %v3103 = vadd.f32 %v3099, %v3102
  %vm3104 = vweird.f32 %v3049
  %vm3105 = vweird.f32 %v3099
  %vm3106 = vmor %vm3104, %vm3105
  %v3107 = vsel %vm3106, %v3099, %v3103
  %v3108 = vand.u32 2147483647, %v3049
  %vm3109 = vcmp.eq.f32.partialorder %v3108, 8.507059e+37
  %v3110 = vand.u32 %v3049, 2147483648
  %v3111 = vor.u32 1.1754944e-38, %v3110
  %v3112 = vsel %vm3109, %v3111, %v3107
  %v3113 = vmul.f32 1.0, %v3112
  %v3114 = vrcp.pop %v3050
  %v3115 = vmul.f32 %v3050, %v3114
  %v3116 = vsub.f32 1.0, %v3115
  %v3117 = vmul.f32 %v3114, %v3116
  %v3118 = vadd.f32 %v3114, %v3117
  %vm3119 = vweird.f32 %v3050
  %vm3120 = vweird.f32 %v3114
  %vm3121 = vmor %vm3119, %vm3120
  %v3122 = vsel %vm3121, %v3114, %v3118
  %v3123 = vand.u32 2147483647, %v3050
  %vm3124 = vcmp.eq.f32.partialorder %v3123, 8.507059e+37
  %v3125 = vand.u32 %v3050, 2147483648
  %v3126 = vor.u32 1.1754944e-38, %v3125
  %v3127 = vsel %vm3124, %v3126, %v3122
  %v3128 = vmul.f32 1.0, %v3127
  %v3129 = vrcp.pop %v3051
  %v3130 = vmul.f32 %v3051, %v3129
  %v3131 = vsub.f32 1.0, %v3130
  %v3132 = vmul.f32 %v3129, %v3131
  %v3133 = vadd.f32 %v3129, %v3132
  %vm3134 = vweird.f32 %v3051
  %vm3135 = vweird.f32 %v3129
  %vm3136 = vmor %vm3134, %vm3135
  %v3137 = vsel %vm3136, %v3129, %v3133
  %v3138 = vand.u32 2147483647, %v3051
  %vm3139 = vcmp.eq.f32.partialorder %v3138, 8.507059e+37
  %v3140 = vand.u32 %v3051, 2147483648
  %v3141 = vor.u32 1.1754944e-38, %v3140
  %v3142 = vsel %vm3139, %v3141, %v3137
  %v3143 = vmul.f32 1.0, %v3142
  %v3144 = vrcp.pop %v3052
  %v3145 = vmul.f32 %v3052, %v3144
  %v3146 = vsub.f32 1.0, %v3145
  %v3147 = vmul.f32 %v3144, %v3146
  %v3148 = vadd.f32 %v3144, %v3147
  %vm3149 = vweird.f32 %v3052
  %vm3150 = vweird.f32 %v3144
  %vm3151 = vmor %vm3149, %vm3150
  %v3152 = vsel %vm3151, %v3144, %v3148
  %v3153 = vand.u32 2147483647, %v3052
  %vm3154 = vcmp.eq.f32.partialorder %v3153, 8.507059e+37
  %v3155 = vand.u32 %v3052, 2147483648
  %v3156 = vor.u32 1.1754944e-38, %v3155
  %v3157 = vsel %vm3154, %v3156, %v3152
  %v3158 = vmul.f32 1.0, %v3157
  %v3159 = vrcp.pop %v3053
  %v3160 = vmul.f32 %v3053, %v3159
  %v3161 = vsub.f32 1.0, %v3160
  %v3162 = vmul.f32 %v3159, %v3161
  %v3163 = vadd.f32 %v3159, %v3162
  %vm3164 = vweird.f32 %v3053
  %vm3165 = vweird.f32 %v3159
  %vm3166 = vmor %vm3164, %vm3165
  %v3167 = vsel %vm3166, %v3159, %v3163
  %v3168 = vand.u32 2147483647, %v3053
  %vm3169 = vcmp.eq.f32.partialorder %v3168, 8.507059e+37
  %v3170 = vand.u32 %v3053, 2147483648
  %v3171 = vor.u32 1.1754944e-38, %v3170
  %v3172 = vsel %vm3169, %v3171, %v3167
  %v3173 = vmul.f32 1.0, %v3172
  %3174 = vrot.lane.b32.xlu0 %v2996, 64
  %v3175 = vpop.permute.xlu0 %3174
  %3176 = vrot.lane.b32.xlu0 %v2999, 64
  %v3177 = vpop.permute.xlu0 %3176
  %3178 = vrot.lane.b32.xlu0 %v3000, 64
  %v3179 = vpop.permute.xlu0 %3178
  %3180 = vrot.lane.b32.xlu0 %v3001, 64
  %v3181 = vpop.permute.xlu0 %3180
  %3182 = vrot.lane.b32.xlu0 %v3002, 64
  %v3183 = vpop.permute.xlu0 %3182
  %3184 = vrot.lane.b32.xlu0 %v3003, 64
  %v3185 = vpop.permute.xlu0 %3184
  %3186 = vrot.lane.b32.xlu0 %v3004, 64
  %v3187 = vpop.permute.xlu0 %3186
  %3188 = vrot.lane.b32.xlu0 %v3005, 64
  %v3189 = vpop.permute.xlu0 %3188
  %v3198 = vmul.f32 %v3068, %v3175
  %v3199 = vmul.f32 %v3083, %v3177
  %v3200 = vmul.f32 %v3098, %v3179
  %v3201 = vmul.f32 %v3113, %v3181
  %v3202 = vmul.f32 %v3128, %v3183
  %v3203 = vmul.f32 %v3143, %v3185
  %v3204 = vmul.f32 %v3158, %v3187
  %v3205 = vmul.f32 %v3173, %v3189
  %3214 = vrot.lane.b32.xlu0 %v3198, 64
  %v3215 = vpop.permute.xlu0 %3214
  %3216 = vrot.lane.b32.xlu0 %v3199, 64
  %v3217 = vpop.permute.xlu0 %3216
  %3218 = vrot.lane.b32.xlu0 %v3200, 64
  %v3219 = vpop.permute.xlu0 %3218
  %3220 = vrot.lane.b32.xlu0 %v3201, 64
  %v3221 = vpop.permute.xlu0 %3220
  %3222 = vrot.lane.b32.xlu0 %v3202, 64
  %v3223 = vpop.permute.xlu0 %3222
  %3224 = vrot.lane.b32.xlu0 %v3203, 64
  %v3225 = vpop.permute.xlu0 %3224
  %3226 = vrot.lane.b32.xlu0 %v3204, 64
  %v3227 = vpop.permute.xlu0 %3226
  %3228 = vrot.lane.b32.xlu0 %v3205, 64
  %v3229 = vpop.permute.xlu0 %3228
  %v3238 = vadd.f32 %v2944, %v3215
  %v3239 = vadd.f32 %v2945, %v3217
  %v3240 = vadd.f32 %v2946, %v3219
  %v3241 = vadd.f32 %v2947, %v3221
  %v3242 = vadd.f32 %v2948, %v3223
  %v3243 = vadd.f32 %v2949, %v3225
  %v3244 = vadd.f32 %v2950, %v3227
  %v3245 = vadd.f32 %v2951, %v3229
  %v3246 = vtanh.pop %v3238
  %v3247 = vtanh.pop %v3239
  %v3248 = vtanh.pop %v3240
  %v3249 = vtanh.pop %v3241
  %v3250 = vtanh.pop %v3242
  %v3251 = vtanh.pop %v3243
  %v3252 = vtanh.pop %v3244
  %v3253 = vtanh.pop %v3245
  %v3254 = vsub.f32 1.0, %v3068
  %v3255 = vsub.f32 1.0, %v3083
  %v3256 = vsub.f32 1.0, %v3098
  %v3257 = vsub.f32 1.0, %v3113
  %v3258 = vsub.f32 1.0, %v3128
  %v3259 = vsub.f32 1.0, %v3143
  %v3260 = vsub.f32 1.0, %v3158
  %v3261 = vsub.f32 1.0, %v3173
  %3270 = vrot.lane.b32.xlu0 %v3246, 96
  %v3271 = vpop.permute.xlu0 %3270
  %3272 = vrot.lane.b32.xlu0 %v3247, 96
  %v3273 = vpop.permute.xlu0 %3272
  %3274 = vrot.lane.b32.xlu0 %v3248, 96
  %v3275 = vpop.permute.xlu0 %3274
  %3276 = vrot.lane.b32.xlu0 %v3249, 96
  %v3277 = vpop.permute.xlu0 %3276
  %3278 = vrot.lane.b32.xlu0 %v3250, 96
  %v3279 = vpop.permute.xlu0 %3278
  %3280 = vrot.lane.b32.xlu0 %v3251, 96
  %v3281 = vpop.permute.xlu0 %3280
  %3282 = vrot.lane.b32.xlu0 %v3252, 96
  %v3283 = vpop.permute.xlu0 %3282
  %3284 = vrot.lane.b32.xlu0 %v3253, 96
  %v3285 = vpop.permute.xlu0 %3284
  %v3294 = vmul.f32 %v3254, %v3271
  %v3295 = vmul.f32 %v3255, %v3273
  %v3296 = vmul.f32 %v3256, %v3275
  %v3297 = vmul.f32 %v3257, %v3277
  %v3298 = vmul.f32 %v3258, %v3279
  %v3299 = vmul.f32 %v3259, %v3281
  %v3300 = vmul.f32 %v3260, %v3283
  %v3301 = vmul.f32 %v3261, %v3285
  %v3302 = vmul.f32 %v3068, %v2896
  %v3303 = vmul.f32 %v3083, %v2897
  %v3304 = vmul.f32 %v3098, %v2898
  %v3305 = vmul.f32 %v3113, %v2899
  %v3306 = vmul.f32 %v3128, %v2900
  %v3307 = vmul.f32 %v3143, %v2901
  %v3308 = vmul.f32 %v3158, %v2902
  %v3309 = vmul.f32 %v3173, %v2903
  %v3310 = vadd.f32 %v3294, %v3302
  %v3311 = vadd.f32 %v3295, %v3303
  %v3312 = vadd.f32 %v3296, %v3304
  %v3313 = vadd.f32 %v3297, %v3305
  %v3314 = vadd.f32 %v3298, %v3306
  %v3315 = vadd.f32 %v3299, %v3307
  %v3316 = vadd.f32 %v3300, %v3308
  %v3317 = vadd.f32 %v3301, %v3309
  %3326 = vrot.lane.b32.xlu0 %v3310, 96
  %v3327 = vpop.permute.xlu0 %3326
  %3328 = vrot.lane.b32.xlu0 %v3311, 96
  %v3329 = vpop.permute.xlu0 %3328
  %3330 = vrot.lane.b32.xlu0 %v3312, 96
  %v3331 = vpop.permute.xlu0 %3330
  %3332 = vrot.lane.b32.xlu0 %v3313, 96
  %v3333 = vpop.permute.xlu0 %3332
  %3334 = vrot.lane.b32.xlu0 %v3314, 96
  %v3335 = vpop.permute.xlu0 %3334
  %3336 = vrot.lane.b32.xlu0 %v3315, 96
  %v3337 = vpop.permute.xlu0 %3336
  %3338 = vrot.lane.b32.xlu0 %v3316, 96
  %v3339 = vpop.permute.xlu0 %3338
  %3340 = vrot.lane.b32.xlu0 %v3317, 96
  %v3341 = vpop.permute.xlu0 %3340
  %3350 = vst.msk [vmem:[%s3 + $0x7] sm:$0x1] %vm444, %v3327
  %3351 = vst.msk [vmem:[%s3 + $0xf] sm:$0x1] %vm444, %v3329
  %3352 = vst.msk [vmem:[%s3 + $0x17] sm:$0x1] %vm444, %v3331
  %3353 = vst.msk [vmem:[%s3 + $0x1f] sm:$0x1] %vm444, %v3333
  %3354 = vst.msk [vmem:[%s3 + $0x27] sm:$0x1] %vm444, %v3335
  %3355 = vst.msk [vmem:[%s3 + $0x2f] sm:$0x1] %vm444, %v3337
  %3356 = vst.msk [vmem:[%s3 + $0x37] sm:$0x1] %vm444, %v3339
  %3357 = vst.msk [vmem:[%s3 + $0x3f] sm:$0x1] %vm444, %v3341
  %v3358 = vrot.slane %v3311, 7
  %v3359 = vsel %vm470, %v3358, %v3310
  %v3360 = vrot.slane %v3312, 6
  %v3361 = vsel %vm473, %v3360, %v3359
  %v3362 = vrot.slane %v3313, 5
  %v3363 = vsel %vm476, %v3362, %v3361
  %v3364 = vrot.slane %v3314, 4
  %v3365 = vsel %vm479, %v3364, %v3363
  %v3366 = vrot.slane %v3315, 3
  %v3367 = vsel %vm482, %v3366, %v3365
  %v3368 = vrot.slane %v3316, 2
  %v3369 = vsel %vm485, %v3368, %v3367
  %v3370 = vrot.slane %v3317, 1
  %v3371 = vsel %vm488, %v3370, %v3369
  %3372 = vrot.lane.b32.xlu0 %v3371, 96
  %v3373 = vpop.permute.xlu0 %3372
  %3375 = vst.msk [vmem:[#allocation2] sm:$0xff] %vm37, %v3373
  // Predicated region
  $region18: #{grudina_forward.4} parent=0 // pred_check
    _
  $region19: #{grudina_forward.4} parent=0 // pred_check_branch
    %3377 = sbr.rel (0) target = $region21
  $region20: #{grudina_forward.4} parent=0 // pred_region
    _
  $region21: #{grudina_forward.4} parent=0 // pred_fallthru
    _
  // Predicated region
  $region22: #{grudina_forward.4} parent=0 // pred_check
    _
  $region23: #{grudina_forward.4} parent=0 // pred_check_branch
    %3379 = sbr.rel (0) target = $region25
  $region24: #{grudina_forward.4} parent=0 // pred_region
    _
  $region25: #{grudina_forward.4} parent=0 // pred_fallthru
    _

</llo_original>
